<compile_context>
chip_gen: v5e
topology: v5e:2x2
jax: 0.10.0
libtpu: 0.0.40
codegen_flags: <defaults>
</compile_context>

<pallas_src>
import jax
import jax.numpy as jnp
import numpy as np
from jax.experimental import pallas as pl
from jax.experimental.pallas import tpu as pltpu

KS = (1, 2, 3)          # conv kernel heights, as in the module
OUT_CHANNEL = 512       # out_channel, as in the module


def _text_cnn_kernel(x_ref, w1_ref, w2_ref, w3_ref, ball_ref, wm_ref, bm_ref,
                     out_ref, acc_ref, carry_ref):
    C = OUT_CHANNEL
    t_idx = pl.program_id(1)
    n_t = pl.num_programs(1)
    Bt, Lt, H = x_ref.shape
    M = Bt * Lt

    @pl.when(t_idx == 0)
    def _init():
        acc_ref[...] = jnp.full(acc_ref.shape, -jnp.inf, dtype=acc_ref.dtype)
        carry_ref[...] = jnp.zeros_like(carry_ref)   # avoid uninitialized read

    # Cast to bf16 in-kernel (x arrives as f32; avoids a separate XLA convert
    # pass over the whole (B, L, H) array in HBM).
    x = x_ref[...].reshape(M, H).astype(w1_ref.dtype)

    # Time-index iota for masking rolled rows that wrap past the tile edge.
    t_ids = jax.lax.broadcasted_iota(jnp.int32, (Lt, 1), 0)        # (Lt, 1)
    neg_inf = jnp.float32(-jnp.inf)

    # Previous tile's boundary carry (read before it is overwritten below).
    carry = carry_ref[...]                                          # (Bt, 4*C)
    is_cont = t_idx > 0

    # ---- K = 1 ------------------------------------------------------------
    y1 = jnp.dot(x, w1_ref[...], preferred_element_type=jnp.float32)  # (M, C)
    m1 = jnp.max(y1.reshape(Bt, Lt, C), axis=1)                       # (Bt, C)

    # ---- K = 2 ------------------------------------------------------------
    y2 = jnp.dot(x, w2_ref[...], preferred_element_type=jnp.float32)  # (M, 2C)
    # Roll tap1 up by one row on the flat slab (row i <- row i+1); rows that
    # wrap across a batch/tile edge are masked to -inf before the max.
    y2b = pltpu.roll(y2[:, C:2 * C], shift=M - 1, axis=0)
    c2 = (y2[:, 0:C] + y2b).reshape(Bt, Lt, C)
    m2 = jnp.max(jnp.where(t_ids < Lt - 1, c2, neg_inf), axis=1)
    y2r = y2.reshape(Bt, Lt, 2 * C)
    # K=2 window straddling the previous time tile (starts at prev last row).
    cross2 = carry[:, 0:C] + y2r[:, 0, C:2 * C]
    m2 = jnp.maximum(m2, jnp.where(is_cont, cross2, neg_inf))

    # ---- K = 3 ------------------------------------------------------------
    y3 = jnp.dot(x, w3_ref[...], preferred_element_type=jnp.float32)  # (M, 3C)
    y3b = pltpu.roll(y3[:, C:2 * C], shift=M - 1, axis=0)
    y3c = pltpu.roll(y3[:, 2 * C:3 * C], shift=M - 2, axis=0)
    c3 = (y3[:, 0:C] + y3b + y3c).reshape(Bt, Lt, C)
    m3 = jnp.max(jnp.where(t_ids < Lt - 2, c3, neg_inf), axis=1)
    y3r = y3.reshape(Bt, Lt, 3 * C)
    # K=3 windows straddling the previous time tile:
    #   starts at prev-2nd-last row / prev-last row.
    cross3a = carry[:, 3 * C:4 * C] + carry[:, 2 * C:3 * C] + y3r[:, 0, 2 * C:3 * C]
    cross3b = carry[:, C:2 * C] + y3r[:, 0, C:2 * C] + y3r[:, 1, 2 * C:3 * C]
    cross3 = jnp.maximum(cross3a, cross3b)
    m3 = jnp.maximum(m3, jnp.where(is_cont, cross3, neg_inf))

    # Single accumulator read-modify-write per grid step.
    acc_ref[...] = jnp.maximum(acc_ref[...],
                               jnp.concatenate([m1, m2, m3], axis=-1))

    # Carry only the tap slices consumed by the next tile's cross path.
    carry_ref[...] = jnp.concatenate(
        [y2r[:, Lt - 1, 0:C],        # prev-last row,     K=2 tap0
         y3r[:, Lt - 1, 0:C],        # prev-last row,     K=3 tap0
         y3r[:, Lt - 1, C:2 * C],    # prev-last row,     K=3 tap1
         y3r[:, Lt - 2, 0:C]],       # prev-2nd-last row, K=3 tap0
        axis=-1)

    @pl.when(t_idx == n_t - 1)
    def _finalize():
        # Bias + ReLU commute with the running max (per-channel constant bias,
        # ReLU monotone): max_t relu(conv_t + b) == relu(max_t conv_t + b).
        feat = jnp.maximum(acc_ref[...] + ball_ref[...], 0.0)       # (Bt, 3*C)
        # dropout: identity (eval mode). Mapping Linear kept in f32 (tiny).
        out = jnp.dot(feat, wm_ref[...],
                      preferred_element_type=jnp.float32) + bm_ref[...]
        # F.normalize(p=2, dim=1), eps=1e-12 -> rsqrt on clamped squared norm.
        # Padded output columns are exactly zero and do not change the norm.
        sq = jnp.sum(out * out, axis=-1, keepdims=True)
        inv = jax.lax.rsqrt(jnp.maximum(sq, 1e-24))
        out_ref[...] = (out * inv).astype(out_ref.dtype)


def _vmem_limit_bytes(block_b, block_l, H, C, final_p):
    """Rough scoped-VMEM budget for the working set (with headroom)."""
    m = block_b * block_l
    x_tile = m * H * 4 * 2                    # f32 input tile, double-buffered
    conv_w = H * 6 * C * 2 * 2                # bf16 conv weights (+ headroom)
    y_live = m * 3 * C * 4 * 3                # largest per-group f32 temp (+copies)
    map_w = (3 * C * final_p + final_p + 3 * C) * 4 * 2
    scratch = block_b * (3 * C + 4 * C) * 4
    out = block_b * final_p * 4 * 2
    total = x_tile + conv_w + y_live + map_w + scratch + out + (4 << 20)
    # >= 32 MiB everywhere; <= 48 MiB so it stays safe on v7x's 64 MiB VMEM.
    return int(min(max(total, 32 << 20), 48 << 20))


def text_encoder_head(x, w1, b1, w2, b2, w3, b3, wm, bm, *,
                      block_b=None, block_l=None, compute_dtype=jnp.bfloat16):
    """x: (B, L, H) float32 BERT sequence output. Returns (B, final_dims)."""
    B, L, H = x.shape
    C = OUT_CHANNEL
    final_dims = wm.shape[0]
    assert wm.shape[1] == len(KS) * C
    assert L >= 3, "need at least one K=3 window"

    if block_b is None:
        # B >= 16 automatically gives >= 2 batch tiles, so the "parallel"
        # batch axis can be sharded across both TensorCores on v7x.
        block_b = min(B, 8)
    if block_l is None:
        # v5e (tight scoped VMEM / slow MXU) may prefer 32-64 here.
        block_l = min(L, 128)
    assert B % block_b == 0 and L % block_l == 0
    assert block_l >= 3  # every time tile must fully contain a K=3 window

    # Host-side weight layout: one (H, k*C) matrix per conv, holding its
    # per-tap slices pre-transposed to (in, out); mapping also pre-transposed.
    wg1 = w1[:, 0:H].T.astype(compute_dtype)                           # (H,  C)
    wg2 = jnp.concatenate([w2[:, 0:H].T, w2[:, H:2 * H].T],
                          axis=1).astype(compute_dtype)                # (H, 2C)
    wg3 = jnp.concatenate([w3[:, 0:H].T, w3[:, H:2 * H].T, w3[:, 2 * H:3 * H].T],
                          axis=1).astype(compute_dtype)                # (H, 3C)
    b_all = jnp.concatenate(
        [b1.reshape(1, C), b2.reshape(1, C), b3.reshape(1, C)],
        axis=1).astype(jnp.float32)                                    # (1, 3C)

    # Pad final_dims up to a lane-dense multiple of 128 (zeros do not affect
    # the L2 norm); slice the padding off after the call.
    final_p = ((final_dims + 127) // 128) * 128
    wm_t = wm.T.astype(jnp.float32)                                    # (3C, final)
    bm_r = bm.reshape(1, final_dims).astype(jnp.float32)               # (1, final)
    if final_p != final_dims:
        wm_t = jnp.pad(wm_t, ((0, 0), (0, final_p - final_dims)))
        bm_r = jnp.pad(bm_r, ((0, 0), (0, final_p - final_dims)))

    grid = (B // block_b, L // block_l)
    vmem_limit = _vmem_limit_bytes(block_b, block_l, H, C, final_p)

    def _call(single_buffer_weights):
        inv_kw = {}
        if single_buffer_weights:
            # Grid-invariant operands: single VMEM buffer (never re-fetched).
            inv_kw = dict(pipeline_mode=pl.Buffered(1))
        const_idx = lambda b, t: (0, 0)

        grid_spec = pltpu.PrefetchScalarGridSpec(
            num_scalar_prefetch=0,
            grid=grid,
            in_specs=[
                pl.BlockSpec((block_b, block_l, H), lambda b, t: (b, t, 0)),
                pl.BlockSpec((H, C), const_idx, **inv_kw),
                pl.BlockSpec((H, 2 * C), const_idx, **inv_kw),
                pl.BlockSpec((H, 3 * C), const_idx, **inv_kw),
                pl.BlockSpec((1, 3 * C), const_idx, **inv_kw),
                pl.BlockSpec((3 * C, final_p), const_idx, **inv_kw),
                pl.BlockSpec((1, final_p), const_idx, **inv_kw),
            ],
            out_specs=pl.BlockSpec((block_b, final_p), lambda b, t: (b, 0)),
            scratch_shapes=[
                pltpu.VMEM((block_b, 3 * C), jnp.float32),       # running max
                pltpu.VMEM((block_b, 4 * C), jnp.float32),       # boundary carry
            ],
        )
        return pl.pallas_call(
            _text_cnn_kernel,
            grid_spec=grid_spec,
            out_shape=jax.ShapeDtypeStruct((B, final_p), jnp.float32),
            compiler_params=pltpu.CompilerParams(
                dimension_semantics=("parallel", "arbitrary"),
                vmem_limit_bytes=vmem_limit),
        )(x, wg1, wg2, wg3, b_all, wm_t, bm_r)

    try:
        out = _call(True)
    except Exception:
        # Fallback: some jax versions reject pl.Buffered(1); use the default
        # double-buffered pipeline for the grid-invariant operands instead.
        out = _call(False)

    if final_p != final_dims:
        out = out[:, :final_dims]
    return out


def _reference(x, w1, b1, w2, b2, w3, b3, wm, bm):
    """Pure-JAX f32 reference mirroring the PyTorch forward (eval mode)."""
    B, L, H = x.shape
    feats = []
    for K, w, b in ((1, w1, b1), (2, w2, b2), (3, w3, b3)):
        T = L - K + 1
        win = jnp.concatenate([x[:, k:k + T, :] for k in range(K)], axis=-1)
        conv = jnp.einsum("btf,cf->btc", win, w,
                          preferred_element_type=jnp.float32) + b.reshape(1, 1, -1)
        conv = jax.nn.relu(conv)
        feats.append(jnp.max(conv, axis=1))
    feat = jnp.concatenate(feats, axis=-1)
    out = feat @ wm.T + bm.reshape(-1)
    n = jnp.maximum(jnp.linalg.norm(out, axis=1, keepdims=True), 1e-12)
    return out / n


if __name__ == "__main__":
    B, L, H, V, FINAL = 2, 16, 32, 64, 256   # batch, seq, hidden, vocab, final_dims

    key = jax.random.PRNGKey(0)
    ks = jax.random.split(key, 12)

    # TODO(synk): the full pretrained BERT transformer stack (self.bert) has no
    # compact Pallas equivalent here; a deterministic token-embedding lookup
    # stands in for the BERT sequence output.
    emb_table = jax.random.normal(ks[0], (V, H), jnp.float32) * 0.02
    input_ids = jax.random.randint(ks[1], (B, L), 0, V)
    x = emb_table[input_ids].astype(jnp.float32)          # (B, L, H)

    # Conv2d weights: torch shape (512, 1, K, H) -> flattened (512, K*H)
    w1 = jax.random.normal(ks[2], (OUT_CHANNEL, 1 * H), jnp.float32) * 0.05
    w2 = jax.random.normal(ks[3], (OUT_CHANNEL, 2 * H), jnp.float32) * 0.05
    w3 = jax.random.normal(ks[4], (OUT_CHANNEL, 3 * H), jnp.float32) * 0.05
    b1 = jax.random.normal(ks[5], (1, OUT_CHANNEL), jnp.float32) * 0.01
    b2 = jax.random.normal(ks[6], (1, OUT_CHANNEL), jnp.float32) * 0.01
    b3 = jax.random.normal(ks[7], (1, OUT_CHANNEL), jnp.float32) * 0.01
    # mapping: Linear(len(Ks)*512 -> final_dims)
    wm = jax.random.normal(ks[8], (FINAL, len(KS) * OUT_CHANNEL), jnp.float32) * 0.02
    bm = jax.random.normal(ks[9], (1, FINAL), jnp.float32) * 0.01

    # Two time tiles (block_l=8 < L=16) so the boundary-carry path is exercised.
    out = text_encoder_head(x, w1, b1, w2, b2, w3, b3, wm, bm,
                            block_b=2, block_l=8)
    out = jax.block_until_ready(out)

    # Reference computed in f32 on the same bf16-rounded x / conv weights the
    # kernel consumes, so the remaining difference is accumulation order only.
    rq = lambda a: a.astype(jnp.bfloat16).astype(jnp.float32)
    ref = _reference(rq(x), rq(w1), b1, rq(w2), b2, rq(w3), b3, wm, bm)

    np.testing.assert_allclose(np.asarray(out), np.asarray(ref),
                               rtol=2e-3, atol=1e-5)
    assert out.shape == (B, FINAL)

    print("KERNEL_OK")
</pallas_src>

<mosaic_0001>
module attributes {stable_mosaic.version = 11 : i64} {
  func.func @_text_cnn_kernel(%arg0: i32, %arg1: i32, %arg2: memref<2x8x32xf32, #tpu.memory_space<vmem>>, %arg3: memref<32x512xbf16, #tpu.memory_space<vmem>>, %arg4: memref<32x1024xbf16, #tpu.memory_space<vmem>>, %arg5: memref<32x1536xbf16, #tpu.memory_space<vmem>>, %arg6: memref<1x1536xf32, #tpu.memory_space<vmem>>, %arg7: memref<1536x256xf32, #tpu.memory_space<vmem>>, %arg8: memref<1x256xf32, #tpu.memory_space<vmem>>, %arg9: memref<2x256xf32, #tpu.memory_space<vmem>>, %arg10: memref<2x1536xf32, #tpu.memory_space<vmem>>, %arg11: memref<2x2048xf32, #tpu.memory_space<vmem>>) attributes {dimension_semantics = [#tpu.dimension_semantics<parallel>, #tpu.dimension_semantics<arbitrary>], iteration_bounds = array<i64: 1, 2>, scalar_prefetch = 0 : i64, scratch_operands = 2 : i64, tpu.core_type = #tpu.core_type<tc>, window_params = [{transform_indices = @transform_0, window_bounds = array<i64: 2, 8, 32>}, {pipeline_mode = #tpu.pipeline_mode<synchronous>, transform_indices = @transform_1, window_bounds = array<i64: 32, 512>}, {pipeline_mode = #tpu.pipeline_mode<synchronous>, transform_indices = @transform_2, window_bounds = array<i64: 32, 1024>}, {pipeline_mode = #tpu.pipeline_mode<synchronous>, transform_indices = @transform_3, window_bounds = array<i64: 32, 1536>}, {pipeline_mode = #tpu.pipeline_mode<synchronous>, transform_indices = @transform_4, window_bounds = array<i64: 1, 1536>}, {pipeline_mode = #tpu.pipeline_mode<synchronous>, transform_indices = @transform_5, window_bounds = array<i64: 1536, 256>}, {pipeline_mode = #tpu.pipeline_mode<synchronous>, transform_indices = @transform_6, window_bounds = array<i64: 1, 256>}, {transform_indices = @transform_7, window_bounds = array<i64: 2, 256>}]} {
    %c0_i32 = arith.constant 0 : i32
    %0 = arith.cmpi eq, %arg1, %c0_i32 : i32
    %1 = arith.extui %0 : i1 to i32
    %c0_i32_0 = arith.constant 0 : i32
    %2 = arith.cmpi ne, %1, %c0_i32_0 : i32
    scf.if %2 {
      %cst_29 = arith.constant 0xFF800000 : f32
      %87 = vector.broadcast %cst_29 : f32 to vector<2x1536xf32>
      %c0_30 = arith.constant 0 : index
      %c0_31 = arith.constant 0 : index
      %88 = vector.load %arg10[%c0_30, %c0_31] : memref<2x1536xf32, #tpu.memory_space<vmem>>, vector<2x1536xf32>
      tpu.vector_store %arg10[%c0_30, %c0_31], %87 {strides = array<i32>} : memref<2x1536xf32, #tpu.memory_space<vmem>>, vector<2x1536xf32>,
      %cst_32 = arith.constant 0.000000e+00 : f32
      %89 = vector.broadcast %cst_32 : f32 to vector<2x2048xf32>
      %c0_33 = arith.constant 0 : index
      %c0_34 = arith.constant 0 : index
      %90 = vector.load %arg11[%c0_33, %c0_34] : memref<2x2048xf32, #tpu.memory_space<vmem>>, vector<2x2048xf32>
      tpu.vector_store %arg11[%c0_33, %c0_34], %89 {strides = array<i32>} : memref<2x2048xf32, #tpu.memory_space<vmem>>, vector<2x2048xf32>,
    } else {
    }
    %c0 = arith.constant 0 : index
    %c0_1 = arith.constant 0 : index
    %c0_2 = arith.constant 0 : index
    %3 = vector.load %arg2[%c0, %c0_1, %c0_2] : memref<2x8x32xf32, #tpu.memory_space<vmem>>, vector<2x8x32xf32>
    %4 = vector.shape_cast %3 : vector<2x8x32xf32> to vector<16x32xf32>
    %5 = arith.truncf %4 : vector<16x32xf32> to vector<16x32xbf16>
    %6 = tpu.iota {dimensions = array<i32: 0>} : vector<8x1xi32>
    %c0_3 = arith.constant 0 : index
    %c0_4 = arith.constant 0 : index
    %7 = vector.load %arg11[%c0_3, %c0_4] : memref<2x2048xf32, #tpu.memory_space<vmem>>, vector<2x2048xf32>
    %c0_i32_5 = arith.constant 0 : i32
    %8 = arith.cmpi sgt, %arg1, %c0_i32_5 : i32
    %c0_6 = arith.constant 0 : index
    %c0_7 = arith.constant 0 : index
    %9 = vector.load %arg3[%c0_6, %c0_7] : memref<32x512xbf16, #tpu.memory_space<vmem>>, vector<32x512xbf16>
    %cst = arith.constant dense<0.000000e+00> : vector<16x512xf32>
    %10 = tpu.matmul %5, %9, %cst {dimension_numbers = #tpu.dot_dimension_numbers<[1], [0], [0], [1], [0, 0, 1, 1], [], []>} : vector<16x32xbf16>, vector<32x512xbf16>, vector<16x512xf32> -> vector<16x512xf32>
    %11 = vector.shape_cast %10 : vector<16x512xf32> to vector<2x8x512xf32>
    %cst_8 = arith.constant dense<0xFF800000> : vector<2x512xf32>
    %12 = vector.multi_reduction <maximumf>, %11, %cst_8 [1] : vector<2x8x512xf32> to vector<2x512xf32>
    %c0_9 = arith.constant 0 : index
    %c0_10 = arith.constant 0 : index
    %13 = vector.load %arg4[%c0_9, %c0_10] : memref<32x1024xbf16, #tpu.memory_space<vmem>>, vector<32x1024xbf16>
    %cst_11 = arith.constant dense<0.000000e+00> : vector<16x1024xf32>
    %14 = tpu.matmul %5, %13, %cst_11 {dimension_numbers = #tpu.dot_dimension_numbers<[1], [0], [0], [1], [0, 0, 1, 1], [], []>} : vector<16x32xbf16>, vector<32x1024xbf16>, vector<16x1024xf32> -> vector<16x1024xf32>
    %15 = vector.extract_strided_slice %14 {offsets = [0, 512], sizes = [16, 512], strides = [1, 1]} : vector<16x1024xf32> to vector<16x512xf32>
    %c15_i32 = arith.constant 15 : i32
    %16 = tpu.dynamic_rotate %15 by %c15_i32 dim 0 : vector<16x512xf32>, i32 -> vector<16x512xf32>
    %17 = vector.extract_strided_slice %14 {offsets = [0, 0], sizes = [16, 512], strides = [1, 1]} : vector<16x1024xf32> to vector<16x512xf32>
    %18 = arith.addf %17, %16 : vector<16x512xf32>
    %19 = vector.shape_cast %18 : vector<16x512xf32> to vector<2x8x512xf32>
    %c7_i32 = arith.constant 7 : i32
    %20 = vector.broadcast %c7_i32 : i32 to vector<8x1xi32>
    %21 = arith.cmpi slt, %6, %20 : vector<8x1xi32>
    %cst_12 = arith.constant 0xFF800000 : f32
    %22 = vector.shape_cast %21 : vector<8x1xi1> to vector<1x8x1xi1>
    %23 = vector.broadcast %22 : vector<1x8x1xi1> to vector<2x8x512xi1>
    %24 = vector.broadcast %cst_12 : f32 to vector<2x8x512xf32>
    %25 = arith.select %23, %19, %24 : vector<2x8x512xi1>, vector<2x8x512xf32>
    %cst_13 = arith.constant dense<0xFF800000> : vector<2x512xf32>
    %26 = vector.multi_reduction <maximumf>, %25, %cst_13 [1] : vector<2x8x512xf32> to vector<2x512xf32>
    %27 = vector.shape_cast %14 : vector<16x1024xf32> to vector<2x8x1024xf32>
    %28 = vector.extract_strided_slice %7 {offsets = [0, 0], sizes = [2, 512], strides = [1, 1]} : vector<2x2048xf32> to vector<2x512xf32>
    %29 = vector.extract_strided_slice %27 {offsets = [0, 0, 512], sizes = [2, 1, 512], strides = [1, 1, 1]} : vector<2x8x1024xf32> to vector<2x1x512xf32>
    %30 = vector.shape_cast %29 : vector<2x1x512xf32> to vector<2x512xf32>
    %31 = arith.addf %28, %30 : vector<2x512xf32>
    %cst_14 = arith.constant 0xFF800000 : f32
    %32 = vector.broadcast %cst_14 : f32 to vector<2x512xf32>
    %33 = arith.select %8, %31, %32 : vector<2x512xf32>
    %34 = arith.maximumf %26, %33 : vector<2x512xf32>
    %c0_15 = arith.constant 0 : index
    %c0_16 = arith.constant 0 : index
    %35 = vector.load %arg5[%c0_15, %c0_16] : memref<32x1536xbf16, #tpu.memory_space<vmem>>, vector<32x1536xbf16>
    %cst_17 = arith.constant dense<0.000000e+00> : vector<16x1536xf32>
    %36 = tpu.matmul %5, %35, %cst_17 {dimension_numbers = #tpu.dot_dimension_numbers<[1], [0], [0], [1], [0, 0, 1, 1], [], []>} : vector<16x32xbf16>, vector<32x1536xbf16>, vector<16x1536xf32> -> vector<16x1536xf32>
    %37 = vector.extract_strided_slice %36 {offsets = [0, 512], sizes = [16, 512], strides = [1, 1]} : vector<16x1536xf32> to vector<16x512xf32>
    %c15_i32_18 = arith.constant 15 : i32
    %38 = tpu.dynamic_rotate %37 by %c15_i32_18 dim 0 : vector<16x512xf32>, i32 -> vector<16x512xf32>
    %39 = vector.extract_strided_slice %36 {offsets = [0, 1024], sizes = [16, 512], strides = [1, 1]} : vector<16x1536xf32> to vector<16x512xf32>
    %c14_i32 = arith.constant 14 : i32
    %40 = tpu.dynamic_rotate %39 by %c14_i32 dim 0 : vector<16x512xf32>, i32 -> vector<16x512xf32>
    %41 = vector.extract_strided_slice %36 {offsets = [0, 0], sizes = [16, 512], strides = [1, 1]} : vector<16x1536xf32> to vector<16x512xf32>
    %42 = arith.addf %41, %38 : vector<16x512xf32>
    %43 = arith.addf %42, %40 : vector<16x512xf32>
    %44 = vector.shape_cast %43 : vector<16x512xf32> to vector<2x8x512xf32>
    %c6_i32 = arith.constant 6 : i32
    %45 = vector.broadcast %c6_i32 : i32 to vector<8x1xi32>
    %46 = arith.cmpi slt, %6, %45 : vector<8x1xi32>
    %cst_19 = arith.constant 0xFF800000 : f32
    %47 = vector.shape_cast %46 : vector<8x1xi1> to vector<1x8x1xi1>
    %48 = vector.broadcast %47 : vector<1x8x1xi1> to vector<2x8x512xi1>
    %49 = vector.broadcast %cst_19 : f32 to vector<2x8x512xf32>
    %50 = arith.select %48, %44, %49 : vector<2x8x512xi1>, vector<2x8x512xf32>
    %cst_20 = arith.constant dense<0xFF800000> : vector<2x512xf32>
    %51 = vector.multi_reduction <maximumf>, %50, %cst_20 [1] : vector<2x8x512xf32> to vector<2x512xf32>
    %52 = vector.shape_cast %36 : vector<16x1536xf32> to vector<2x8x1536xf32>
    %53 = vector.extract_strided_slice %7 {offsets = [0, 1536], sizes = [2, 512], strides = [1, 1]} : vector<2x2048xf32> to vector<2x512xf32>
    %54 = vector.extract_strided_slice %7 {offsets = [0, 1024], sizes = [2, 512], strides = [1, 1]} : vector<2x2048xf32> to vector<2x512xf32>
    %55 = arith.addf %53, %54 : vector<2x512xf32>
    %56 = vector.extract_strided_slice %52 {offsets = [0, 0, 1024], sizes = [2, 1, 512], strides = [1, 1, 1]} : vector<2x8x1536xf32> to vector<2x1x512xf32>
    %57 = vector.shape_cast %56 : vector<2x1x512xf32> to vector<2x512xf32>
    %58 = arith.addf %55, %57 : vector<2x512xf32>
    %59 = vector.extract_strided_slice %7 {offsets = [0, 512], sizes = [2, 512], strides = [1, 1]} : vector<2x2048xf32> to vector<2x512xf32>
    %60 = vector.extract_strided_slice %52 {offsets = [0, 0, 512], sizes = [2, 1, 512], strides = [1, 1, 1]} : vector<2x8x1536xf32> to vector<2x1x512xf32>
    %61 = vector.shape_cast %60 : vector<2x1x512xf32> to vector<2x512xf32>
    %62 = arith.addf %59, %61 : vector<2x512xf32>
    %63 = vector.extract_strided_slice %52 {offsets = [0, 1, 1024], sizes = [2, 1, 512], strides = [1, 1, 1]} : vector<2x8x1536xf32> to vector<2x1x512xf32>
    %64 = vector.shape_cast %63 : vector<2x1x512xf32> to vector<2x512xf32>
    %65 = arith.addf %62, %64 : vector<2x512xf32>
    %66 = arith.maximumf %58, %65 : vector<2x512xf32>
    %cst_21 = arith.constant 0xFF800000 : f32
    %67 = vector.broadcast %cst_21 : f32 to vector<2x512xf32>
    %68 = arith.select %8, %66, %67 : vector<2x512xf32>
    %69 = arith.maximumf %51, %68 : vector<2x512xf32>
    %c0_22 = arith.constant 0 : index
    %c0_23 = arith.constant 0 : index
    %70 = vector.load %arg10[%c0_22, %c0_23] : memref<2x1536xf32, #tpu.memory_space<vmem>>, vector<2x1536xf32>
    %71 = tpu.concatenate %12, %34, %69 in 1 : vector<2x512xf32>, vector<2x512xf32>, vector<2x512xf32> -> vector<2x1536xf32>
    %72 = arith.maximumf %70, %71 : vector<2x1536xf32>
    %c0_24 = arith.constant 0 : index
    %c0_25 = arith.constant 0 : index
    %73 = vector.load %arg10[%c0_24, %c0_25] : memref<2x1536xf32, #tpu.memory_space<vmem>>, vector<2x1536xf32>
    tpu.vector_store %arg10[%c0_24, %c0_25], %72 {strides = array<i32>} : memref<2x1536xf32, #tpu.memory_space<vmem>>, vector<2x1536xf32>,
    %74 = vector.extract_strided_slice %27 {offsets = [0, 7, 0], sizes = [2, 1, 512], strides = [1, 1, 1]} : vector<2x8x1024xf32> to vector<2x1x512xf32>
    %75 = vector.shape_cast %74 : vector<2x1x512xf32> to vector<2x512xf32>
    %76 = vector.extract_strided_slice %52 {offsets = [0, 7, 0], sizes = [2, 1, 512], strides = [1, 1, 1]} : vector<2x8x1536xf32> to vector<2x1x512xf32>
    %77 = vector.shape_cast %76 : vector<2x1x512xf32> to vector<2x512xf32>
    %78 = vector.extract_strided_slice %52 {offsets = [0, 7, 512], sizes = [2, 1, 512], strides = [1, 1, 1]} : vector<2x8x1536xf32> to vector<2x1x512xf32>
    %79 = vector.shape_cast %78 : vector<2x1x512xf32> to vector<2x512xf32>
    %80 = vector.extract_strided_slice %52 {offsets = [0, 6, 0], sizes = [2, 1, 512], strides = [1, 1, 1]} : vector<2x8x1536xf32> to vector<2x1x512xf32>
    %81 = vector.shape_cast %80 : vector<2x1x512xf32> to vector<2x512xf32>
    %82 = tpu.concatenate %75, %77, %79, %81 in 1 : vector<2x512xf32>, vector<2x512xf32>, vector<2x512xf32>, vector<2x512xf32> -> vector<2x2048xf32>
    %c0_26 = arith.constant 0 : index
    %c0_27 = arith.constant 0 : index
    %83 = vector.load %arg11[%c0_26, %c0_27] : memref<2x2048xf32, #tpu.memory_space<vmem>>, vector<2x2048xf32>
    tpu.vector_store %arg11[%c0_26, %c0_27], %82 {strides = array<i32>} : memref<2x2048xf32, #tpu.memory_space<vmem>>, vector<2x2048xf32>,
    %c1_i32 = arith.constant 1 : i32
    %84 = arith.cmpi eq, %arg1, %c1_i32 : i32
    %85 = arith.extui %84 : i1 to i32
    %c0_i32_28 = arith.constant 0 : i32
    %86 = arith.cmpi ne, %85, %c0_i32_28 : i32
    scf.if %86 {
      %c0_29 = arith.constant 0 : index
      %c0_30 = arith.constant 0 : index
      %87 = vector.load %arg10[%c0_29, %c0_30] : memref<2x1536xf32, #tpu.memory_space<vmem>>, vector<2x1536xf32>
      %c0_31 = arith.constant 0 : index
      %c0_32 = arith.constant 0 : index
      %88 = vector.load %arg6[%c0_31, %c0_32] : memref<1x1536xf32, #tpu.memory_space<vmem>>, vector<1x1536xf32>
      %89 = vector.broadcast %88 : vector<1x1536xf32> to vector<2x1536xf32>
      %90 = arith.addf %87, %89 : vector<2x1536xf32>
      %cst_33 = arith.constant 0.000000e+00 : f32
      %91 = vector.broadcast %cst_33 : f32 to vector<2x1536xf32>
      %92 = arith.maximumf %90, %91 : vector<2x1536xf32>
      %c0_34 = arith.constant 0 : index
      %c0_35 = arith.constant 0 : index
      %93 = vector.load %arg7[%c0_34, %c0_35] : memref<1536x256xf32, #tpu.memory_space<vmem>>, vector<1536x256xf32>
      %cst_36 = arith.constant dense<0.000000e+00> : vector<2x256xf32>
      %94 = tpu.matmul %92, %93, %cst_36 {dimension_numbers = #tpu.dot_dimension_numbers<[1], [0], [0], [1], [0, 0, 1, 1], [], []>} : vector<2x1536xf32>, vector<1536x256xf32>, vector<2x256xf32> -> vector<2x256xf32>
      %c0_37 = arith.constant 0 : index
      %c0_38 = arith.constant 0 : index
      %95 = vector.load %arg8[%c0_37, %c0_38] : memref<1x256xf32, #tpu.memory_space<vmem>>, vector<1x256xf32>
      %96 = vector.broadcast %95 : vector<1x256xf32> to vector<2x256xf32>
      %97 = arith.addf %94, %96 : vector<2x256xf32>
      %98 = arith.mulf %97, %97 : vector<2x256xf32>
      %cst_39 = arith.constant dense<0.000000e+00> : vector<2xf32>
      %99 = vector.multi_reduction <add>, %98, %cst_39 [1] : vector<2x256xf32> to vector<2xf32>
      %100 = vector.shape_cast %99 : vector<2xf32> to vector<2x1xf32>
      %cst_40 = arith.constant 1.000000e-24 : f32
      %101 = vector.broadcast %cst_40 : f32 to vector<2x1xf32>
      %102 = arith.maximumf %100, %101 : vector<2x1xf32>
      %103 = math.rsqrt %102 : vector<2x1xf32>
      %104 = vector.broadcast %103 : vector<2x1xf32> to vector<2x256xf32>
      %105 = arith.mulf %97, %104 : vector<2x256xf32>
      %c0_41 = arith.constant 0 : index
      %c0_42 = arith.constant 0 : index
      %106 = vector.load %arg9[%c0_41, %c0_42] : memref<2x256xf32, #tpu.memory_space<vmem>>, vector<2x256xf32>
      tpu.vector_store %arg9[%c0_41, %c0_42], %105 {strides = array<i32>} : memref<2x256xf32, #tpu.memory_space<vmem>>, vector<2x256xf32>,
    } else {
    }
    return
  }
  func.func @transform_0(%arg0: i32, %arg1: i32) -> (i32, i32, i32) {
    %c0_i32 = arith.constant 0 : i32
    %c0_i32_0 = arith.constant 0 : i32
    return %arg0, %arg1, %c0_i32 : i32, i32, i32
  }
  func.func @transform_1(%arg0: i32, %arg1: i32) -> (i32, i32) {
    %c0_i32 = arith.constant 0 : i32
    %c0_i32_0 = arith.constant 0 : i32
    %c0_i32_1 = arith.constant 0 : i32
    return %c0_i32, %c0_i32_0 : i32, i32
  }
  func.func @transform_2(%arg0: i32, %arg1: i32) -> (i32, i32) {
    %c0_i32 = arith.constant 0 : i32
    %c0_i32_0 = arith.constant 0 : i32
    %c0_i32_1 = arith.constant 0 : i32
    return %c0_i32, %c0_i32_0 : i32, i32
  }
  func.func @transform_3(%arg0: i32, %arg1: i32) -> (i32, i32) {
    %c0_i32 = arith.constant 0 : i32
    %c0_i32_0 = arith.constant 0 : i32
    %c0_i32_1 = arith.constant 0 : i32
    return %c0_i32, %c0_i32_0 : i32, i32
  }
  func.func @transform_4(%arg0: i32, %arg1: i32) -> (i32, i32) {
    %c0_i32 = arith.constant 0 : i32
    %c0_i32_0 = arith.constant 0 : i32
    %c0_i32_1 = arith.constant 0 : i32
    return %c0_i32, %c0_i32_0 : i32, i32
  }
  func.func @transform_5(%arg0: i32, %arg1: i32) -> (i32, i32) {
    %c0_i32 = arith.constant 0 : i32
    %c0_i32_0 = arith.constant 0 : i32
    %c0_i32_1 = arith.constant 0 : i32
    return %c0_i32, %c0_i32_0 : i32, i32
  }
  func.func @transform_6(%arg0: i32, %arg1: i32) -> (i32, i32) {
    %c0_i32 = arith.constant 0 : i32
    %c0_i32_0 = arith.constant 0 : i32
    %c0_i32_1 = arith.constant 0 : i32
    return %c0_i32, %c0_i32_0 : i32, i32
  }
  func.func @transform_7(%arg0: i32, %arg1: i32) -> (i32, i32) {
    %c0_i32 = arith.constant 0 : i32
    %c0_i32_0 = arith.constant 0 : i32
    return %arg0, %c0_i32 : i32, i32
  }
}

module attributes {stable_mosaic.version = 11 : i64} {
  func.func @_text_cnn_kernel(%arg0: i32, %arg1: i32, %arg2: memref<2x8x32xf32, #tpu.memory_space<vmem>>, %arg3: memref<32x512xbf16, #tpu.memory_space<vmem>>, %arg4: memref<32x1024xbf16, #tpu.memory_space<vmem>>, %arg5: memref<32x1536xbf16, #tpu.memory_space<vmem>>, %arg6: memref<1x1536xf32, #tpu.memory_space<vmem>>, %arg7: memref<1536x256xf32, #tpu.memory_space<vmem>>, %arg8: memref<1x256xf32, #tpu.memory_space<vmem>>, %arg9: memref<2x256xf32, #tpu.memory_space<vmem>>, %arg10: memref<2x1536xf32, #tpu.memory_space<vmem>>, %arg11: memref<2x2048xf32, #tpu.memory_space<vmem>>) attributes {dimension_semantics = [#tpu.dimension_semantics<parallel>, #tpu.dimension_semantics<arbitrary>], iteration_bounds = array<i64: 1, 2>, scalar_prefetch = 0 : i64, scratch_operands = 2 : i64, tpu.core_type = #tpu.core_type<tc>, window_params = [{transform_indices = @transform_0, window_bounds = array<i64: 2, 8, 32>}, {pipeline_mode = #tpu.pipeline_mode<synchronous>, transform_indices = @transform_1, window_bounds = array<i64: 32, 512>}, {pipeline_mode = #tpu.pipeline_mode<synchronous>, transform_indices = @transform_2, window_bounds = array<i64: 32, 1024>}, {pipeline_mode = #tpu.pipeline_mode<synchronous>, transform_indices = @transform_3, window_bounds = array<i64: 32, 1536>}, {pipeline_mode = #tpu.pipeline_mode<synchronous>, transform_indices = @transform_4, window_bounds = array<i64: 1, 1536>}, {pipeline_mode = #tpu.pipeline_mode<synchronous>, transform_indices = @transform_5, window_bounds = array<i64: 1536, 256>}, {pipeline_mode = #tpu.pipeline_mode<synchronous>, transform_indices = @transform_6, window_bounds = array<i64: 1, 256>}, {transform_indices = @transform_7, window_bounds = array<i64: 2, 256>}]} {
    %c0_i32 = arith.constant 0 : i32
    %0 = arith.cmpi eq, %arg1, %c0_i32 : i32
    %1 = arith.extui %0 : i1 to i32
    %c0_i32_0 = arith.constant 0 : i32
    %2 = arith.cmpi ne, %1, %c0_i32_0 : i32
    scf.if %2 {
      %cst_29 = arith.constant 0xFF800000 : f32
      %87 = vector.broadcast %cst_29 : f32 to vector<2x1536xf32>
      %c0_30 = arith.constant 0 : index
      %c0_31 = arith.constant 0 : index
      %88 = vector.load %arg10[%c0_30, %c0_31] : memref<2x1536xf32, #tpu.memory_space<vmem>>, vector<2x1536xf32>
      tpu.vector_store %arg10[%c0_30, %c0_31], %87 {strides = array<i32>} : memref<2x1536xf32, #tpu.memory_space<vmem>>, vector<2x1536xf32>,
      %cst_32 = arith.constant 0.000000e+00 : f32
      %89 = vector.broadcast %cst_32 : f32 to vector<2x2048xf32>
      %c0_33 = arith.constant 0 : index
      %c0_34 = arith.constant 0 : index
      %90 = vector.load %arg11[%c0_33, %c0_34] : memref<2x2048xf32, #tpu.memory_space<vmem>>, vector<2x2048xf32>
      tpu.vector_store %arg11[%c0_33, %c0_34], %89 {strides = array<i32>} : memref<2x2048xf32, #tpu.memory_space<vmem>>, vector<2x2048xf32>,
    } else {
    }
    %c0 = arith.constant 0 : index
    %c0_1 = arith.constant 0 : index
    %c0_2 = arith.constant 0 : index
    %3 = vector.load %arg2[%c0, %c0_1, %c0_2] : memref<2x8x32xf32, #tpu.memory_space<vmem>>, vector<2x8x32xf32>
    %4 = vector.shape_cast %3 : vector<2x8x32xf32> to vector<16x32xf32>
    %5 = arith.truncf %4 : vector<16x32xf32> to vector<16x32xbf16>
    %6 = tpu.iota {dimensions = array<i32: 0>} : vector<8x1xi32>
    %c0_3 = arith.constant 0 : index
    %c0_4 = arith.constant 0 : index
    %7 = vector.load %arg11[%c0_3, %c0_4] : memref<2x2048xf32, #tpu.memory_space<vmem>>, vector<2x2048xf32>
    %c0_i32_5 = arith.constant 0 : i32
    %8 = arith.cmpi sgt, %arg1, %c0_i32_5 : i32
    %c0_6 = arith.constant 0 : index
    %c0_7 = arith.constant 0 : index
    %9 = vector.load %arg3[%c0_6, %c0_7] : memref<32x512xbf16, #tpu.memory_space<vmem>>, vector<32x512xbf16>
    %cst = arith.constant dense<0.000000e+00> : vector<16x512xf32>
    %10 = tpu.matmul %5, %9, %cst {dimension_numbers = #tpu.dot_dimension_numbers<[1], [0], [0], [1], [0, 0, 1, 1], [], []>} : vector<16x32xbf16>, vector<32x512xbf16>, vector<16x512xf32> -> vector<16x512xf32>
    %11 = vector.shape_cast %10 : vector<16x512xf32> to vector<2x8x512xf32>
    %cst_8 = arith.constant dense<0xFF800000> : vector<2x512xf32>
    %12 = vector.multi_reduction <maximumf>, %11, %cst_8 [1] : vector<2x8x512xf32> to vector<2x512xf32>
    %c0_9 = arith.constant 0 : index
    %c0_10 = arith.constant 0 : index
    %13 = vector.load %arg4[%c0_9, %c0_10] : memref<32x1024xbf16, #tpu.memory_space<vmem>>, vector<32x1024xbf16>
    %cst_11 = arith.constant dense<0.000000e+00> : vector<16x1024xf32>
    %14 = tpu.matmul %5, %13, %cst_11 {dimension_numbers = #tpu.dot_dimension_numbers<[1], [0], [0], [1], [0, 0, 1, 1], [], []>} : vector<16x32xbf16>, vector<32x1024xbf16>, vector<16x1024xf32> -> vector<16x1024xf32>
    %15 = vector.extract_strided_slice %14 {offsets = [0, 512], sizes = [16, 512], strides = [1, 1]} : vector<16x1024xf32> to vector<16x512xf32>
    %c15_i32 = arith.constant 15 : i32
    %16 = tpu.dynamic_rotate %15 by %c15_i32 dim 0 : vector<16x512xf32>, i32 -> vector<16x512xf32>
    %17 = vector.extract_strided_slice %14 {offsets = [0, 0], sizes = [16, 512], strides = [1, 1]} : vector<16x1024xf32> to vector<16x512xf32>
    %18 = arith.addf %17, %16 : vector<16x512xf32>
    %19 = vector.shape_cast %18 : vector<16x512xf32> to vector<2x8x512xf32>
    %c7_i32 = arith.constant 7 : i32
    %20 = vector.broadcast %c7_i32 : i32 to vector<8x1xi32>
    %21 = arith.cmpi slt, %6, %20 : vector<8x1xi32>
    %cst_12 = arith.constant 0xFF800000 : f32
    %22 = vector.shape_cast %21 : vector<8x1xi1> to vector<1x8x1xi1>
    %23 = vector.broadcast %22 : vector<1x8x1xi1> to vector<2x8x512xi1>
    %24 = vector.broadcast %cst_12 : f32 to vector<2x8x512xf32>
    %25 = arith.select %23, %19, %24 : vector<2x8x512xi1>, vector<2x8x512xf32>
    %cst_13 = arith.constant dense<0xFF800000> : vector<2x512xf32>
    %26 = vector.multi_reduction <maximumf>, %25, %cst_13 [1] : vector<2x8x512xf32> to vector<2x512xf32>
    %27 = vector.shape_cast %14 : vector<16x1024xf32> to vector<2x8x1024xf32>
    %28 = vector.extract_strided_slice %7 {offsets = [0, 0], sizes = [2, 512], strides = [1, 1]} : vector<2x2048xf32> to vector<2x512xf32>
    %29 = vector.extract_strided_slice %27 {offsets = [0, 0, 512], sizes = [2, 1, 512], strides = [1, 1, 1]} : vector<2x8x1024xf32> to vector<2x1x512xf32>
    %30 = vector.shape_cast %29 : vector<2x1x512xf32> to vector<2x512xf32>
    %31 = arith.addf %28, %30 : vector<2x512xf32>
    %cst_14 = arith.constant 0xFF800000 : f32
    %32 = vector.broadcast %cst_14 : f32 to vector<2x512xf32>
    %33 = arith.select %8, %31, %32 : vector<2x512xf32>
    %34 = arith.maximumf %26, %33 : vector<2x512xf32>
    %c0_15 = arith.constant 0 : index
    %c0_16 = arith.constant 0 : index
    %35 = vector.load %arg5[%c0_15, %c0_16] : memref<32x1536xbf16, #tpu.memory_space<vmem>>, vector<32x1536xbf16>
    %cst_17 = arith.constant dense<0.000000e+00> : vector<16x1536xf32>
    %36 = tpu.matmul %5, %35, %cst_17 {dimension_numbers = #tpu.dot_dimension_numbers<[1], [0], [0], [1], [0, 0, 1, 1], [], []>} : vector<16x32xbf16>, vector<32x1536xbf16>, vector<16x1536xf32> -> vector<16x1536xf32>
    %37 = vector.extract_strided_slice %36 {offsets = [0, 512], sizes = [16, 512], strides = [1, 1]} : vector<16x1536xf32> to vector<16x512xf32>
    %c15_i32_18 = arith.constant 15 : i32
    %38 = tpu.dynamic_rotate %37 by %c15_i32_18 dim 0 : vector<16x512xf32>, i32 -> vector<16x512xf32>
    %39 = vector.extract_strided_slice %36 {offsets = [0, 1024], sizes = [16, 512], strides = [1, 1]} : vector<16x1536xf32> to vector<16x512xf32>
    %c14_i32 = arith.constant 14 : i32
    %40 = tpu.dynamic_rotate %39 by %c14_i32 dim 0 : vector<16x512xf32>, i32 -> vector<16x512xf32>
    %41 = vector.extract_strided_slice %36 {offsets = [0, 0], sizes = [16, 512], strides = [1, 1]} : vector<16x1536xf32> to vector<16x512xf32>
    %42 = arith.addf %41, %38 : vector<16x512xf32>
    %43 = arith.addf %42, %40 : vector<16x512xf32>
    %44 = vector.shape_cast %43 : vector<16x512xf32> to vector<2x8x512xf32>
    %c6_i32 = arith.constant 6 : i32
    %45 = vector.broadcast %c6_i32 : i32 to vector<8x1xi32>
    %46 = arith.cmpi slt, %6, %45 : vector<8x1xi32>
    %cst_19 = arith.constant 0xFF800000 : f32
    %47 = vector.shape_cast %46 : vector<8x1xi1> to vector<1x8x1xi1>
    %48 = vector.broadcast %47 : vector<1x8x1xi1> to vector<2x8x512xi1>
    %49 = vector.broadcast %cst_19 : f32 to vector<2x8x512xf32>
    %50 = arith.select %48, %44, %49 : vector<2x8x512xi1>, vector<2x8x512xf32>
    %cst_20 = arith.constant dense<0xFF800000> : vector<2x512xf32>
    %51 = vector.multi_reduction <maximumf>, %50, %cst_20 [1] : vector<2x8x512xf32> to vector<2x512xf32>
    %52 = vector.shape_cast %36 : vector<16x1536xf32> to vector<2x8x1536xf32>
    %53 = vector.extract_strided_slice %7 {offsets = [0, 1536], sizes = [2, 512], strides = [1, 1]} : vector<2x2048xf32> to vector<2x512xf32>
    %54 = vector.extract_strided_slice %7 {offsets = [0, 1024], sizes = [2, 512], strides = [1, 1]} : vector<2x2048xf32> to vector<2x512xf32>
    %55 = arith.addf %53, %54 : vector<2x512xf32>
    %56 = vector.extract_strided_slice %52 {offsets = [0, 0, 1024], sizes = [2, 1, 512], strides = [1, 1, 1]} : vector<2x8x1536xf32> to vector<2x1x512xf32>
    %57 = vector.shape_cast %56 : vector<2x1x512xf32> to vector<2x512xf32>
    %58 = arith.addf %55, %57 : vector<2x512xf32>
    %59 = vector.extract_strided_slice %7 {offsets = [0, 512], sizes = [2, 512], strides = [1, 1]} : vector<2x2048xf32> to vector<2x512xf32>
    %60 = vector.extract_strided_slice %52 {offsets = [0, 0, 512], sizes = [2, 1, 512], strides = [1, 1, 1]} : vector<2x8x1536xf32> to vector<2x1x512xf32>
    %61 = vector.shape_cast %60 : vector<2x1x512xf32> to vector<2x512xf32>
    %62 = arith.addf %59, %61 : vector<2x512xf32>
    %63 = vector.extract_strided_slice %52 {offsets = [0, 1, 1024], sizes = [2, 1, 512], strides = [1, 1, 1]} : vector<2x8x1536xf32> to vector<2x1x512xf32>
    %64 = vector.shape_cast %63 : vector<2x1x512xf32> to vector<2x512xf32>
    %65 = arith.addf %62, %64 : vector<2x512xf32>
    %66 = arith.maximumf %58, %65 : vector<2x512xf32>
    %cst_21 = arith.constant 0xFF800000 : f32
    %67 = vector.broadcast %cst_21 : f32 to vector<2x512xf32>
    %68 = arith.select %8, %66, %67 : vector<2x512xf32>
    %69 = arith.maximumf %51, %68 : vector<2x512xf32>
    %c0_22 = arith.constant 0 : index
    %c0_23 = arith.constant 0 : index
    %70 = vector.load %arg10[%c0_22, %c0_23] : memref<2x1536xf32, #tpu.memory_space<vmem>>, vector<2x1536xf32>
    %71 = tpu.concatenate %12, %34, %69 in 1 : vector<2x512xf32>, vector<2x512xf32>, vector<2x512xf32> -> vector<2x1536xf32>
    %72 = arith.maximumf %70, %71 : vector<2x1536xf32>
    %c0_24 = arith.constant 0 : index
    %c0_25 = arith.constant 0 : index
    %73 = vector.load %arg10[%c0_24, %c0_25] : memref<2x1536xf32, #tpu.memory_space<vmem>>, vector<2x1536xf32>
    tpu.vector_store %arg10[%c0_24, %c0_25], %72 {strides = array<i32>} : memref<2x1536xf32, #tpu.memory_space<vmem>>, vector<2x1536xf32>,
    %74 = vector.extract_strided_slice %27 {offsets = [0, 7, 0], sizes = [2, 1, 512], strides = [1, 1, 1]} : vector<2x8x1024xf32> to vector<2x1x512xf32>
    %75 = vector.shape_cast %74 : vector<2x1x512xf32> to vector<2x512xf32>
    %76 = vector.extract_strided_slice %52 {offsets = [0, 7, 0], sizes = [2, 1, 512], strides = [1, 1, 1]} : vector<2x8x1536xf32> to vector<2x1x512xf32>
    %77 = vector.shape_cast %76 : vector<2x1x512xf32> to vector<2x512xf32>
    %78 = vector.extract_strided_slice %52 {offsets = [0, 7, 512], sizes = [2, 1, 512], strides = [1, 1, 1]} : vector<2x8x1536xf32> to vector<2x1x512xf32>
    %79 = vector.shape_cast %78 : vector<2x1x512xf32> to vector<2x512xf32>
    %80 = vector.extract_strided_slice %52 {offsets = [0, 6, 0], sizes = [2, 1, 512], strides = [1, 1, 1]} : vector<2x8x1536xf32> to vector<2x1x512xf32>
    %81 = vector.shape_cast %80 : vector<2x1x512xf32> to vector<2x512xf32>
    %82 = tpu.concatenate %75, %77, %79, %81 in 1 : vector<2x512xf32>, vector<2x512xf32>, vector<2x512xf32>, vector<2x512xf32> -> vector<2x2048xf32>
    %c0_26 = arith.constant 0 : index
    %c0_27 = arith.constant 0 : index
    %83 = vector.load %arg11[%c0_26, %c0_27] : memref<2x2048xf32, #tpu.memory_space<vmem>>, vector<2x2048xf32>
    tpu.vector_store %arg11[%c0_26, %c0_27], %82 {strides = array<i32>} : memref<2x2048xf32, #tpu.memory_space<vmem>>, vector<2x2048xf32>,
    %c1_i32 = arith.constant 1 : i32
    %84 = arith.cmpi eq, %arg1, %c1_i32 : i32
    %85 = arith.extui %84 : i1 to i32
    %c0_i32_28 = arith.constant 0 : i32
    %86 = arith.cmpi ne, %85, %c0_i32_28 : i32
    scf.if %86 {
      %c0_29 = arith.constant 0 : index
      %c0_30 = arith.constant 0 : index
      %87 = vector.load %arg10[%c0_29, %c0_30] : memref<2x1536xf32, #tpu.memory_space<vmem>>, vector<2x1536xf32>
      %c0_31 = arith.constant 0 : index
      %c0_32 = arith.constant 0 : index
      %88 = vector.load %arg6[%c0_31, %c0_32] : memref<1x1536xf32, #tpu.memory_space<vmem>>, vector<1x1536xf32>
      %89 = vector.broadcast %88 : vector<1x1536xf32> to vector<2x1536xf32>
      %90 = arith.addf %87, %89 : vector<2x1536xf32>
      %cst_33 = arith.constant 0.000000e+00 : f32
      %91 = vector.broadcast %cst_33 : f32 to vector<2x1536xf32>
      %92 = arith.maximumf %90, %91 : vector<2x1536xf32>
      %c0_34 = arith.constant 0 : index
      %c0_35 = arith.constant 0 : index
      %93 = vector.load %arg7[%c0_34, %c0_35] : memref<1536x256xf32, #tpu.memory_space<vmem>>, vector<1536x256xf32>
      %cst_36 = arith.constant dense<0.000000e+00> : vector<2x256xf32>
      %94 = tpu.matmul %92, %93, %cst_36 {dimension_numbers = #tpu.dot_dimension_numbers<[1], [0], [0], [1], [0, 0, 1, 1], [], []>} : vector<2x1536xf32>, vector<1536x256xf32>, vector<2x256xf32> -> vector<2x256xf32>
      %c0_37 = arith.constant 0 : index
      %c0_38 = arith.constant 0 : index
      %95 = vector.load %arg8[%c0_37, %c0_38] : memref<1x256xf32, #tpu.memory_space<vmem>>, vector<1x256xf32>
      %96 = vector.broadcast %95 : vector<1x256xf32> to vector<2x256xf32>
      %97 = arith.addf %94, %96 : vector<2x256xf32>
      %98 = arith.mulf %97, %97 : vector<2x256xf32>
      %cst_39 = arith.constant dense<0.000000e+00> : vector<2xf32>
      %99 = vector.multi_reduction <add>, %98, %cst_39 [1] : vector<2x256xf32> to vector<2xf32>
      %100 = vector.shape_cast %99 : vector<2xf32> to vector<2x1xf32>
      %cst_40 = arith.constant 1.000000e-24 : f32
      %101 = vector.broadcast %cst_40 : f32 to vector<2x1xf32>
      %102 = arith.maximumf %100, %101 : vector<2x1xf32>
      %103 = math.rsqrt %102 : vector<2x1xf32>
      %104 = vector.broadcast %103 : vector<2x1xf32> to vector<2x256xf32>
      %105 = arith.mulf %97, %104 : vector<2x256xf32>
      %c0_41 = arith.constant 0 : index
      %c0_42 = arith.constant 0 : index
      %106 = vector.load %arg9[%c0_41, %c0_42] : memref<2x256xf32, #tpu.memory_space<vmem>>, vector<2x256xf32>
      tpu.vector_store %arg9[%c0_41, %c0_42], %105 {strides = array<i32>} : memref<2x256xf32, #tpu.memory_space<vmem>>, vector<2x256xf32>,
    } else {
    }
    return
  }
  func.func @transform_0(%arg0: i32, %arg1: i32) -> (i32, i32, i32) {
    %c0_i32 = arith.constant 0 : i32
    %c0_i32_0 = arith.constant 0 : i32
    return %arg0, %arg1, %c0_i32 : i32, i32, i32
  }
  func.func @transform_1(%arg0: i32, %arg1: i32) -> (i32, i32) {
    %c0_i32 = arith.constant 0 : i32
    %c0_i32_0 = arith.constant 0 : i32
    %c0_i32_1 = arith.constant 0 : i32
    return %c0_i32, %c0_i32_0 : i32, i32
  }
  func.func @transform_2(%arg0: i32, %arg1: i32) -> (i32, i32) {
    %c0_i32 = arith.constant 0 : i32
    %c0_i32_0 = arith.constant 0 : i32
    %c0_i32_1 = arith.constant 0 : i32
    return %c0_i32, %c0_i32_0 : i32, i32
  }
  func.func @transform_3(%arg0: i32, %arg1: i32) -> (i32, i32) {
    %c0_i32 = arith.constant 0 : i32
    %c0_i32_0 = arith.constant 0 : i32
    %c0_i32_1 = arith.constant 0 : i32
    return %c0_i32, %c0_i32_0 : i32, i32
  }
  func.func @transform_4(%arg0: i32, %arg1: i32) -> (i32, i32) {
    %c0_i32 = arith.constant 0 : i32
    %c0_i32_0 = arith.constant 0 : i32
    %c0_i32_1 = arith.constant 0 : i32
    return %c0_i32, %c0_i32_0 : i32, i32
  }
  func.func @transform_5(%arg0: i32, %arg1: i32) -> (i32, i32) {
    %c0_i32 = arith.constant 0 : i32
    %c0_i32_0 = arith.constant 0 : i32
    %c0_i32_1 = arith.constant 0 : i32
    return %c0_i32, %c0_i32_0 : i32, i32
  }
  func.func @transform_6(%arg0: i32, %arg1: i32) -> (i32, i32) {
    %c0_i32 = arith.constant 0 : i32
    %c0_i32_0 = arith.constant 0 : i32
    %c0_i32_1 = arith.constant 0 : i32
    return %c0_i32, %c0_i32_0 : i32, i32
  }
  func.func @transform_7(%arg0: i32, %arg1: i32) -> (i32, i32) {
    %c0_i32 = arith.constant 0 : i32
    %c0_i32_0 = arith.constant 0 : i32
    return %arg0, %c0_i32 : i32, i32
  }
}

</mosaic_0001>

<llo_original>
// kernel: tpu_custom_call.1
$region0: #{tpu_custom_call.1}
  #allocation0 [shape = 'u32[]', space=smem, size = 0x4, offset = 0x4, fixed_abs, tag = 'smem constant byte address 0x4 - core index']
  #allocation1 [shape = 'u32[72,128]{1,0:T(1,128)}', space=vmem, size = 0x9000, scoped, tag = 'internal scratch']
  #allocation2 [shape = 'f32[2,1536]{1,0:T(2,128)}', space=vmem, size = 0x3000, scoped, tag = 'scratch operand']
  #allocation3 [shape = 'f32[2,2048]{1,0:T(2,128)}', space=vmem, size = 0x4000, scoped, tag = 'scratch operand']
  %s0 = inlined_call_operand.hbm [shape: f32[2,16,32], index: 0, kind: input, shape index: {}]
  %s1 = inlined_call_operand.hbm [shape: bf16[32,512], index: 1, kind: input, shape index: {}]
  %s2 = inlined_call_operand.hbm [shape: bf16[32,1024], index: 2, kind: input, shape index: {}]
  %s3 = inlined_call_operand.hbm [shape: bf16[32,1536], index: 3, kind: input, shape index: {}]
  %s4 = inlined_call_operand.hbm [shape: f32[1,1536], index: 4, kind: input, shape index: {}]
  %s5 = inlined_call_operand.hbm [shape: f32[1536,256], index: 5, kind: input, shape index: {}]
  %s6 = inlined_call_operand.hbm [shape: f32[1,256], index: 6, kind: input, shape index: {}]
  %s7 = inlined_call_operand.hbm [shape: f32[2,256], index: 7, kind: output, shape index: {}]
  %s8 = sld [smem:[#allocation0]]
  $region97: #{tpu_custom_call.1} parent=0
    _
  %s10 = ssub.s32 1, %s8
  %s11 = scalar_select 0, %s10, %s8
  $region1: #{tpu_custom_call.1} parent=0
    #allocation4 [shape = 'u8[16384]{0}', space=vmem, size = 0x4000, scoped, tag = 'input window, operand 0']
    #allocation5 [shape = 's32[2]{0}', space=sflag, size = 0x8, scoped, tag = 'scoped memory for tpu_custom_call.1']
    #allocation6 [shape = 's32[2]{0}', space=sflag, size = 0x8, scoped, tag = 'scoped memory for tpu_custom_call.1']
    #allocation7 [shape = 'u8[32768]{0}', space=vmem, size = 0x8000, scoped, tag = 'input window, operand 1, single buffered']
    #allocation8 [shape = 's32[1]{0}', space=sflag, size = 0x4, scoped, tag = 'scoped memory for tpu_custom_call.1']
    #allocation9 [shape = 'u8[65536]{0}', space=vmem, size = 0x10000, scoped, tag = 'input window, operand 2, single buffered']
    #allocation10 [shape = 'u8[98304]{0}', space=vmem, size = 0x18000, scoped, tag = 'input window, operand 3, single buffered']
    #allocation11 [shape = 's32[1]{0}', space=sflag, size = 0x4, scoped, tag = 'scoped memory for tpu_custom_call.1']
    #allocation12 [shape = 'u8[6144]{0}', space=vmem, size = 0x1800, scoped, tag = 'input window, operand 4, single buffered']
    #allocation13 [shape = 'u8[1572864]{0}', space=vmem, size = 0x180000, scoped, tag = 'input window, operand 5, single buffered']
    #allocation14 [shape = 's32[1]{0}', space=sflag, size = 0x4, scoped, tag = 'scoped memory for tpu_custom_call.1']
    #allocation15 [shape = 'u8[1024]{0}', space=vmem, size = 0x400, scoped, tag = 'input window, operand 6, single buffered']
    #allocation16 [shape = 'u8[2048]{0}', space=vmem, size = 0x800, scoped, tag = 'output window, operand 0, single buffered']
    %12 = vsyncpa [#allocation5], 0
    %s13 = scalar_lea.sflag [#allocation5], 1
    %14 = vsyncpa %s13, 0
    %15 = vsyncpa [#allocation8], 0
    %16 = vsyncpa [#allocation11], 0
    %17 = vsyncpa [#allocation14], 0
    %18 = vsyncpa [#allocation6], 0
    loop: start=0, step=1, limit=4
    $region2: #{tpu_custom_call.1} parent=1 // loop_pre_header
      _
    $region3: #{tpu_custom_call.1} parent=1 // loop_header
      %s20 = sphi 0, %s24
      %p21 = scmp.ge.s32.totalorder %s20, 4
      %s27 = sphi 0, %s39
      %s28 = sphi 0, %s35
      %s29 = sphi 0, %s27
      %s30 = sphi 0, %s28
      %s31 = sphi 0, %s29
      %s32 = sphi 0, %s30
      %s44 = sphi 0, %s46
      %s47 = sphi 0, %s44
      %s48 = sphi 0, %s47
      %s64 = sphi 0, %s48
      %s68 = sphi 0, %s68
      %s70 = sphi 0, %s68
      %s71 = sphi 0, %s70
      %s85 = sphi 0, %s71
      %s89 = sphi 0, %s89
      %s91 = sphi 0, %s89
      %s92 = sphi 0, %s91
      %s106 = sphi 0, %s92
      %s110 = sphi 0, %s110
      %s112 = sphi 0, %s110
      %s113 = sphi 0, %s112
      %s127 = sphi 0, %s113
      %s131 = sphi 0, %s131
      %s133 = sphi 0, %s131
      %s134 = sphi 0, %s133
      %s148 = sphi 0, %s134
      %s152 = sphi 0, %s152
      %s154 = sphi 0, %s152
      %s155 = sphi 0, %s154
      %s169 = sphi 0, %s155
      %s173 = sphi 0, %s173
      %s175 = sphi 0, %s173
      %s176 = sphi 0, %s175
      %s190 = sphi 0, %s176
      %s196 = sphi 0, %s198
      %s199 = sphi 0, %s196
      %s200 = sphi 0, %s199
      %s216 = sphi 0, %s200
    $region4: #{tpu_custom_call.1} parent=1 // loop_header_branch
      %23 = sbr.rel (%p21) target = $region8
    $region5: #{tpu_custom_call.1} parent=1 // loop_body
      %s25 = ssub.s32 %s20, 1
      %s26 = ssub.s32 %s20, 2
      %s33 = sadd.s32 1, %s28
      %p34 = scmp.ge.s32.totalorder %s33, 2
      %s35 = scalar_select %p34, 0, %s33
      %s36 = sadd.s32 1, %s27
      %s37 = scalar_select %p34, %s36, %s27
      %p38 = scmp.ge.s32.totalorder %s37, 1
      %s39 = scalar_select %p38, 0, %s37
      %s40 = ssub.s32 %s27, %s39
      %s41 = ssub.s32 %s28, %s35
      %s42 = sor.u32 %s40, %s41
      %p43 = scmp.eq.s32.totalorder %s42, 0
      %s45 = sadd.s32 %s44, 1
      %s46 = scalar_select %p43, %s44, %s45
      %p49 = pneg %p43
      %p50 = scmp.eq.s32.totalorder %s20, 1
      %p51 = por %p49, %p50
      %p52 = scmp.ne.s32.totalorder %s44, %s47
      %p53 = scmp.eq.s32.totalorder %s20, 0
      %p54 = por %p52, %p53
      %p55 = scmp.ne.s32.totalorder %s44, %s47
      %p56 = scmp.eq.s32.totalorder %s25, 1
      %p57 = por %p55, %p56
      %p58 = scmp.ne.s32.totalorder %s47, %s48
      %p59 = scmp.eq.s32.totalorder %s25, 0
      %p60 = por %p58, %p59
      %p61 = scmp.ne.s32.totalorder %s47, %s48
      %p62 = scmp.eq.s32.totalorder %s26, 1
      %p63 = por %p61, %p62
      %p65 = scmp.ne.s32.totalorder %s48, %s64
      %p66 = scmp.eq.s32.totalorder %s26, 0
      %p67 = por %p65, %p66
      %s69 = sadd.s32 %s68, 1
      %p72 = scmp.eq.s32.totalorder %s20, 1
      %p73 = scmp.ne.s32.totalorder %s68, %s70
      %p74 = scmp.eq.s32.totalorder %s20, 0
      %p75 = por %p73, %p74
      %p76 = scmp.ne.s32.totalorder %s68, %s70
      %p77 = scmp.eq.s32.totalorder %s25, 1
      %p78 = por %p76, %p77
      %p79 = scmp.ne.s32.totalorder %s70, %s71
      %p80 = scmp.eq.s32.totalorder %s25, 0
      %p81 = por %p79, %p80
      %p82 = scmp.ne.s32.totalorder %s70, %s71
      %p83 = scmp.eq.s32.totalorder %s26, 1
      %p84 = por %p82, %p83
      %p86 = scmp.ne.s32.totalorder %s71, %s85
      %p87 = scmp.eq.s32.totalorder %s26, 0
      %p88 = por %p86, %p87
      %s90 = sadd.s32 %s89, 1
      %p93 = scmp.eq.s32.totalorder %s20, 1
      %p94 = scmp.ne.s32.totalorder %s89, %s91
      %p95 = scmp.eq.s32.totalorder %s20, 0
      %p96 = por %p94, %p95
      %p97 = scmp.ne.s32.totalorder %s89, %s91
      %p98 = scmp.eq.s32.totalorder %s25, 1
      %p99 = por %p97, %p98
      %p100 = scmp.ne.s32.totalorder %s91, %s92
      %p101 = scmp.eq.s32.totalorder %s25, 0
      %p102 = por %p100, %p101
      %p103 = scmp.ne.s32.totalorder %s91, %s92
      %p104 = scmp.eq.s32.totalorder %s26, 1
      %p105 = por %p103, %p104
      %p107 = scmp.ne.s32.totalorder %s92, %s106
      %p108 = scmp.eq.s32.totalorder %s26, 0
      %p109 = por %p107, %p108
      %s111 = sadd.s32 %s110, 1
      %p114 = scmp.eq.s32.totalorder %s20, 1
      %p115 = scmp.ne.s32.totalorder %s110, %s112
      %p116 = scmp.eq.s32.totalorder %s20, 0
      %p117 = por %p115, %p116
      %p118 = scmp.ne.s32.totalorder %s110, %s112
      %p119 = scmp.eq.s32.totalorder %s25, 1
      %p120 = por %p118, %p119
      %p121 = scmp.ne.s32.totalorder %s112, %s113
      %p122 = scmp.eq.s32.totalorder %s25, 0
      %p123 = por %p121, %p122
      %p124 = scmp.ne.s32.totalorder %s112, %s113
      %p125 = scmp.eq.s32.totalorder %s26, 1
      %p126 = por %p124, %p125
      %p128 = scmp.ne.s32.totalorder %s113, %s127
      %p129 = scmp.eq.s32.totalorder %s26, 0
      %p130 = por %p128, %p129
      %s132 = sadd.s32 %s131, 1
      %p135 = scmp.eq.s32.totalorder %s20, 1
      %p136 = scmp.ne.s32.totalorder %s131, %s133
      %p137 = scmp.eq.s32.totalorder %s20, 0
      %p138 = por %p136, %p137
      %p139 = scmp.ne.s32.totalorder %s131, %s133
      %p140 = scmp.eq.s32.totalorder %s25, 1
      %p141 = por %p139, %p140
      %p142 = scmp.ne.s32.totalorder %s133, %s134
      %p143 = scmp.eq.s32.totalorder %s25, 0
      %p144 = por %p142, %p143
      %p145 = scmp.ne.s32.totalorder %s133, %s134
      %p146 = scmp.eq.s32.totalorder %s26, 1
      %p147 = por %p145, %p146
      %p149 = scmp.ne.s32.totalorder %s134, %s148
      %p150 = scmp.eq.s32.totalorder %s26, 0
      %p151 = por %p149, %p150
      %s153 = sadd.s32 %s152, 1
      %p156 = scmp.eq.s32.totalorder %s20, 1
      %p157 = scmp.ne.s32.totalorder %s152, %s154
      %p158 = scmp.eq.s32.totalorder %s20, 0
      %p159 = por %p157, %p158
      %p160 = scmp.ne.s32.totalorder %s152, %s154
      %p161 = scmp.eq.s32.totalorder %s25, 1
      %p162 = por %p160, %p161
      %p163 = scmp.ne.s32.totalorder %s154, %s155
      %p164 = scmp.eq.s32.totalorder %s25, 0
      %p165 = por %p163, %p164
      %p166 = scmp.ne.s32.totalorder %s154, %s155
      %p167 = scmp.eq.s32.totalorder %s26, 1
      %p168 = por %p166, %p167
      %p170 = scmp.ne.s32.totalorder %s155, %s169
      %p171 = scmp.eq.s32.totalorder %s26, 0
      %p172 = por %p170, %p171
      %s174 = sadd.s32 %s173, 1
      %p177 = scmp.eq.s32.totalorder %s20, 1
      %p178 = scmp.ne.s32.totalorder %s173, %s175
      %p179 = scmp.eq.s32.totalorder %s20, 0
      %p180 = por %p178, %p179
      %p181 = scmp.ne.s32.totalorder %s173, %s175
      %p182 = scmp.eq.s32.totalorder %s25, 1
      %p183 = por %p181, %p182
      %p184 = scmp.ne.s32.totalorder %s175, %s176
      %p185 = scmp.eq.s32.totalorder %s25, 0
      %p186 = por %p184, %p185
      %p187 = scmp.ne.s32.totalorder %s175, %s176
      %p188 = scmp.eq.s32.totalorder %s26, 1
      %p189 = por %p187, %p188
      %p191 = scmp.ne.s32.totalorder %s176, %s190
      %p192 = scmp.eq.s32.totalorder %s26, 0
      %p193 = por %p191, %p192
      %s194 = ssub.s32 %s27, %s39
      %p195 = scmp.eq.s32.totalorder %s194, 0
      %s197 = sadd.s32 %s196, 1
      %s198 = scalar_select %p195, %s196, %s197
      %p201 = pneg %p195
      %p202 = scmp.eq.s32.totalorder %s20, 1
      %p203 = por %p201, %p202
      %p204 = scmp.ne.s32.totalorder %s196, %s199
      %p205 = scmp.eq.s32.totalorder %s20, 0
      %p206 = por %p204, %p205
      %p207 = scmp.ne.s32.totalorder %s196, %s199
      %p208 = scmp.eq.s32.totalorder %s25, 1
      %p209 = por %p207, %p208
      %p210 = scmp.ne.s32.totalorder %s199, %s200
      %p211 = scmp.eq.s32.totalorder %s25, 0
      %p212 = por %p210, %p211
      %p213 = scmp.ne.s32.totalorder %s199, %s200
      %p214 = scmp.eq.s32.totalorder %s26, 1
      %p215 = por %p213, %p214
      %p217 = scmp.ne.s32.totalorder %s200, %s216
      %p218 = scmp.eq.s32.totalorder %s26, 0
      %p219 = por %p217, %p218
      %p220 = scmp.le.s32.totalorder 1, %s20
      %p221 = scmp.lt.s32.totalorder %s20, 3
      %p222 = pnand %p220, %p221
      %p223 = pneg %p222
      // Predicated region
      $region9: #{tpu_custom_call.1} parent=5 // pred_check
        _
      $region10: #{tpu_custom_call.1} parent=5 // pred_check_branch
        %225 = sbr.rel (%p222) target = $region12
      $region11: #{tpu_custom_call.1} parent=5 // pred_region
        %s226 = ssub.s32 %s20, 1
        // Predicated region
        $region13: #{tpu_custom_call.1} parent=11 // pred_check
          %p227 = pneg %p81
        $region14: #{tpu_custom_call.1} parent=11 // pred_check_branch
          %229 = sbr.rel (%p227) target = $region16
        $region15: #{tpu_custom_call.1} parent=11 // pred_region
          %231 = vsyncadd [#allocation8], 0
          %s232 = sshll.u32 %s1, 4
          %s233 = int_to_ptr.hbm [resolvable:$true] %s232
          %s234 = sshll.u32 [#allocation7], 4
          %s235 = int_to_ptr.vmem [resolvable:$true] %s234
          %240 = dma.hbm_to_vmem [thread:$0]  %s233, 1024, %s235, [#allocation8], 256, 256, 16
        $region16: #{tpu_custom_call.1} parent=11 // pred_fallthru
          _
        // Predicated region
        $region17: #{tpu_custom_call.1} parent=11 // pred_check
          %p241 = pneg %p102
        $region18: #{tpu_custom_call.1} parent=11 // pred_check_branch
          %243 = sbr.rel (%p241) target = $region20
        $region19: #{tpu_custom_call.1} parent=11 // pred_region
          %245 = vsyncadd [#allocation8], 0
          %s246 = sshll.u32 %s2, 4
          %s247 = int_to_ptr.hbm [resolvable:$true] %s246
          %s248 = sshll.u32 [#allocation9], 4
          %s249 = int_to_ptr.vmem [resolvable:$true] %s248
          %254 = dma.hbm_to_vmem [thread:$0]  %s247, 2048, %s249, [#allocation8], 512, 512, 32
        $region20: #{tpu_custom_call.1} parent=11 // pred_fallthru
          _
        // Predicated region
        $region21: #{tpu_custom_call.1} parent=11 // pred_check
          %p255 = pneg %p123
        $region22: #{tpu_custom_call.1} parent=11 // pred_check_branch
          %257 = sbr.rel (%p255) target = $region24
        $region23: #{tpu_custom_call.1} parent=11 // pred_region
          %259 = vsyncadd [#allocation11], 0
          %s260 = sshll.u32 %s3, 4
          %s261 = int_to_ptr.hbm [resolvable:$true] %s260
          %s262 = sshll.u32 [#allocation10], 4
          %s263 = int_to_ptr.vmem [resolvable:$true] %s262
          %268 = dma.hbm_to_vmem [thread:$0]  %s261, 3072, %s263, [#allocation11], 768, 768, 48
        $region24: #{tpu_custom_call.1} parent=11 // pred_fallthru
          _
        // Predicated region
        $region25: #{tpu_custom_call.1} parent=11 // pred_check
          %p269 = pneg %p144
        $region26: #{tpu_custom_call.1} parent=11 // pred_check_branch
          %271 = sbr.rel (%p269) target = $region28
        $region27: #{tpu_custom_call.1} parent=11 // pred_region
          %273 = vsyncadd [#allocation11], 0
          %s275 = sshll.u32 %s4, 4
          %s276 = int_to_ptr.hbm [resolvable:$true] %s275
          %s277 = sshll.u32 [#allocation12], 4
          %s278 = int_to_ptr.vmem [resolvable:$true] %s277
          %280 = dma.hbm_to_vmem [thread:$0]  %s276, 192, %s278, [#allocation11]
        $region28: #{tpu_custom_call.1} parent=11 // pred_fallthru
          _
        // Predicated region
        $region29: #{tpu_custom_call.1} parent=11 // pred_check
          %p281 = pneg %p165
        $region30: #{tpu_custom_call.1} parent=11 // pred_check_branch
          %283 = sbr.rel (%p281) target = $region32
        $region31: #{tpu_custom_call.1} parent=11 // pred_region
          %285 = vsyncadd [#allocation14], 0
          %s286 = sshll.u32 %s5, 4
          %s287 = int_to_ptr.hbm [resolvable:$true] %s286
          %s288 = sshll.u32 [#allocation13], 4
          %s289 = int_to_ptr.vmem [resolvable:$true] %s288
          %294 = dma.hbm_to_vmem [thread:$0]  %s287, 49152, %s289, [#allocation14], 256, 256, 16
        $region32: #{tpu_custom_call.1} parent=11 // pred_fallthru
          _
        // Predicated region
        $region33: #{tpu_custom_call.1} parent=11 // pred_check
          %p295 = pneg %p186
        $region34: #{tpu_custom_call.1} parent=11 // pred_check_branch
          %297 = sbr.rel (%p295) target = $region36
        $region35: #{tpu_custom_call.1} parent=11 // pred_region
          %299 = vsyncadd [#allocation14], 0
          %s301 = sshll.u32 %s6, 4
          %s302 = int_to_ptr.hbm [resolvable:$true] %s301
          %s303 = sshll.u32 [#allocation15], 4
          %s304 = int_to_ptr.vmem [resolvable:$true] %s303
          %306 = dma.hbm_to_vmem [thread:$0]  %s302, 32, %s304, [#allocation14]
        $region36: #{tpu_custom_call.1} parent=11 // pred_fallthru
          _
      $region12: #{tpu_custom_call.1} parent=5 // pred_fallthru
        _
      %p307 = scmp.lt.s32.totalorder %s20, 2
      // Predicated region
      $region37: #{tpu_custom_call.1} parent=5 // pred_check
        %p308 = pneg %p307
      $region38: #{tpu_custom_call.1} parent=5 // pred_check_branch
        %310 = sbr.rel (%p308) target = $region40
      $region39: #{tpu_custom_call.1} parent=5 // pred_region
        // Predicated region
        $region41: #{tpu_custom_call.1} parent=39 // pred_check
          %p311 = pneg %p54
        $region42: #{tpu_custom_call.1} parent=39 // pred_check_branch
          %313 = sbr.rel (%p311) target = $region44
        $region43: #{tpu_custom_call.1} parent=39 // pred_region
          %s314 = sand.u32 %s44, 1
          %s315 = scalar_lea.sflag [#allocation5], %s314
          %s316 = sand.u32 %s44, 1
          %s317 = smul.addr %s316, 16
          %s318 = scalar_lea.vmem [#allocation4], %s317
          %s319 = smul.u32 2, %s27
          %321 = vsyncadd %s315, 0
          %s322 = smul.addr %s319, 2
          %s323 = sadd.s32 %s28, %s322
          %s324 = smul.addr %s323, 8
          %s325 = scalar_lea.hbm %s0, %s324
          %s326 = sshll.u32 %s325, 4
          %s327 = int_to_ptr.hbm [resolvable:$true] %s326
          %s328 = sshll.u32 %s318, 4
          %s329 = int_to_ptr.vmem [resolvable:$true] %s328
          %334 = dma.hbm_to_vmem [thread:$0]  %s327, 256, %s329, %s315, 256, 128, 8
        $region44: #{tpu_custom_call.1} parent=39 // pred_fallthru
          _
      $region40: #{tpu_custom_call.1} parent=5 // pred_fallthru
        _
      %p335 = scmp.le.s32.totalorder 1, %s20
      %p336 = scmp.lt.s32.totalorder %s20, 3
      %p337 = pnand %p335, %p336
      %p338 = pneg %p337
      // Predicated region
      $region45: #{tpu_custom_call.1} parent=5 // pred_check
        _
      $region46: #{tpu_custom_call.1} parent=5 // pred_check_branch
        %340 = sbr.rel (%p337) target = $region48
      $region47: #{tpu_custom_call.1} parent=5 // pred_region
        %s341 = ssub.s32 %s20, 1
        %s342 = sand.u32 %s47, 1
        %s343 = scalar_lea.sflag [#allocation5], %s342
        %s344 = sand.u32 %s47, 1
        %s345 = smul.addr %s344, 16
        %s346 = scalar_lea.vmem [#allocation4], %s345
        // Predicated region
        $region49: #{tpu_custom_call.1} parent=47 // pred_check
          %p347 = pneg %p60
        $region50: #{tpu_custom_call.1} parent=47 // pred_check_branch
          %349 = sbr.rel (%p347) target = $region52
        $region51: #{tpu_custom_call.1} parent=47 // pred_region
          %351 = dma.done %s343, 256
        $region52: #{tpu_custom_call.1} parent=47 // pred_fallthru
          _
        // Predicated region
        $region53: #{tpu_custom_call.1} parent=47 // pred_check
          %p352 = pneg %p81
        $region54: #{tpu_custom_call.1} parent=47 // pred_check_branch
          %354 = sbr.rel (%p352) target = $region56
        $region55: #{tpu_custom_call.1} parent=47 // pred_region
          %356 = dma.done [#allocation8], 1024
        $region56: #{tpu_custom_call.1} parent=47 // pred_fallthru
          _
        // Predicated region
        $region57: #{tpu_custom_call.1} parent=47 // pred_check
          %p357 = pneg %p102
        $region58: #{tpu_custom_call.1} parent=47 // pred_check_branch
          %359 = sbr.rel (%p357) target = $region60
        $region59: #{tpu_custom_call.1} parent=47 // pred_region
          %361 = dma.done [#allocation8], 2048
        $region60: #{tpu_custom_call.1} parent=47 // pred_fallthru
          _
        // Predicated region
        $region61: #{tpu_custom_call.1} parent=47 // pred_check
          %p362 = pneg %p123
        $region62: #{tpu_custom_call.1} parent=47 // pred_check_branch
          %364 = sbr.rel (%p362) target = $region64
        $region63: #{tpu_custom_call.1} parent=47 // pred_region
          %366 = dma.done [#allocation11], 3072
        $region64: #{tpu_custom_call.1} parent=47 // pred_fallthru
          _
        // Predicated region
        $region65: #{tpu_custom_call.1} parent=47 // pred_check
          %p367 = pneg %p144
        $region66: #{tpu_custom_call.1} parent=47 // pred_check_branch
          %369 = sbr.rel (%p367) target = $region68
        $region67: #{tpu_custom_call.1} parent=47 // pred_region
          %371 = dma.done [#allocation11], 192
        $region68: #{tpu_custom_call.1} parent=47 // pred_fallthru
          _
        // Predicated region
        $region69: #{tpu_custom_call.1} parent=47 // pred_check
          %p372 = pneg %p165
        $region70: #{tpu_custom_call.1} parent=47 // pred_check_branch
          %374 = sbr.rel (%p372) target = $region72
        $region71: #{tpu_custom_call.1} parent=47 // pred_region
          %376 = dma.done [#allocation14], 49152
        $region72: #{tpu_custom_call.1} parent=47 // pred_fallthru
          _
        // Predicated region
        $region73: #{tpu_custom_call.1} parent=47 // pred_check
          %p377 = pneg %p186
        $region74: #{tpu_custom_call.1} parent=47 // pred_check_branch
          %379 = sbr.rel (%p377) target = $region76
        $region75: #{tpu_custom_call.1} parent=47 // pred_region
          %381 = dma.done [#allocation14], 32
        $region76: #{tpu_custom_call.1} parent=47 // pred_fallthru
          _
        %s382 = sand.u32 %s47, 1
        %s383 = scalar_lea.sflag [#allocation5], %s382
        %s384 = sand.u32 %s47, 1
        %s385 = smul.addr %s384, 16
        %s386 = scalar_lea.vmem [#allocation4], %s385
        %p387 = pneg %p60
        %p388 = pneg %p57
        %p389 = pneg %p81
        %p390 = pneg %p78
        %p391 = pneg %p102
        %p392 = pneg %p99
        %p393 = pneg %p123
        %p394 = pneg %p120
        %p395 = pneg %p144
        %p396 = pneg %p141
        %p397 = pneg %p165
        %p398 = pneg %p162
        %p399 = pneg %p186
        %p400 = pneg %p183
        %p401 = pneg %p212
        %p402 = pneg %p209
        %s403 = smul.u32 2, %s29
        %p405 = scmp.eq.s32.totalorder %s30, 0
        // Predicated region
        $region77: #{tpu_custom_call.1} parent=47 // pred_check
          %p406 = pneg %p405
        $region78: #{tpu_custom_call.1} parent=47 // pred_check_branch
          %408 = sbr.rel (%p406) target = $region80
        $region79: #{tpu_custom_call.1} parent=47 // pred_region
          %409 = vst [vmem:[#allocation2] sm:$0xff] -inf
          %410 = vst [vmem:[#allocation2 + $0x8] sm:$0xff] -inf
          %411 = vst [vmem:[#allocation2 + $0x10] sm:$0xff] -inf
          %412 = vst [vmem:[#allocation3] sm:$0xff] 0.0
          %413 = vst [vmem:[#allocation3 + $0x8] sm:$0xff] 0.0
          %414 = vst [vmem:[#allocation3 + $0x10] sm:$0xff] 0.0
          %415 = vst [vmem:[#allocation3 + $0x18] sm:$0xff] 0.0
        $region80: #{tpu_custom_call.1} parent=47 // pred_fallthru
          _
        %v416 = vld [vmem:[%s346] sm:$0xff]
        %v417 = vld [vmem:[%s346 + $0x8] sm:$0xff]
        %v418 = vpack.c.bf16 %v417, %v416
        %v419 = vlaneseq
        %v420 = vshrl.u32 %v419, 7
        %v421 = vld [vmem:[#allocation3] sm:$0xff]
        %v422 = vld [vmem:[#allocation3 + $0x8] sm:$0xff]
        %v423 = vld [vmem:[#allocation3 + $0x10] sm:$0xff]
        %v424 = vld [vmem:[#allocation3 + $0x18] sm:$0xff]
        %p425 = scmp.gt.s32.totalorder %s30, 0
        %v426 = vld [vmem:[#allocation7] sm:$0xff]
        %v427 = vld [vmem:[#allocation7 + $0x8] sm:$0xff]
        %v428 = vld [vmem:[#allocation7 + $0x10] sm:$0xff]
        %v429 = vld [vmem:[#allocation7 + $0x18] sm:$0xff]
        %v430 = vld [vmem:[#allocation7 + $0x20] sm:$0xff]
        %v431 = vld [vmem:[#allocation7 + $0x28] sm:$0xff]
        %v432 = vld [vmem:[#allocation7 + $0x30] sm:$0xff]
        %v433 = vld [vmem:[#allocation7 + $0x38] sm:$0xff]
        %v442 = vunpack.c.l.b16 %v426
        %v443 = vunpack.c.h.b16 %v426
        %v444 = vunpack.c.l.b16 %v427
        %v445 = vunpack.c.h.b16 %v427
        %v446 = vunpack.c.l.b16 %v428
        %v447 = vunpack.c.h.b16 %v428
        %v448 = vunpack.c.l.b16 %v429
        %v449 = vunpack.c.h.b16 %v429
        %v450 = vunpack.c.l.b16 %v430
        %v451 = vunpack.c.h.b16 %v430
        %v452 = vunpack.c.l.b16 %v431
        %v453 = vunpack.c.h.b16 %v431
        %v454 = vunpack.c.l.b16 %v432
        %v455 = vunpack.c.h.b16 %v432
        %v456 = vunpack.c.l.b16 %v433
        %v457 = vunpack.c.h.b16 %v433
        %v458 = vpack.c.b16 %v446, %v442
        %v459 = vpack.c.b16 %v447, %v443
        %v460 = vpack.c.b16 %v448, %v444
        %v461 = vpack.c.b16 %v449, %v445
        %v462 = vpack.c.b16 %v454, %v450
        %v463 = vpack.c.b16 %v455, %v451
        %v464 = vpack.c.b16 %v456, %v452
        %v465 = vpack.c.b16 %v457, %v453
        %vm474 = vcmask 261120
        %v476 = vsel %vm474, %v418, 0
        %478 = vmatpush.bf16.msra.mxu0 0
        %479 = vmatpush.bf16.msra.mxu0 0
        %480 = vmatpush.bf16.msra.mxu0 0
        %481 = vmatpush.bf16.msra.mxu0 0
        %482 = vmatpush.bf16.msra.mxu0 0
        %483 = vmatpush.bf16.msra.mxu0 0
        %484 = vmatpush.bf16.msra.mxu0 %v462
        %485 = vmatpush.bf16.msra.mxu0 %v458
        %486 = vmatmul.bf16.gmra.mxu0 %v476
        %v487 = vpop.f32.mrf.mxu0
        %v488 = vadd.f32 0.0, %v487
        %v489 = vpop.f32.mrf.mxu0
        %v490 = vadd.f32 0.0, %v489
        %491 = vdwg.mxu0
        %492 = vmatpush.bf16.msra.mxu0 0
        %493 = vmatpush.bf16.msra.mxu0 0
        %494 = vmatpush.bf16.msra.mxu0 0
        %495 = vmatpush.bf16.msra.mxu0 0
        %496 = vmatpush.bf16.msra.mxu0 0
        %497 = vmatpush.bf16.msra.mxu0 0
        %498 = vmatpush.bf16.msra.mxu0 %v463
        %499 = vmatpush.bf16.msra.mxu0 %v459
        %500 = vmatmul.bf16.gmra.mxu0 %v476
        %v501 = vpop.f32.mrf.mxu0
        %v502 = vadd.f32 0.0, %v501
        %v503 = vpop.f32.mrf.mxu0
        %v504 = vadd.f32 0.0, %v503
        %505 = vdwg.mxu0
        %506 = vmatpush.bf16.msra.mxu0 0
        %507 = vmatpush.bf16.msra.mxu0 0
        %508 = vmatpush.bf16.msra.mxu0 0
        %509 = vmatpush.bf16.msra.mxu0 0
        %510 = vmatpush.bf16.msra.mxu0 0
        %511 = vmatpush.bf16.msra.mxu0 0
        %512 = vmatpush.bf16.msra.mxu0 %v464
        %513 = vmatpush.bf16.msra.mxu0 %v460
        %514 = vmatmul.bf16.gmra.mxu0 %v476
        %v515 = vpop.f32.mrf.mxu0
        %v516 = vadd.f32 0.0, %v515
        %v517 = vpop.f32.mrf.mxu0
        %v518 = vadd.f32 0.0, %v517
        %519 = vdwg.mxu0
        %520 = vmatpush.bf16.msra.mxu0 0
        %521 = vmatpush.bf16.msra.mxu0 0
        %522 = vmatpush.bf16.msra.mxu0 0
        %523 = vmatpush.bf16.msra.mxu0 0
        %524 = vmatpush.bf16.msra.mxu0 0
        %525 = vmatpush.bf16.msra.mxu0 0
        %526 = vmatpush.bf16.msra.mxu0 %v465
        %527 = vmatpush.bf16.msra.mxu0 %v461
        %528 = vmatmul.bf16.gmra.mxu0 %v476
        %v529 = vpop.f32.mrf.mxu0
        %v530 = vadd.f32 0.0, %v529
        %v531 = vpop.f32.mrf.mxu0
        %v532 = vadd.f32 0.0, %v531
        %533 = vdwg.mxu0
        %v534 = vrot.slane %v488, 4
        %v535 = vmax.f32 %v488, %v534
        %v536 = vrot.slane %v535, 2
        %v537 = vmax.f32 %v535, %v536
        %v538 = vrot.slane %v537, 1
        %v539 = vmax.f32 %v537, %v538
        %v540 = vrot.slane %v502, 4
        %v541 = vmax.f32 %v502, %v540
        %v542 = vrot.slane %v541, 2
        %v543 = vmax.f32 %v541, %v542
        %v544 = vrot.slane %v543, 1
        %v545 = vmax.f32 %v543, %v544
        %v546 = vrot.slane %v516, 4
        %v547 = vmax.f32 %v516, %v546
        %v548 = vrot.slane %v547, 2
        %v549 = vmax.f32 %v547, %v548
        %v550 = vrot.slane %v549, 1
        %v551 = vmax.f32 %v549, %v550
        %v552 = vrot.slane %v530, 4
        %v553 = vmax.f32 %v530, %v552
        %v554 = vrot.slane %v553, 2
        %v555 = vmax.f32 %v553, %v554
        %v556 = vrot.slane %v555, 1
        %v557 = vmax.f32 %v555, %v556
        %v558 = vrot.slane %v490, 4
        %v559 = vmax.f32 %v490, %v558
        %v560 = vrot.slane %v559, 2
        %v561 = vmax.f32 %v559, %v560
        %v562 = vrot.slane %v561, 1
        %v563 = vmax.f32 %v561, %v562
        %v564 = vrot.slane %v504, 4
        %v565 = vmax.f32 %v504, %v564
        %v566 = vrot.slane %v565, 2
        %v567 = vmax.f32 %v565, %v566
        %v568 = vrot.slane %v567, 1
        %v569 = vmax.f32 %v567, %v568
        %v570 = vrot.slane %v518, 4
        %v571 = vmax.f32 %v518, %v570
        %v572 = vrot.slane %v571, 2
        %v573 = vmax.f32 %v571, %v572
        %v574 = vrot.slane %v573, 1
        %v575 = vmax.f32 %v573, %v574
        %v576 = vrot.slane %v532, 4
        %v577 = vmax.f32 %v532, %v576
        %v578 = vrot.slane %v577, 2
        %v579 = vmax.f32 %v577, %v578
        %v580 = vrot.slane %v579, 1
        %v581 = vmax.f32 %v579, %v580
        %v582 = vld [vmem:[#allocation9] sm:$0xff]
        %v583 = vld [vmem:[#allocation9 + $0x8] sm:$0xff]
        %v584 = vld [vmem:[#allocation9 + $0x10] sm:$0xff]
        %v585 = vld [vmem:[#allocation9 + $0x18] sm:$0xff]
        %v586 = vld [vmem:[#allocation9 + $0x20] sm:$0xff]
        %v587 = vld [vmem:[#allocation9 + $0x28] sm:$0xff]
        %v588 = vld [vmem:[#allocation9 + $0x30] sm:$0xff]
        %v589 = vld [vmem:[#allocation9 + $0x38] sm:$0xff]
        %v590 = vld [vmem:[#allocation9 + $0x40] sm:$0xff]
        %v591 = vld [vmem:[#allocation9 + $0x48] sm:$0xff]
        %v592 = vld [vmem:[#allocation9 + $0x50] sm:$0xff]
        %v593 = vld [vmem:[#allocation9 + $0x58] sm:$0xff]
        %v594 = vld [vmem:[#allocation9 + $0x60] sm:$0xff]
        %v595 = vld [vmem:[#allocation9 + $0x68] sm:$0xff]
        %v596 = vld [vmem:[#allocation9 + $0x70] sm:$0xff]
        %v597 = vld [vmem:[#allocation9 + $0x78] sm:$0xff]
        %v614 = vunpack.c.l.b16 %v582
        %v615 = vunpack.c.h.b16 %v582
        %v616 = vunpack.c.l.b16 %v583
        %v617 = vunpack.c.h.b16 %v583
        %v618 = vunpack.c.l.b16 %v584
        %v619 = vunpack.c.h.b16 %v584
        %v620 = vunpack.c.l.b16 %v585
        %v621 = vunpack.c.h.b16 %v585
        %v622 = vunpack.c.l.b16 %v586
        %v623 = vunpack.c.h.b16 %v586
        %v624 = vunpack.c.l.b16 %v587
        %v625 = vunpack.c.h.b16 %v587
        %v626 = vunpack.c.l.b16 %v588
        %v627 = vunpack.c.h.b16 %v588
        %v628 = vunpack.c.l.b16 %v589
        %v629 = vunpack.c.h.b16 %v589
        %v630 = vunpack.c.l.b16 %v590
        %v631 = vunpack.c.h.b16 %v590
        %v632 = vunpack.c.l.b16 %v591
        %v633 = vunpack.c.h.b16 %v591
        %v634 = vunpack.c.l.b16 %v592
        %v635 = vunpack.c.h.b16 %v592
        %v636 = vunpack.c.l.b16 %v593
        %v637 = vunpack.c.h.b16 %v593
        %v638 = vunpack.c.l.b16 %v594
        %v639 = vunpack.c.h.b16 %v594
        %v640 = vunpack.c.l.b16 %v595
        %v641 = vunpack.c.h.b16 %v595
        %v642 = vunpack.c.l.b16 %v596
        %v643 = vunpack.c.h.b16 %v596
        %v644 = vunpack.c.l.b16 %v597
        %v645 = vunpack.c.h.b16 %v597
        %v646 = vpack.c.b16 %v622, %v614
        %v647 = vpack.c.b16 %v623, %v615
        %v648 = vpack.c.b16 %v624, %v616
        %v649 = vpack.c.b16 %v625, %v617
        %v650 = vpack.c.b16 %v626, %v618
        %v651 = vpack.c.b16 %v627, %v619
        %v652 = vpack.c.b16 %v628, %v620
        %v653 = vpack.c.b16 %v629, %v621
        %v654 = vpack.c.b16 %v638, %v630
        %v655 = vpack.c.b16 %v639, %v631
        %v656 = vpack.c.b16 %v640, %v632
        %v657 = vpack.c.b16 %v641, %v633
        %v658 = vpack.c.b16 %v642, %v634
        %v659 = vpack.c.b16 %v643, %v635
        %v660 = vpack.c.b16 %v644, %v636
        %v661 = vpack.c.b16 %v645, %v637
        %678 = vmatpush.bf16.msra.mxu0 0
        %679 = vmatpush.bf16.msra.mxu0 0
        %680 = vmatpush.bf16.msra.mxu0 0
        %681 = vmatpush.bf16.msra.mxu0 0
        %682 = vmatpush.bf16.msra.mxu0 0
        %683 = vmatpush.bf16.msra.mxu0 0
        %684 = vmatpush.bf16.msra.mxu0 %v654
        %685 = vmatpush.bf16.msra.mxu0 %v646
        %686 = vmatmul.bf16.gmra.mxu0 %v476
        %v687 = vpop.f32.mrf.mxu0
        %v688 = vadd.f32 0.0, %v687
        %v689 = vpop.f32.mrf.mxu0
        %v690 = vadd.f32 0.0, %v689
        %691 = vdwg.mxu0
        %692 = vmatpush.bf16.msra.mxu0 0
        %693 = vmatpush.bf16.msra.mxu0 0
        %694 = vmatpush.bf16.msra.mxu0 0
        %695 = vmatpush.bf16.msra.mxu0 0
        %696 = vmatpush.bf16.msra.mxu0 0
        %697 = vmatpush.bf16.msra.mxu0 0
        %698 = vmatpush.bf16.msra.mxu0 %v655
        %699 = vmatpush.bf16.msra.mxu0 %v647
        %700 = vmatmul.bf16.gmra.mxu0 %v476
        %v701 = vpop.f32.mrf.mxu0
        %v702 = vadd.f32 0.0, %v701
        %v703 = vpop.f32.mrf.mxu0
        %v704 = vadd.f32 0.0, %v703
        %705 = vdwg.mxu0
        %706 = vmatpush.bf16.msra.mxu0 0
        %707 = vmatpush.bf16.msra.mxu0 0
        %708 = vmatpush.bf16.msra.mxu0 0
        %709 = vmatpush.bf16.msra.mxu0 0
        %710 = vmatpush.bf16.msra.mxu0 0
        %711 = vmatpush.bf16.msra.mxu0 0
        %712 = vmatpush.bf16.msra.mxu0 %v656
        %713 = vmatpush.bf16.msra.mxu0 %v648
        %714 = vmatmul.bf16.gmra.mxu0 %v476
        %v715 = vpop.f32.mrf.mxu0
        %v716 = vadd.f32 0.0, %v715
        %v717 = vpop.f32.mrf.mxu0
        %v718 = vadd.f32 0.0, %v717
        %719 = vdwg.mxu0
        %720 = vmatpush.bf16.msra.mxu0 0
        %721 = vmatpush.bf16.msra.mxu0 0
        %722 = vmatpush.bf16.msra.mxu0 0
        %723 = vmatpush.bf16.msra.mxu0 0
        %724 = vmatpush.bf16.msra.mxu0 0
        %725 = vmatpush.bf16.msra.mxu0 0
        %726 = vmatpush.bf16.msra.mxu0 %v657
        %727 = vmatpush.bf16.msra.mxu0 %v649
        %728 = vmatmul.bf16.gmra.mxu0 %v476
        %v729 = vpop.f32.mrf.mxu0
        %v730 = vadd.f32 0.0, %v729
        %v731 = vpop.f32.mrf.mxu0
        %v732 = vadd.f32 0.0, %v731
        %733 = vdwg.mxu0
        %734 = vmatpush.bf16.msra.mxu0 0
        %735 = vmatpush.bf16.msra.mxu0 0
        %736 = vmatpush.bf16.msra.mxu0 0
        %737 = vmatpush.bf16.msra.mxu0 0
        %738 = vmatpush.bf16.msra.mxu0 0
        %739 = vmatpush.bf16.msra.mxu0 0
        %740 = vmatpush.bf16.msra.mxu0 %v658
        %741 = vmatpush.bf16.msra.mxu0 %v650
        %742 = vmatmul.bf16.gmra.mxu0 %v476
        %v743 = vpop.f32.mrf.mxu0
        %v744 = vadd.f32 0.0, %v743
        %v745 = vpop.f32.mrf.mxu0
        %v746 = vadd.f32 0.0, %v745
        %747 = vdwg.mxu0
        %748 = vmatpush.bf16.msra.mxu0 0
        %749 = vmatpush.bf16.msra.mxu0 0
        %750 = vmatpush.bf16.msra.mxu0 0
        %751 = vmatpush.bf16.msra.mxu0 0
        %752 = vmatpush.bf16.msra.mxu0 0
        %753 = vmatpush.bf16.msra.mxu0 0
        %754 = vmatpush.bf16.msra.mxu0 %v659
        %755 = vmatpush.bf16.msra.mxu0 %v651
        %756 = vmatmul.bf16.gmra.mxu0 %v476
        %v757 = vpop.f32.mrf.mxu0
        %v758 = vadd.f32 0.0, %v757
        %v759 = vpop.f32.mrf.mxu0
        %v760 = vadd.f32 0.0, %v759
        %761 = vdwg.mxu0
        %762 = vmatpush.bf16.msra.mxu0 0
        %763 = vmatpush.bf16.msra.mxu0 0
        %764 = vmatpush.bf16.msra.mxu0 0
        %765 = vmatpush.bf16.msra.mxu0 0
        %766 = vmatpush.bf16.msra.mxu0 0
        %767 = vmatpush.bf16.msra.mxu0 0
        %768 = vmatpush.bf16.msra.mxu0 %v660
        %769 = vmatpush.bf16.msra.mxu0 %v652
        %770 = vmatmul.bf16.gmra.mxu0 %v476
        %v771 = vpop.f32.mrf.mxu0
        %v772 = vadd.f32 0.0, %v771
        %v773 = vpop.f32.mrf.mxu0
        %v774 = vadd.f32 0.0, %v773
        %775 = vdwg.mxu0
        %776 = vmatpush.bf16.msra.mxu0 0
        %777 = vmatpush.bf16.msra.mxu0 0
        %778 = vmatpush.bf16.msra.mxu0 0
        %779 = vmatpush.bf16.msra.mxu0 0
        %780 = vmatpush.bf16.msra.mxu0 0
        %781 = vmatpush.bf16.msra.mxu0 0
        %782 = vmatpush.bf16.msra.mxu0 %v661
        %783 = vmatpush.bf16.msra.mxu0 %v653
        %784 = vmatmul.bf16.gmra.mxu0 %v476
        %v785 = vpop.f32.mrf.mxu0
        %v786 = vadd.f32 0.0, %v785
        %v787 = vpop.f32.mrf.mxu0
        %v788 = vadd.f32 0.0, %v787
        %789 = vdwg.mxu0
        %v790 = vrot.slane %v744, 1
        %v791 = vrot.slane %v758, 1
        %v792 = vrot.slane %v772, 1
        %v793 = vrot.slane %v786, 1
        %v794 = vrot.slane %v746, 1
        %v795 = vrot.slane %v760, 1
        %v796 = vrot.slane %v774, 1
        %v797 = vrot.slane %v788, 1
        %vm798 = vcmp.lt.s32.totalorder %v420, 7
        %v799 = vsel %vm798, %v790, %v794
        %v800 = vsel %vm798, %v791, %v795
        %v801 = vsel %vm798, %v792, %v796
        %v802 = vsel %vm798, %v793, %v797
        %v803 = vsel %vm798, %v794, %v790
        %v804 = vsel %vm798, %v795, %v791
        %v805 = vsel %vm798, %v796, %v792
        %v806 = vsel %vm798, %v797, %v793
        %v807 = vadd.f32 %v688, %v799
        %v808 = vadd.f32 %v702, %v800
        %v809 = vadd.f32 %v716, %v801
        %v810 = vadd.f32 %v730, %v802
        %v811 = vadd.f32 %v690, %v803
        %v812 = vadd.f32 %v704, %v804
        %v813 = vadd.f32 %v718, %v805
        %v814 = vadd.f32 %v732, %v806
        %v815 = vsel %vm798, 1, 0
        %vm816 = vcmp.eq.s32.totalorder %v815, 1
        %v817 = vsel %vm816, %v807, -inf
        %v818 = vsel %vm816, %v808, -inf
        %v819 = vsel %vm816, %v809, -inf
        %v820 = vsel %vm816, %v810, -inf
        %v821 = vsel %vm816, %v811, -inf
        %v822 = vsel %vm816, %v812, -inf
        %v823 = vsel %vm816, %v813, -inf
        %v824 = vsel %vm816, %v814, -inf
        %v825 = vrot.slane %v817, 4
        %v826 = vmax.f32 %v817, %v825
        %v827 = vrot.slane %v826, 2
        %v828 = vmax.f32 %v826, %v827
        %v829 = vrot.slane %v828, 1
        %v830 = vmax.f32 %v828, %v829
        %v831 = vrot.slane %v818, 4
        %v832 = vmax.f32 %v818, %v831
        %v833 = vrot.slane %v832, 2
        %v834 = vmax.f32 %v832, %v833
        %v835 = vrot.slane %v834, 1
        %v836 = vmax.f32 %v834, %v835
        %v837 = vrot.slane %v819, 4
        %v838 = vmax.f32 %v819, %v837
        %v839 = vrot.slane %v838, 2
        %v840 = vmax.f32 %v838, %v839
        %v841 = vrot.slane %v840, 1
        %v842 = vmax.f32 %v840, %v841
        %v843 = vrot.slane %v820, 4
        %v844 = vmax.f32 %v820, %v843
        %v845 = vrot.slane %v844, 2
        %v846 = vmax.f32 %v844, %v845
        %v847 = vrot.slane %v846, 1
        %v848 = vmax.f32 %v846, %v847
        %v849 = vrot.slane %v821, 4
        %v850 = vmax.f32 %v821, %v849
        %v851 = vrot.slane %v850, 2
        %v852 = vmax.f32 %v850, %v851
        %v853 = vrot.slane %v852, 1
        %v854 = vmax.f32 %v852, %v853
        %v855 = vrot.slane %v822, 4
        %v856 = vmax.f32 %v822, %v855
        %v857 = vrot.slane %v856, 2
        %v858 = vmax.f32 %v856, %v857
        %v859 = vrot.slane %v858, 1
        %v860 = vmax.f32 %v858, %v859
        %v861 = vrot.slane %v823, 4
        %v862 = vmax.f32 %v823, %v861
        %v863 = vrot.slane %v862, 2
        %v864 = vmax.f32 %v862, %v863
        %v865 = vrot.slane %v864, 1
        %v866 = vmax.f32 %v864, %v865
        %v867 = vrot.slane %v824, 4
        %v868 = vmax.f32 %v824, %v867
        %v869 = vrot.slane %v868, 2
        %v870 = vmax.f32 %v868, %v869
        %v871 = vrot.slane %v870, 1
        %v872 = vmax.f32 %v870, %v871
        %v881 = vrot.slane %v758, 6
        %v882 = vrot.slane %v772, 4
        %v883 = vrot.slane %v786, 2
        %v884 = vrot.slane %v760, 6
        %v885 = vrot.slane %v774, 4
        %v886 = vrot.slane %v788, 2
        %vm887 = vcmask 1041408
        %v888 = vsel %vm887, %v744, %v881
        %vm889 = vcmask 1045508
        %v890 = vsel %vm889, %v882, %v883
        %vm891 = vcmask 1043456
        %v892 = vsel %vm891, %v888, %v890
        %v893 = vsel %vm887, %v746, %v884
        %v894 = vsel %vm889, %v885, %v886
        %v895 = vsel %vm891, %v893, %v894
        %vm896 = vcmask 1042434
        %vm897 = vcmask 1044484
        %v898 = vsel %vm897, %v892, %v892
        %vm899 = vcmask 1046534
        %v900 = vsel %vm899, %v892, %v898
        %v901 = vrot.slane %v895, 7
        %vm902 = vcmask 1041409
        %v903 = vsel %vm902, %v901, %v900
        %vm904 = vcmask 1043459
        %v905 = vsel %vm904, %v901, %v903
        %vm906 = vcmask 1045509
        %v907 = vsel %vm906, %v901, %v905
        %vm908 = vcmask 1047559
        %v909 = vsel %vm908, %v901, %v907
        %v911 = vadd.f32 %v421, %v909
        %s912 = scalar_select %p425, 1, 0
        %v913 = vstv %s912
        %vm914 = vcmp.eq.s32.totalorder %v913, 1
        %v915 = vsel %vm914, %v911, -inf
        %917 = vst [vmem:[#allocation1] ss:$4 sm:$0xff] %v915
        %v918 = vld.sshfl [vmem:[#allocation1] sm:$0xff pattern:$0x73625140]
        %v919 = vld.sshfl [vmem:[#allocation1 + $0x8] sm:$0xff pattern:$0x73625140]
        %v920 = vld.sshfl [vmem:[#allocation1 + $0x10] sm:$0xff pattern:$0x73625140]
        %v921 = vld.sshfl [vmem:[#allocation1 + $0x18] sm:$0xff pattern:$0x73625140]
        %v922 = vrot.slane %v918, 1
        %v923 = vrot.slane %v919, 1
        %v924 = vrot.slane %v920, 1
        %v925 = vrot.slane %v921, 1
        %v934 = vmax.f32 %v830, %v918
        %v935 = vmax.f32 %v836, %v919
        %v936 = vmax.f32 %v842, %v920
        %v937 = vmax.f32 %v848, %v921
        %v938 = vmax.f32 %v854, %v922
        %v939 = vmax.f32 %v860, %v923
        %v940 = vmax.f32 %v866, %v924
        %v941 = vmax.f32 %v872, %v925
        %v942 = vld [vmem:[#allocation10] sm:$0xff]
        %v943 = vld [vmem:[#allocation10 + $0x8] sm:$0xff]
        %v944 = vld [vmem:[#allocation10 + $0x10] sm:$0xff]
        %v945 = vld [vmem:[#allocation10 + $0x18] sm:$0xff]
        %v946 = vld [vmem:[#allocation10 + $0x20] sm:$0xff]
        %v947 = vld [vmem:[#allocation10 + $0x28] sm:$0xff]
        %v948 = vld [vmem:[#allocation10 + $0x30] sm:$0xff]
        %v949 = vld [vmem:[#allocation10 + $0x38] sm:$0xff]
        %v950 = vld [vmem:[#allocation10 + $0x40] sm:$0xff]
        %v951 = vld [vmem:[#allocation10 + $0x48] sm:$0xff]
        %v952 = vld [vmem:[#allocation10 + $0x50] sm:$0xff]
        %v953 = vld [vmem:[#allocation10 + $0x58] sm:$0xff]
        %v954 = vld [vmem:[#allocation10 + $0x60] sm:$0xff]
        %v955 = vld [vmem:[#allocation10 + $0x68] sm:$0xff]
        %v956 = vld [vmem:[#allocation10 + $0x70] sm:$0xff]
        %v957 = vld [vmem:[#allocation10 + $0x78] sm:$0xff]
        %v958 = vld [vmem:[#allocation10 + $0x80] sm:$0xff]
        %v959 = vld [vmem:[#allocation10 + $0x88] sm:$0xff]
        %v960 = vld [vmem:[#allocation10 + $0x90] sm:$0xff]
        %v961 = vld [vmem:[#allocation10 + $0x98] sm:$0xff]
        %v962 = vld [vmem:[#allocation10 + $0xa0] sm:$0xff]
        %v963 = vld [vmem:[#allocation10 + $0xa8] sm:$0xff]
        %v964 = vld [vmem:[#allocation10 + $0xb0] sm:$0xff]
        %v965 = vld [vmem:[#allocation10 + $0xb8] sm:$0xff]
        %v990 = vunpack.c.l.b16 %v942
        %v991 = vunpack.c.h.b16 %v942
        %v992 = vunpack.c.l.b16 %v943
        %v993 = vunpack.c.h.b16 %v943
        %v994 = vunpack.c.l.b16 %v944
        %v995 = vunpack.c.h.b16 %v944
        %v996 = vunpack.c.l.b16 %v945
        %v997 = vunpack.c.h.b16 %v945
        %v998 = vunpack.c.l.b16 %v946
        %v999 = vunpack.c.h.b16 %v946
        %v1000 = vunpack.c.l.b16 %v947
        %v1001 = vunpack.c.h.b16 %v947
        %v1002 = vunpack.c.l.b16 %v948
        %v1003 = vunpack.c.h.b16 %v948
        %v1004 = vunpack.c.l.b16 %v949
        %v1005 = vunpack.c.h.b16 %v949
        %v1006 = vunpack.c.l.b16 %v950
        %v1007 = vunpack.c.h.b16 %v950
        %v1008 = vunpack.c.l.b16 %v951
        %v1009 = vunpack.c.h.b16 %v951
        %v1010 = vunpack.c.l.b16 %v952
        %v1011 = vunpack.c.h.b16 %v952
        %v1012 = vunpack.c.l.b16 %v953
        %v1013 = vunpack.c.h.b16 %v953
        %v1014 = vunpack.c.l.b16 %v954
        %v1015 = vunpack.c.h.b16 %v954
        %v1016 = vunpack.c.l.b16 %v955
        %v1017 = vunpack.c.h.b16 %v955
        %v1018 = vunpack.c.l.b16 %v956
        %v1019 = vunpack.c.h.b16 %v956
        %v1020 = vunpack.c.l.b16 %v957
        %v1021 = vunpack.c.h.b16 %v957
        %v1022 = vunpack.c.l.b16 %v958
        %v1023 = vunpack.c.h.b16 %v958
        %v1024 = vunpack.c.l.b16 %v959
        %v1025 = vunpack.c.h.b16 %v959
        %v1026 = vunpack.c.l.b16 %v960
        %v1027 = vunpack.c.h.b16 %v960
        %v1028 = vunpack.c.l.b16 %v961
        %v1029 = vunpack.c.h.b16 %v961
        %v1030 = vunpack.c.l.b16 %v962
        %v1031 = vunpack.c.h.b16 %v962
        %v1032 = vunpack.c.l.b16 %v963
        %v1033 = vunpack.c.h.b16 %v963
        %v1034 = vunpack.c.l.b16 %v964
        %v1035 = vunpack.c.h.b16 %v964
        %v1036 = vunpack.c.l.b16 %v965
        %v1037 = vunpack.c.h.b16 %v965
        %v1038 = vpack.c.b16 %v1002, %v990
        %v1039 = vpack.c.b16 %v1003, %v991
        %v1040 = vpack.c.b16 %v1004, %v992
        %v1041 = vpack.c.b16 %v1005, %v993
        %v1042 = vpack.c.b16 %v1006, %v994
        %v1043 = vpack.c.b16 %v1007, %v995
        %v1044 = vpack.c.b16 %v1008, %v996
        %v1045 = vpack.c.b16 %v1009, %v997
        %v1046 = vpack.c.b16 %v1010, %v998
        %v1047 = vpack.c.b16 %v1011, %v999
        %v1048 = vpack.c.b16 %v1012, %v1000
        %v1049 = vpack.c.b16 %v1013, %v1001
        %v1050 = vpack.c.b16 %v1026, %v1014
        %v1051 = vpack.c.b16 %v1027, %v1015
        %v1052 = vpack.c.b16 %v1028, %v1016
        %v1053 = vpack.c.b16 %v1029, %v1017
        %v1054 = vpack.c.b16 %v1030, %v1018
        %v1055 = vpack.c.b16 %v1031, %v1019
        %v1056 = vpack.c.b16 %v1032, %v1020
        %v1057 = vpack.c.b16 %v1033, %v1021
        %v1058 = vpack.c.b16 %v1034, %v1022
        %v1059 = vpack.c.b16 %v1035, %v1023
        %v1060 = vpack.c.b16 %v1036, %v1024
        %v1061 = vpack.c.b16 %v1037, %v1025
        %1086 = vmatpush.bf16.msra.mxu0 0
        %1087 = vmatpush.bf16.msra.mxu0 0
        %1088 = vmatpush.bf16.msra.mxu0 0
        %1089 = vmatpush.bf16.msra.mxu0 0
        %1090 = vmatpush.bf16.msra.mxu0 0
        %1091 = vmatpush.bf16.msra.mxu0 0
        %1092 = vmatpush.bf16.msra.mxu0 %v1050
        %1093 = vmatpush.bf16.msra.mxu0 %v1038
        %1094 = vmatmul.bf16.gmra.mxu0 %v476
        %v1095 = vpop.f32.mrf.mxu0
        %v1096 = vadd.f32 0.0, %v1095
        %v1097 = vpop.f32.mrf.mxu0
        %v1098 = vadd.f32 0.0, %v1097
        %1099 = vdwg.mxu0
        %1100 = vmatpush.bf16.msra.mxu0 0
        %1101 = vmatpush.bf16.msra.mxu0 0
        %1102 = vmatpush.bf16.msra.mxu0 0
        %1103 = vmatpush.bf16.msra.mxu0 0
        %1104 = vmatpush.bf16.msra.mxu0 0
        %1105 = vmatpush.bf16.msra.mxu0 0
        %1106 = vmatpush.bf16.msra.mxu0 %v1051
        %1107 = vmatpush.bf16.msra.mxu0 %v1039
        %1108 = vmatmul.bf16.gmra.mxu0 %v476
        %v1109 = vpop.f32.mrf.mxu0
        %v1110 = vadd.f32 0.0, %v1109
        %v1111 = vpop.f32.mrf.mxu0
        %v1112 = vadd.f32 0.0, %v1111
        %1113 = vdwg.mxu0
        %1114 = vmatpush.bf16.msra.mxu0 0
        %1115 = vmatpush.bf16.msra.mxu0 0
        %1116 = vmatpush.bf16.msra.mxu0 0
        %1117 = vmatpush.bf16.msra.mxu0 0
        %1118 = vmatpush.bf16.msra.mxu0 0
        %1119 = vmatpush.bf16.msra.mxu0 0
        %1120 = vmatpush.bf16.msra.mxu0 %v1052
        %1121 = vmatpush.bf16.msra.mxu0 %v1040
        %1122 = vmatmul.bf16.gmra.mxu0 %v476
        %v1123 = vpop.f32.mrf.mxu0
        %v1124 = vadd.f32 0.0, %v1123
        %v1125 = vpop.f32.mrf.mxu0
        %v1126 = vadd.f32 0.0, %v1125
        %1127 = vdwg.mxu0
        %1128 = vmatpush.bf16.msra.mxu0 0
        %1129 = vmatpush.bf16.msra.mxu0 0
        %1130 = vmatpush.bf16.msra.mxu0 0
        %1131 = vmatpush.bf16.msra.mxu0 0
        %1132 = vmatpush.bf16.msra.mxu0 0
        %1133 = vmatpush.bf16.msra.mxu0 0
        %1134 = vmatpush.bf16.msra.mxu0 %v1053
        %1135 = vmatpush.bf16.msra.mxu0 %v1041
        %1136 = vmatmul.bf16.gmra.mxu0 %v476
        %v1137 = vpop.f32.mrf.mxu0
        %v1138 = vadd.f32 0.0, %v1137
        %v1139 = vpop.f32.mrf.mxu0
        %v1140 = vadd.f32 0.0, %v1139
        %1141 = vdwg.mxu0
        %1142 = vmatpush.bf16.msra.mxu0 0
        %1143 = vmatpush.bf16.msra.mxu0 0
        %1144 = vmatpush.bf16.msra.mxu0 0
        %1145 = vmatpush.bf16.msra.mxu0 0
        %1146 = vmatpush.bf16.msra.mxu0 0
        %1147 = vmatpush.bf16.msra.mxu0 0
        %1148 = vmatpush.bf16.msra.mxu0 %v1054
        %1149 = vmatpush.bf16.msra.mxu0 %v1042
        %1150 = vmatmul.bf16.gmra.mxu0 %v476
        %v1151 = vpop.f32.mrf.mxu0
        %v1152 = vadd.f32 0.0, %v1151
        %v1153 = vpop.f32.mrf.mxu0
        %v1154 = vadd.f32 0.0, %v1153
        %1155 = vdwg.mxu0
        %1156 = vmatpush.bf16.msra.mxu0 0
        %1157 = vmatpush.bf16.msra.mxu0 0
        %1158 = vmatpush.bf16.msra.mxu0 0
        %1159 = vmatpush.bf16.msra.mxu0 0
        %1160 = vmatpush.bf16.msra.mxu0 0
        %1161 = vmatpush.bf16.msra.mxu0 0
        %1162 = vmatpush.bf16.msra.mxu0 %v1055
        %1163 = vmatpush.bf16.msra.mxu0 %v1043
        %1164 = vmatmul.bf16.gmra.mxu0 %v476
        %v1165 = vpop.f32.mrf.mxu0
        %v1166 = vadd.f32 0.0, %v1165
        %v1167 = vpop.f32.mrf.mxu0
        %v1168 = vadd.f32 0.0, %v1167
        %1169 = vdwg.mxu0
        %1170 = vmatpush.bf16.msra.mxu0 0
        %1171 = vmatpush.bf16.msra.mxu0 0
        %1172 = vmatpush.bf16.msra.mxu0 0
        %1173 = vmatpush.bf16.msra.mxu0 0
        %1174 = vmatpush.bf16.msra.mxu0 0
        %1175 = vmatpush.bf16.msra.mxu0 0
        %1176 = vmatpush.bf16.msra.mxu0 %v1056
        %1177 = vmatpush.bf16.msra.mxu0 %v1044
        %1178 = vmatmul.bf16.gmra.mxu0 %v476
        %v1179 = vpop.f32.mrf.mxu0
        %v1180 = vadd.f32 0.0, %v1179
        %v1181 = vpop.f32.mrf.mxu0
        %v1182 = vadd.f32 0.0, %v1181
        %1183 = vdwg.mxu0
        %1184 = vmatpush.bf16.msra.mxu0 0
        %1185 = vmatpush.bf16.msra.mxu0 0
        %1186 = vmatpush.bf16.msra.mxu0 0
        %1187 = vmatpush.bf16.msra.mxu0 0
        %1188 = vmatpush.bf16.msra.mxu0 0
        %1189 = vmatpush.bf16.msra.mxu0 0
        %1190 = vmatpush.bf16.msra.mxu0 %v1057
        %1191 = vmatpush.bf16.msra.mxu0 %v1045
        %1192 = vmatmul.bf16.gmra.mxu0 %v476
        %v1193 = vpop.f32.mrf.mxu0
        %v1194 = vadd.f32 0.0, %v1193
        %v1195 = vpop.f32.mrf.mxu0
        %v1196 = vadd.f32 0.0, %v1195
        %1197 = vdwg.mxu0
        %1198 = vmatpush.bf16.msra.mxu0 0
        %1199 = vmatpush.bf16.msra.mxu0 0
        %1200 = vmatpush.bf16.msra.mxu0 0
        %1201 = vmatpush.bf16.msra.mxu0 0
        %1202 = vmatpush.bf16.msra.mxu0 0
        %1203 = vmatpush.bf16.msra.mxu0 0
        %1204 = vmatpush.bf16.msra.mxu0 %v1058
        %1205 = vmatpush.bf16.msra.mxu0 %v1046
        %1206 = vmatmul.bf16.gmra.mxu0 %v476
        %v1207 = vpop.f32.mrf.mxu0
        %v1208 = vadd.f32 0.0, %v1207
        %v1209 = vpop.f32.mrf.mxu0
        %v1210 = vadd.f32 0.0, %v1209
        %1211 = vdwg.mxu0
        %1212 = vmatpush.bf16.msra.mxu0 0
        %1213 = vmatpush.bf16.msra.mxu0 0
        %1214 = vmatpush.bf16.msra.mxu0 0
        %1215 = vmatpush.bf16.msra.mxu0 0
        %1216 = vmatpush.bf16.msra.mxu0 0
        %1217 = vmatpush.bf16.msra.mxu0 0
        %1218 = vmatpush.bf16.msra.mxu0 %v1059
        %1219 = vmatpush.bf16.msra.mxu0 %v1047
        %1220 = vmatmul.bf16.gmra.mxu0 %v476
        %v1221 = vpop.f32.mrf.mxu0
        %v1222 = vadd.f32 0.0, %v1221
        %v1223 = vpop.f32.mrf.mxu0
        %v1224 = vadd.f32 0.0, %v1223
        %1225 = vdwg.mxu0
        %1226 = vmatpush.bf16.msra.mxu0 0
        %1227 = vmatpush.bf16.msra.mxu0 0
        %1228 = vmatpush.bf16.msra.mxu0 0
        %1229 = vmatpush.bf16.msra.mxu0 0
        %1230 = vmatpush.bf16.msra.mxu0 0
        %1231 = vmatpush.bf16.msra.mxu0 0
        %1232 = vmatpush.bf16.msra.mxu0 %v1060
        %1233 = vmatpush.bf16.msra.mxu0 %v1048
        %1234 = vmatmul.bf16.gmra.mxu0 %v476
        %v1235 = vpop.f32.mrf.mxu0
        %v1236 = vadd.f32 0.0, %v1235
        %v1237 = vpop.f32.mrf.mxu0
        %v1238 = vadd.f32 0.0, %v1237
        %1239 = vdwg.mxu0
        %1240 = vmatpush.bf16.msra.mxu0 0
        %1241 = vmatpush.bf16.msra.mxu0 0
        %1242 = vmatpush.bf16.msra.mxu0 0
        %1243 = vmatpush.bf16.msra.mxu0 0
        %1244 = vmatpush.bf16.msra.mxu0 0
        %1245 = vmatpush.bf16.msra.mxu0 0
        %1246 = vmatpush.bf16.msra.mxu0 %v1061
        %1247 = vmatpush.bf16.msra.mxu0 %v1049
        %1248 = vmatmul.bf16.gmra.mxu0 %v476
        %v1249 = vpop.f32.mrf.mxu0
        %v1250 = vadd.f32 0.0, %v1249
        %v1251 = vpop.f32.mrf.mxu0
        %v1252 = vadd.f32 0.0, %v1251
        %1253 = vdwg.mxu0
        %v1254 = vrot.slane %v1152, 1
        %v1255 = vrot.slane %v1166, 1
        %v1256 = vrot.slane %v1180, 1
        %v1257 = vrot.slane %v1194, 1
        %v1258 = vrot.slane %v1154, 1
        %v1259 = vrot.slane %v1168, 1
        %v1260 = vrot.slane %v1182, 1
        %v1261 = vrot.slane %v1196, 1
        %v1262 = vsel %vm798, %v1254, %v1258
        %v1263 = vsel %vm798, %v1255, %v1259
        %v1264 = vsel %vm798, %v1256, %v1260
        %v1265 = vsel %vm798, %v1257, %v1261
        %v1266 = vsel %vm798, %v1258, %v1254
        %v1267 = vsel %vm798, %v1259, %v1255
        %v1268 = vsel %vm798, %v1260, %v1256
        %v1269 = vsel %vm798, %v1261, %v1257
        %v1270 = vrot.slane %v1208, 2
        %v1271 = vrot.slane %v1222, 2
        %v1272 = vrot.slane %v1236, 2
        %v1273 = vrot.slane %v1250, 2
        %v1274 = vrot.slane %v1210, 2
        %v1275 = vrot.slane %v1224, 2
        %v1276 = vrot.slane %v1238, 2
        %v1277 = vrot.slane %v1252, 2
        %vm1278 = vcmp.lt.s32.totalorder %v420, 6
        %v1279 = vsel %vm1278, %v1270, %v1274
        %v1280 = vsel %vm1278, %v1271, %v1275
        %v1281 = vsel %vm1278, %v1272, %v1276
        %v1282 = vsel %vm1278, %v1273, %v1277
        %v1283 = vsel %vm1278, %v1274, %v1270
        %v1284 = vsel %vm1278, %v1275, %v1271
        %v1285 = vsel %vm1278, %v1276, %v1272
        %v1286 = vsel %vm1278, %v1277, %v1273
        %v1287 = vadd.f32 %v1096, %v1262
        %v1288 = vadd.f32 %v1110, %v1263
        %v1289 = vadd.f32 %v1124, %v1264
        %v1290 = vadd.f32 %v1138, %v1265
        %v1291 = vadd.f32 %v1098, %v1266
        %v1292 = vadd.f32 %v1112, %v1267
        %v1293 = vadd.f32 %v1126, %v1268
        %v1294 = vadd.f32 %v1140, %v1269
        %v1295 = vadd.f32 %v1287, %v1279
        %v1296 = vadd.f32 %v1288, %v1280
        %v1297 = vadd.f32 %v1289, %v1281
        %v1298 = vadd.f32 %v1290, %v1282
        %v1299 = vadd.f32 %v1291, %v1283
        %v1300 = vadd.f32 %v1292, %v1284
        %v1301 = vadd.f32 %v1293, %v1285
        %v1302 = vadd.f32 %v1294, %v1286
        %v1303 = vsel %vm1278, 1, 0
        %vm1304 = vcmp.eq.s32.totalorder %v1303, 1
        %v1305 = vsel %vm1304, %v1295, -inf
        %v1306 = vsel %vm1304, %v1296, -inf
        %v1307 = vsel %vm1304, %v1297, -inf
        %v1308 = vsel %vm1304, %v1298, -inf
        %v1309 = vsel %vm1304, %v1299, -inf
        %v1310 = vsel %vm1304, %v1300, -inf
        %v1311 = vsel %vm1304, %v1301, -inf
        %v1312 = vsel %vm1304, %v1302, -inf
        %v1313 = vrot.slane %v1305, 4
        %v1314 = vmax.f32 %v1305, %v1313
        %v1315 = vrot.slane %v1314, 2
        %v1316 = vmax.f32 %v1314, %v1315
        %v1317 = vrot.slane %v1316, 1
        %v1318 = vmax.f32 %v1316, %v1317
        %v1319 = vrot.slane %v1306, 4
        %v1320 = vmax.f32 %v1306, %v1319
        %v1321 = vrot.slane %v1320, 2
        %v1322 = vmax.f32 %v1320, %v1321
        %v1323 = vrot.slane %v1322, 1
        %v1324 = vmax.f32 %v1322, %v1323
        %v1325 = vrot.slane %v1307, 4
        %v1326 = vmax.f32 %v1307, %v1325
        %v1327 = vrot.slane %v1326, 2
        %v1328 = vmax.f32 %v1326, %v1327
        %v1329 = vrot.slane %v1328, 1
        %v1330 = vmax.f32 %v1328, %v1329
        %v1331 = vrot.slane %v1308, 4
        %v1332 = vmax.f32 %v1308, %v1331
        %v1333 = vrot.slane %v1332, 2
        %v1334 = vmax.f32 %v1332, %v1333
        %v1335 = vrot.slane %v1334, 1
        %v1336 = vmax.f32 %v1334, %v1335
        %v1337 = vrot.slane %v1309, 4
        %v1338 = vmax.f32 %v1309, %v1337
        %v1339 = vrot.slane %v1338, 2
        %v1340 = vmax.f32 %v1338, %v1339
        %v1341 = vrot.slane %v1340, 1
        %v1342 = vmax.f32 %v1340, %v1341
        %v1343 = vrot.slane %v1310, 4
        %v1344 = vmax.f32 %v1310, %v1343
        %v1345 = vrot.slane %v1344, 2
        %v1346 = vmax.f32 %v1344, %v1345
        %v1347 = vrot.slane %v1346, 1
        %v1348 = vmax.f32 %v1346, %v1347
        %v1349 = vrot.slane %v1311, 4
        %v1350 = vmax.f32 %v1311, %v1349
        %v1351 = vrot.slane %v1350, 2
        %v1352 = vmax.f32 %v1350, %v1351
        %v1353 = vrot.slane %v1352, 1
        %v1354 = vmax.f32 %v1352, %v1353
        %v1355 = vrot.slane %v1312, 4
        %v1356 = vmax.f32 %v1312, %v1355
        %v1357 = vrot.slane %v1356, 2
        %v1358 = vmax.f32 %v1356, %v1357
        %v1359 = vrot.slane %v1358, 1
        %v1360 = vmax.f32 %v1358, %v1359
        %v1361 = vadd.f32 %v424, %v423
        %v1370 = vrot.slane %v1222, 6
        %v1371 = vrot.slane %v1236, 4
        %v1372 = vrot.slane %v1250, 2
        %v1373 = vrot.slane %v1224, 6
        %v1374 = vrot.slane %v1238, 4
        %v1375 = vrot.slane %v1252, 2
        %v1376 = vsel %vm887, %v1208, %v1370
        %v1377 = vsel %vm889, %v1371, %v1372
        %v1378 = vsel %vm891, %v1376, %v1377
        %v1379 = vsel %vm887, %v1210, %v1373
        %v1380 = vsel %vm889, %v1374, %v1375
        %v1381 = vsel %vm891, %v1379, %v1380
        %v1382 = vsel %vm897, %v1378, %v1378
        %v1383 = vsel %vm899, %v1378, %v1382
        %v1384 = vrot.slane %v1381, 7
        %v1385 = vsel %vm902, %v1384, %v1383
        %v1386 = vsel %vm904, %v1384, %v1385
        %v1387 = vsel %vm906, %v1384, %v1386
        %v1388 = vsel %vm908, %v1384, %v1387
        %v1390 = vadd.f32 %v1361, %v1388
        %v1399 = vrot.slane %v1166, 6
        %v1400 = vrot.slane %v1180, 4
        %v1401 = vrot.slane %v1194, 2
        %v1402 = vrot.slane %v1168, 6
        %v1403 = vrot.slane %v1182, 4
        %v1404 = vrot.slane %v1196, 2
        %v1405 = vsel %vm887, %v1152, %v1399
        %v1406 = vsel %vm889, %v1400, %v1401
        %v1407 = vsel %vm891, %v1405, %v1406
        %v1408 = vsel %vm887, %v1154, %v1402
        %v1409 = vsel %vm889, %v1403, %v1404
        %v1410 = vsel %vm891, %v1408, %v1409
        %v1411 = vsel %vm897, %v1407, %v1407
        %v1412 = vsel %vm899, %v1407, %v1411
        %v1413 = vrot.slane %v1410, 7
        %v1414 = vsel %vm902, %v1413, %v1412
        %v1415 = vsel %vm904, %v1413, %v1414
        %v1416 = vsel %vm906, %v1413, %v1415
        %v1417 = vsel %vm908, %v1413, %v1416
        %v1419 = vadd.f32 %v422, %v1417
        %v1420 = vrot.slane %v1378, 1
        %v1421 = vsel %vm897, %v1420, %v1420
        %v1422 = vsel %vm899, %v1420, %v1421
        %v1423 = vsel %vm902, %v1381, %v1422
        %v1424 = vsel %vm904, %v1381, %v1423
        %v1425 = vsel %vm906, %v1381, %v1424
        %v1426 = vsel %vm908, %v1381, %v1425
        %v1428 = vadd.f32 %v1419, %v1426
        %v1429 = vmax.f32 %v1390, %v1428
        %v1430 = vsel %vm914, %v1429, -inf
        %1432 = vst [vmem:[#allocation1] ss:$4 sm:$0xff] %v1430
        %v1433 = vld.sshfl [vmem:[#allocation1] sm:$0xff pattern:$0x73625140]
        %v1434 = vld.sshfl [vmem:[#allocation1 + $0x8] sm:$0xff pattern:$0x73625140]
        %v1435 = vld.sshfl [vmem:[#allocation1 + $0x10] sm:$0xff pattern:$0x73625140]
        %v1436 = vld.sshfl [vmem:[#allocation1 + $0x18] sm:$0xff pattern:$0x73625140]
        %v1437 = vrot.slane %v1433, 1
        %v1438 = vrot.slane %v1434, 1
        %v1439 = vrot.slane %v1435, 1
        %v1440 = vrot.slane %v1436, 1
        %v1449 = vmax.f32 %v1318, %v1433
        %v1450 = vmax.f32 %v1324, %v1434
        %v1451 = vmax.f32 %v1330, %v1435
        %v1452 = vmax.f32 %v1336, %v1436
        %v1453 = vmax.f32 %v1342, %v1437
        %v1454 = vmax.f32 %v1348, %v1438
        %v1455 = vmax.f32 %v1354, %v1439
        %v1456 = vmax.f32 %v1360, %v1440
        %v1457 = vld [vmem:[#allocation2] sm:$0xff]
        %v1458 = vld [vmem:[#allocation2 + $0x8] sm:$0xff]
        %v1459 = vld [vmem:[#allocation2 + $0x10] sm:$0xff]
        %v1468 = vsel %vm902, %v563, %v539
        %v1469 = vsel %vm902, %v569, %v545
        %v1470 = vsel %vm902, %v575, %v551
        %v1471 = vsel %vm902, %v581, %v557
        %v1480 = vrot.slane %v938, 7
        %v1481 = vsel %vm902, %v1480, %v934
        %v1482 = vrot.slane %v939, 7
        %v1483 = vsel %vm902, %v1482, %v935
        %v1484 = vrot.slane %v940, 7
        %v1485 = vsel %vm902, %v1484, %v936
        %v1486 = vrot.slane %v941, 7
        %v1487 = vsel %vm902, %v1486, %v937
        %v1496 = vrot.slane %v1453, 7
        %v1497 = vsel %vm902, %v1496, %v1449
        %v1498 = vrot.slane %v1454, 7
        %v1499 = vsel %vm902, %v1498, %v1450
        %v1500 = vrot.slane %v1455, 7
        %v1501 = vsel %vm902, %v1500, %v1451
        %v1502 = vrot.slane %v1456, 7
        %v1503 = vsel %vm902, %v1502, %v1452
        %v1504 = vrot.slane %v1469, 6
        %v1505 = vrot.slane %v1470, 4
        %v1506 = vrot.slane %v1471, 2
        %v1507 = vrot.slane %v1483, 6
        %v1508 = vrot.slane %v1485, 4
        %v1509 = vrot.slane %v1487, 2
        %v1510 = vrot.slane %v1499, 6
        %v1511 = vrot.slane %v1501, 4
        %v1512 = vrot.slane %v1503, 2
        %v1513 = vsel %vm887, %v1468, %v1504
        %v1514 = vsel %vm889, %v1505, %v1506
        %v1515 = vsel %vm891, %v1513, %v1514
        %v1516 = vsel %vm887, %v1481, %v1507
        %v1517 = vsel %vm889, %v1508, %v1509
        %v1518 = vsel %vm891, %v1516, %v1517
        %v1519 = vsel %vm887, %v1497, %v1510
        %v1520 = vsel %vm889, %v1511, %v1512
        %v1521 = vsel %vm891, %v1519, %v1520
        %v1525 = vmax.f32 %v1457, %v1515
        %v1526 = vmax.f32 %v1458, %v1518
        %v1527 = vmax.f32 %v1459, %v1521
        %1528 = vst [vmem:[#allocation2] sm:$0xff] %v1525
        %1529 = vst [vmem:[#allocation2 + $0x8] sm:$0xff] %v1526
        %1530 = vst [vmem:[#allocation2 + $0x10] sm:$0xff] %v1527
        %v1539 = vrot.slane %v690, 7
        %v1540 = vrot.slane %v704, 7
        %v1541 = vrot.slane %v718, 7
        %v1542 = vrot.slane %v732, 7
        %v1551 = vrot.slane %v1098, 7
        %v1552 = vrot.slane %v1112, 7
        %v1553 = vrot.slane %v1126, 7
        %v1554 = vrot.slane %v1140, 7
        %v1555 = vrot.slane %v1154, 7
        %v1556 = vrot.slane %v1168, 7
        %v1557 = vrot.slane %v1182, 7
        %v1558 = vrot.slane %v1196, 7
        %v1559 = vrot.slane %v1096, 7
        %v1560 = vrot.slane %v1110, 7
        %v1561 = vrot.slane %v1124, 7
        %v1562 = vrot.slane %v1138, 7
        %v1563 = vrot.slane %v1098, 6
        %v1564 = vrot.slane %v1112, 6
        %v1565 = vrot.slane %v1126, 6
        %v1566 = vrot.slane %v1140, 6
        %1567 = vst.sshfl [vmem:[#allocation1] sm:$0xff pattern:$0x73625140] %v688
        %1568 = vst.sshfl [vmem:[#allocation1 + $0x8] sm:$0xff pattern:$0x73625140] %v702
        %1569 = vst.sshfl [vmem:[#allocation1 + $0x10] sm:$0xff pattern:$0x73625140] %v716
        %1570 = vst.sshfl [vmem:[#allocation1 + $0x18] sm:$0xff pattern:$0x73625140] %v730
        %1571 = vst.sshfl [vmem:[#allocation1 + $0x20] sm:$0xff pattern:$0x73625140] %v1096
        %1572 = vst.sshfl [vmem:[#allocation1 + $0x28] sm:$0xff pattern:$0x73625140] %v1110
        %1573 = vst.sshfl [vmem:[#allocation1 + $0x30] sm:$0xff pattern:$0x73625140] %v1124
        %1574 = vst.sshfl [vmem:[#allocation1 + $0x38] sm:$0xff pattern:$0x73625140] %v1138
        %s1575 = scalar_lea.vmem [#allocation1], 3
        %v1576 = vld [vmem:[%s1575] ss:$4 sm:$0xff]
        %s1577 = scalar_lea.vmem [#allocation1], 35
        %v1578 = vld [vmem:[%s1577] ss:$4 sm:$0xff]
        %1579 = vst.sshfl [vmem:[#allocation1] sm:$0xff pattern:$0x73625140] %v1152
        %1580 = vst.sshfl [vmem:[#allocation1 + $0x8] sm:$0xff pattern:$0x73625140] %v1166
        %1581 = vst.sshfl [vmem:[#allocation1 + $0x10] sm:$0xff pattern:$0x73625140] %v1180
        %1582 = vst.sshfl [vmem:[#allocation1 + $0x18] sm:$0xff pattern:$0x73625140] %v1194
        %1583 = vst.sshfl [vmem:[#allocation1 + $0x20] sm:$0xff pattern:$0x73625140] %v1559
        %1584 = vst.sshfl [vmem:[#allocation1 + $0x28] sm:$0xff pattern:$0x73625140] %v1560
        %1585 = vst.sshfl [vmem:[#allocation1 + $0x30] sm:$0xff pattern:$0x73625140] %v1561
        %1586 = vst.sshfl [vmem:[#allocation1 + $0x38] sm:$0xff pattern:$0x73625140] %v1562
        %v1587 = vld [vmem:[%s1575] ss:$4 sm:$0xff]
        %v1588 = vld [vmem:[%s1577] ss:$4 sm:$0xff]
        %1589 = vst.sshfl [vmem:[#allocation1] sm:$0xff pattern:$0x73625140] %v1539
        %1590 = vst.sshfl [vmem:[#allocation1 + $0x8] sm:$0xff pattern:$0x73625140] %v1540
        %1591 = vst.sshfl [vmem:[#allocation1 + $0x10] sm:$0xff pattern:$0x73625140] %v1541
        %1592 = vst.sshfl [vmem:[#allocation1 + $0x18] sm:$0xff pattern:$0x73625140] %v1542
        %1593 = vst.sshfl [vmem:[#allocation1 + $0x20] sm:$0xff pattern:$0x73625140] %v1551
        %1594 = vst.sshfl [vmem:[#allocation1 + $0x28] sm:$0xff pattern:$0x73625140] %v1552
        %1595 = vst.sshfl [vmem:[#allocation1 + $0x30] sm:$0xff pattern:$0x73625140] %v1553
        %1596 = vst.sshfl [vmem:[#allocation1 + $0x38] sm:$0xff pattern:$0x73625140] %v1554
        %v1597 = vld [vmem:[#allocation1] ss:$4 sm:$0xff]
        %s1598 = scalar_lea.vmem [#allocation1], 32
        %v1599 = vld [vmem:[%s1598] ss:$4 sm:$0xff]
        %1600 = vst.sshfl [vmem:[#allocation1] sm:$0xff pattern:$0x73625140] %v1555
        %1601 = vst.sshfl [vmem:[#allocation1 + $0x8] sm:$0xff pattern:$0x73625140] %v1556
        %1602 = vst.sshfl [vmem:[#allocation1 + $0x10] sm:$0xff pattern:$0x73625140] %v1557
        %1603 = vst.sshfl [vmem:[#allocation1 + $0x18] sm:$0xff pattern:$0x73625140] %v1558
        %1604 = vst.sshfl [vmem:[#allocation1 + $0x20] sm:$0xff pattern:$0x73625140] %v1563
        %1605 = vst.sshfl [vmem:[#allocation1 + $0x28] sm:$0xff pattern:$0x73625140] %v1564
        %1606 = vst.sshfl [vmem:[#allocation1 + $0x30] sm:$0xff pattern:$0x73625140] %v1565
        %1607 = vst.sshfl [vmem:[#allocation1 + $0x38] sm:$0xff pattern:$0x73625140] %v1566
        %v1608 = vld [vmem:[#allocation1] ss:$4 sm:$0xff]
        %v1609 = vld [vmem:[%s1598] ss:$4 sm:$0xff]
        %vm1610 = vcmask 1040384
        %vm1611 = vmor %vm1610, %vm896
        %vm1612 = vmor %vm1611, %vm897
        %vm1613 = vmor %vm1612, %vm899
        %v1614 = vrot.slane %v1576, 7
        %v1615 = vrot.slane %v1614, 2
        %v1616 = vrot.slane %v1597, 7
        %v1617 = vsel %vm1613, %v1615, %v1616
        %v1618 = vrot.slane %v1578, 7
        %v1619 = vrot.slane %v1618, 2
        %v1620 = vrot.slane %v1599, 7
        %v1621 = vsel %vm1613, %v1619, %v1620
        %v1622 = vrot.slane %v1587, 7
        %v1623 = vrot.slane %v1622, 2
        %v1624 = vrot.slane %v1608, 7
        %v1625 = vsel %vm1613, %v1623, %v1624
        %v1626 = vrot.slane %v1588, 7
        %v1627 = vrot.slane %v1626, 2
        %v1628 = vrot.slane %v1609, 7
        %v1629 = vsel %vm1613, %v1627, %v1628
        %1634 = vst [vmem:[#allocation3] sm:$0xff] %v1617
        %1635 = vst [vmem:[#allocation3 + $0x8] sm:$0xff] %v1621
        %1636 = vst [vmem:[#allocation3 + $0x10] sm:$0xff] %v1625
        %1637 = vst [vmem:[#allocation3 + $0x18] sm:$0xff] %v1629
        %p1638 = scmp.eq.s32.totalorder %s30, 1
        // Predicated region
        $region81: #{tpu_custom_call.1} parent=47 // pred_check
          %p1639 = pneg %p1638
        $region82: #{tpu_custom_call.1} parent=47 // pred_check_branch
          %1641 = sbr.rel (%p1639) target = $region84
        $region83: #{tpu_custom_call.1} parent=47 // pred_region
          %v1642 = vld [vmem:[#allocation2] sm:$0xff]
          %v1643 = vld [vmem:[#allocation2 + $0x8] sm:$0xff]
          %v1644 = vld [vmem:[#allocation2 + $0x10] sm:$0xff]
          %v1645 = vld [vmem:[#allocation12] sm:$0xff]
          %v1646 = vld [vmem:[#allocation12 + $0x8] sm:$0xf]
          %v1649 = vperm.slane %v1645, 0
          %v1650 = vperm.slane %v1645, 1
          %v1651 = vperm.slane %v1645, 2
          %v1652 = vperm.slane %v1645, 3
          %v1653 = vperm.slane %v1645, 4
          %v1654 = vperm.slane %v1645, 5
          %v1655 = vperm.slane %v1645, 6
          %v1656 = vperm.slane %v1645, 7
          %v1657 = vperm.slane %v1646, 0
          %v1658 = vperm.slane %v1646, 1
          %v1659 = vperm.slane %v1646, 2
          %v1660 = vperm.slane %v1646, 3
          %v1661 = vrot.slane %v1650, 6
          %v1662 = vrot.slane %v1651, 4
          %v1663 = vrot.slane %v1652, 2
          %v1664 = vrot.slane %v1654, 6
          %v1665 = vrot.slane %v1655, 4
          %v1666 = vrot.slane %v1656, 2
          %v1667 = vrot.slane %v1658, 6
          %v1668 = vrot.slane %v1659, 4
          %v1669 = vrot.slane %v1660, 2
          %v1670 = vsel %vm887, %v1649, %v1661
          %v1671 = vsel %vm889, %v1662, %v1663
          %v1672 = vsel %vm891, %v1670, %v1671
          %v1673 = vsel %vm887, %v1653, %v1664
          %v1674 = vsel %vm889, %v1665, %v1666
          %v1675 = vsel %vm891, %v1673, %v1674
          %v1676 = vsel %vm887, %v1657, %v1667
          %v1677 = vsel %vm889, %v1668, %v1669
          %v1678 = vsel %vm891, %v1676, %v1677
          %v1682 = vadd.f32 %v1642, %v1672
          %v1683 = vadd.f32 %v1643, %v1675
          %v1684 = vadd.f32 %v1644, %v1678
          %v1685 = vmax.f32 %v1682, 0.0
          %v1686 = vmax.f32 %v1683, 0.0
          %v1687 = vmax.f32 %v1684, 0.0
          %v1688 = vld [vmem:[#allocation13] sm:$0xff]
          %v1689 = vld [vmem:[#allocation13 + $0x8] sm:$0xff]
          %v1690 = vld [vmem:[#allocation13 + $0x10] sm:$0xff]
          %v1691 = vld [vmem:[#allocation13 + $0x18] sm:$0xff]
          %v1692 = vld [vmem:[#allocation13 + $0x20] sm:$0xff]
          %v1693 = vld [vmem:[#allocation13 + $0x28] sm:$0xff]
          %v1694 = vld [vmem:[#allocation13 + $0x30] sm:$0xff]
          %v1695 = vld [vmem:[#allocation13 + $0x38] sm:$0xff]
          %v1696 = vld [vmem:[#allocation13 + $0x40] sm:$0xff]
          %v1697 = vld [vmem:[#allocation13 + $0x48] sm:$0xff]
          %v1698 = vld [vmem:[#allocation13 + $0x50] sm:$0xff]
          %v1699 = vld [vmem:[#allocation13 + $0x58] sm:$0xff]
          %v1700 = vld [vmem:[#allocation13 + $0x60] sm:$0xff]
          %v1701 = vld [vmem:[#allocation13 + $0x68] sm:$0xff]
          %v1702 = vld [vmem:[#allocation13 + $0x70] sm:$0xff]
          %v1703 = vld [vmem:[#allocation13 + $0x78] sm:$0xff]
          %v1704 = vld [vmem:[#allocation13 + $0x80] sm:$0xff]
          %v1705 = vld [vmem:[#allocation13 + $0x88] sm:$0xff]
          %v1706 = vld [vmem:[#allocation13 + $0x90] sm:$0xff]
          %v1707 = vld [vmem:[#allocation13 + $0x98] sm:$0xff]
          %v1708 = vld [vmem:[#allocation13 + $0xa0] sm:$0xff]
          %v1709 = vld [vmem:[#allocation13 + $0xa8] sm:$0xff]
          %v1710 = vld [vmem:[#allocation13 + $0xb0] sm:$0xff]
          %v1711 = vld [vmem:[#allocation13 + $0xb8] sm:$0xff]
          %v1712 = vld [vmem:[#allocation13 + $0xc0] sm:$0xff]
          %v1713 = vld [vmem:[#allocation13 + $0xc8] sm:$0xff]
          %v1714 = vld [vmem:[#allocation13 + $0xd0] sm:$0xff]
          %v1715 = vld [vmem:[#allocation13 + $0xd8] sm:$0xff]
          %v1716 = vld [vmem:[#allocation13 + $0xe0] sm:$0xff]
          %v1717 = vld [vmem:[#allocation13 + $0xe8] sm:$0xff]
          %v1718 = vld [vmem:[#allocation13 + $0xf0] sm:$0xff]
          %v1719 = vld [vmem:[#allocation13 + $0xf8] sm:$0xff]
          %v1720 = vld [vmem:[#allocation13 + $0x100] sm:$0xff]
          %v1721 = vld [vmem:[#allocation13 + $0x108] sm:$0xff]
          %v1722 = vld [vmem:[#allocation13 + $0x110] sm:$0xff]
          %v1723 = vld [vmem:[#allocation13 + $0x118] sm:$0xff]
          %v1724 = vld [vmem:[#allocation13 + $0x120] sm:$0xff]
          %v1725 = vld [vmem:[#allocation13 + $0x128] sm:$0xff]
          %v1726 = vld [vmem:[#allocation13 + $0x130] sm:$0xff]
          %v1727 = vld [vmem:[#allocation13 + $0x138] sm:$0xff]
          %v1728 = vld [vmem:[#allocation13 + $0x140] sm:$0xff]
          %v1729 = vld [vmem:[#allocation13 + $0x148] sm:$0xff]
          %v1730 = vld [vmem:[#allocation13 + $0x150] sm:$0xff]
          %v1731 = vld [vmem:[#allocation13 + $0x158] sm:$0xff]
          %v1732 = vld [vmem:[#allocation13 + $0x160] sm:$0xff]
          %v1733 = vld [vmem:[#allocation13 + $0x168] sm:$0xff]
          %v1734 = vld [vmem:[#allocation13 + $0x170] sm:$0xff]
          %v1735 = vld [vmem:[#allocation13 + $0x178] sm:$0xff]
          %v1736 = vld [vmem:[#allocation13 + $0x180] sm:$0xff]
          %v1737 = vld [vmem:[#allocation13 + $0x188] sm:$0xff]
          %v1738 = vld [vmem:[#allocation13 + $0x190] sm:$0xff]
          %v1739 = vld [vmem:[#allocation13 + $0x198] sm:$0xff]
          %v1740 = vld [vmem:[#allocation13 + $0x1a0] sm:$0xff]
          %v1741 = vld [vmem:[#allocation13 + $0x1a8] sm:$0xff]
          %v1742 = vld [vmem:[#allocation13 + $0x1b0] sm:$0xff]
          %v1743 = vld [vmem:[#allocation13 + $0x1b8] sm:$0xff]
          %v1744 = vld [vmem:[#allocation13 + $0x1c0] sm:$0xff]
          %v1745 = vld [vmem:[#allocation13 + $0x1c8] sm:$0xff]
          %v1746 = vld [vmem:[#allocation13 + $0x1d0] sm:$0xff]
          %v1747 = vld [vmem:[#allocation13 + $0x1d8] sm:$0xff]
          %v1748 = vld [vmem:[#allocation13 + $0x1e0] sm:$0xff]
          %v1749 = vld [vmem:[#allocation13 + $0x1e8] sm:$0xff]
          %v1750 = vld [vmem:[#allocation13 + $0x1f0] sm:$0xff]
          %v1751 = vld [vmem:[#allocation13 + $0x1f8] sm:$0xff]
          %v1752 = vld [vmem:[#allocation13 + $0x200] sm:$0xff]
          %v1753 = vld [vmem:[#allocation13 + $0x208] sm:$0xff]
          %v1754 = vld [vmem:[#allocation13 + $0x210] sm:$0xff]
          %v1755 = vld [vmem:[#allocation13 + $0x218] sm:$0xff]
          %v1756 = vld [vmem:[#allocation13 + $0x220] sm:$0xff]
          %v1757 = vld [vmem:[#allocation13 + $0x228] sm:$0xff]
          %v1758 = vld [vmem:[#allocation13 + $0x230] sm:$0xff]
          %v1759 = vld [vmem:[#allocation13 + $0x238] sm:$0xff]
          %v1760 = vld [vmem:[#allocation13 + $0x240] sm:$0xff]
          %v1761 = vld [vmem:[#allocation13 + $0x248] sm:$0xff]
          %v1762 = vld [vmem:[#allocation13 + $0x250] sm:$0xff]
          %v1763 = vld [vmem:[#allocation13 + $0x258] sm:$0xff]
          %v1764 = vld [vmem:[#allocation13 + $0x260] sm:$0xff]
          %v1765 = vld [vmem:[#allocation13 + $0x268] sm:$0xff]
          %v1766 = vld [vmem:[#allocation13 + $0x270] sm:$0xff]
          %v1767 = vld [vmem:[#allocation13 + $0x278] sm:$0xff]
          %v1768 = vld [vmem:[#allocation13 + $0x280] sm:$0xff]
          %v1769 = vld [vmem:[#allocation13 + $0x288] sm:$0xff]
          %v1770 = vld [vmem:[#allocation13 + $0x290] sm:$0xff]
          %v1771 = vld [vmem:[#allocation13 + $0x298] sm:$0xff]
          %v1772 = vld [vmem:[#allocation13 + $0x2a0] sm:$0xff]
          %v1773 = vld [vmem:[#allocation13 + $0x2a8] sm:$0xff]
          %v1774 = vld [vmem:[#allocation13 + $0x2b0] sm:$0xff]
          %v1775 = vld [vmem:[#allocation13 + $0x2b8] sm:$0xff]
          %v1776 = vld [vmem:[#allocation13 + $0x2c0] sm:$0xff]
          %v1777 = vld [vmem:[#allocation13 + $0x2c8] sm:$0xff]
          %v1778 = vld [vmem:[#allocation13 + $0x2d0] sm:$0xff]
          %v1779 = vld [vmem:[#allocation13 + $0x2d8] sm:$0xff]
          %v1780 = vld [vmem:[#allocation13 + $0x2e0] sm:$0xff]
          %v1781 = vld [vmem:[#allocation13 + $0x2e8] sm:$0xff]
          %v1782 = vld [vmem:[#allocation13 + $0x2f0] sm:$0xff]
          %v1783 = vld [vmem:[#allocation13 + $0x2f8] sm:$0xff]
          %v1784 = vld [vmem:[#allocation13 + $0x300] sm:$0xff]
          %v1785 = vld [vmem:[#allocation13 + $0x308] sm:$0xff]
          %v1786 = vld [vmem:[#allocation13 + $0x310] sm:$0xff]
          %v1787 = vld [vmem:[#allocation13 + $0x318] sm:$0xff]
          %v1788 = vld [vmem:[#allocation13 + $0x320] sm:$0xff]
          %v1789 = vld [vmem:[#allocation13 + $0x328] sm:$0xff]
          %v1790 = vld [vmem:[#allocation13 + $0x330] sm:$0xff]
          %v1791 = vld [vmem:[#allocation13 + $0x338] sm:$0xff]
          %v1792 = vld [vmem:[#allocation13 + $0x340] sm:$0xff]
          %v1793 = vld [vmem:[#allocation13 + $0x348] sm:$0xff]
          %v1794 = vld [vmem:[#allocation13 + $0x350] sm:$0xff]
          %v1795 = vld [vmem:[#allocation13 + $0x358] sm:$0xff]
          %v1796 = vld [vmem:[#allocation13 + $0x360] sm:$0xff]
          %v1797 = vld [vmem:[#allocation13 + $0x368] sm:$0xff]
          %v1798 = vld [vmem:[#allocation13 + $0x370] sm:$0xff]
          %v1799 = vld [vmem:[#allocation13 + $0x378] sm:$0xff]
          %v1800 = vld [vmem:[#allocation13 + $0x380] sm:$0xff]
          %v1801 = vld [vmem:[#allocation13 + $0x388] sm:$0xff]
          %v1802 = vld [vmem:[#allocation13 + $0x390] sm:$0xff]
          %v1803 = vld [vmem:[#allocation13 + $0x398] sm:$0xff]
          %v1804 = vld [vmem:[#allocation13 + $0x3a0] sm:$0xff]
          %v1805 = vld [vmem:[#allocation13 + $0x3a8] sm:$0xff]
          %v1806 = vld [vmem:[#allocation13 + $0x3b0] sm:$0xff]
          %v1807 = vld [vmem:[#allocation13 + $0x3b8] sm:$0xff]
          %v1808 = vld [vmem:[#allocation13 + $0x3c0] sm:$0xff]
          %v1809 = vld [vmem:[#allocation13 + $0x3c8] sm:$0xff]
          %v1810 = vld [vmem:[#allocation13 + $0x3d0] sm:$0xff]
          %v1811 = vld [vmem:[#allocation13 + $0x3d8] sm:$0xff]
          %v1812 = vld [vmem:[#allocation13 + $0x3e0] sm:$0xff]
          %v1813 = vld [vmem:[#allocation13 + $0x3e8] sm:$0xff]
          %v1814 = vld [vmem:[#allocation13 + $0x3f0] sm:$0xff]
          %v1815 = vld [vmem:[#allocation13 + $0x3f8] sm:$0xff]
          %v1816 = vld [vmem:[#allocation13 + $0x400] sm:$0xff]
          %v1817 = vld [vmem:[#allocation13 + $0x408] sm:$0xff]
          %v1818 = vld [vmem:[#allocation13 + $0x410] sm:$0xff]
          %v1819 = vld [vmem:[#allocation13 + $0x418] sm:$0xff]
          %v1820 = vld [vmem:[#allocation13 + $0x420] sm:$0xff]
          %v1821 = vld [vmem:[#allocation13 + $0x428] sm:$0xff]
          %v1822 = vld [vmem:[#allocation13 + $0x430] sm:$0xff]
          %v1823 = vld [vmem:[#allocation13 + $0x438] sm:$0xff]
          %v1824 = vld [vmem:[#allocation13 + $0x440] sm:$0xff]
          %v1825 = vld [vmem:[#allocation13 + $0x448] sm:$0xff]
          %v1826 = vld [vmem:[#allocation13 + $0x450] sm:$0xff]
          %v1827 = vld [vmem:[#allocation13 + $0x458] sm:$0xff]
          %v1828 = vld [vmem:[#allocation13 + $0x460] sm:$0xff]
          %v1829 = vld [vmem:[#allocation13 + $0x468] sm:$0xff]
          %v1830 = vld [vmem:[#allocation13 + $0x470] sm:$0xff]
          %v1831 = vld [vmem:[#allocation13 + $0x478] sm:$0xff]
          %v1832 = vld [vmem:[#allocation13 + $0x480] sm:$0xff]
          %v1833 = vld [vmem:[#allocation13 + $0x488] sm:$0xff]
          %v1834 = vld [vmem:[#allocation13 + $0x490] sm:$0xff]
          %v1835 = vld [vmem:[#allocation13 + $0x498] sm:$0xff]
          %v1836 = vld [vmem:[#allocation13 + $0x4a0] sm:$0xff]
          %v1837 = vld [vmem:[#allocation13 + $0x4a8] sm:$0xff]
          %v1838 = vld [vmem:[#allocation13 + $0x4b0] sm:$0xff]
          %v1839 = vld [vmem:[#allocation13 + $0x4b8] sm:$0xff]
          %v1840 = vld [vmem:[#allocation13 + $0x4c0] sm:$0xff]
          %v1841 = vld [vmem:[#allocation13 + $0x4c8] sm:$0xff]
          %v1842 = vld [vmem:[#allocation13 + $0x4d0] sm:$0xff]
          %v1843 = vld [vmem:[#allocation13 + $0x4d8] sm:$0xff]
          %v1844 = vld [vmem:[#allocation13 + $0x4e0] sm:$0xff]
          %v1845 = vld [vmem:[#allocation13 + $0x4e8] sm:$0xff]
          %v1846 = vld [vmem:[#allocation13 + $0x4f0] sm:$0xff]
          %v1847 = vld [vmem:[#allocation13 + $0x4f8] sm:$0xff]
          %v1848 = vld [vmem:[#allocation13 + $0x500] sm:$0xff]
          %v1849 = vld [vmem:[#allocation13 + $0x508] sm:$0xff]
          %v1850 = vld [vmem:[#allocation13 + $0x510] sm:$0xff]
          %v1851 = vld [vmem:[#allocation13 + $0x518] sm:$0xff]
          %v1852 = vld [vmem:[#allocation13 + $0x520] sm:$0xff]
          %v1853 = vld [vmem:[#allocation13 + $0x528] sm:$0xff]
          %v1854 = vld [vmem:[#allocation13 + $0x530] sm:$0xff]
          %v1855 = vld [vmem:[#allocation13 + $0x538] sm:$0xff]
          %v1856 = vld [vmem:[#allocation13 + $0x540] sm:$0xff]
          %v1857 = vld [vmem:[#allocation13 + $0x548] sm:$0xff]
          %v1858 = vld [vmem:[#allocation13 + $0x550] sm:$0xff]
          %v1859 = vld [vmem:[#allocation13 + $0x558] sm:$0xff]
          %v1860 = vld [vmem:[#allocation13 + $0x560] sm:$0xff]
          %v1861 = vld [vmem:[#allocation13 + $0x568] sm:$0xff]
          %v1862 = vld [vmem:[#allocation13 + $0x570] sm:$0xff]
          %v1863 = vld [vmem:[#allocation13 + $0x578] sm:$0xff]
          %v1864 = vld [vmem:[#allocation13 + $0x580] sm:$0xff]
          %v1865 = vld [vmem:[#allocation13 + $0x588] sm:$0xff]
          %v1866 = vld [vmem:[#allocation13 + $0x590] sm:$0xff]
          %v1867 = vld [vmem:[#allocation13 + $0x598] sm:$0xff]
          %v1868 = vld [vmem:[#allocation13 + $0x5a0] sm:$0xff]
          %v1869 = vld [vmem:[#allocation13 + $0x5a8] sm:$0xff]
          %v1870 = vld [vmem:[#allocation13 + $0x5b0] sm:$0xff]
          %v1871 = vld [vmem:[#allocation13 + $0x5b8] sm:$0xff]
          %v1872 = vld [vmem:[#allocation13 + $0x5c0] sm:$0xff]
          %v1873 = vld [vmem:[#allocation13 + $0x5c8] sm:$0xff]
          %v1874 = vld [vmem:[#allocation13 + $0x5d0] sm:$0xff]
          %v1875 = vld [vmem:[#allocation13 + $0x5d8] sm:$0xff]
          %v1876 = vld [vmem:[#allocation13 + $0x5e0] sm:$0xff]
          %v1877 = vld [vmem:[#allocation13 + $0x5e8] sm:$0xff]
          %v1878 = vld [vmem:[#allocation13 + $0x5f0] sm:$0xff]
          %v1879 = vld [vmem:[#allocation13 + $0x5f8] sm:$0xff]
          %v1880 = vld [vmem:[#allocation13 + $0x600] sm:$0xff]
          %v1881 = vld [vmem:[#allocation13 + $0x608] sm:$0xff]
          %v1882 = vld [vmem:[#allocation13 + $0x610] sm:$0xff]
          %v1883 = vld [vmem:[#allocation13 + $0x618] sm:$0xff]
          %v1884 = vld [vmem:[#allocation13 + $0x620] sm:$0xff]
          %v1885 = vld [vmem:[#allocation13 + $0x628] sm:$0xff]
          %v1886 = vld [vmem:[#allocation13 + $0x630] sm:$0xff]
          %v1887 = vld [vmem:[#allocation13 + $0x638] sm:$0xff]
          %v1888 = vld [vmem:[#allocation13 + $0x640] sm:$0xff]
          %v1889 = vld [vmem:[#allocation13 + $0x648] sm:$0xff]
          %v1890 = vld [vmem:[#allocation13 + $0x650] sm:$0xff]
          %v1891 = vld [vmem:[#allocation13 + $0x658] sm:$0xff]
          %v1892 = vld [vmem:[#allocation13 + $0x660] sm:$0xff]
          %v1893 = vld [vmem:[#allocation13 + $0x668] sm:$0xff]
          %v1894 = vld [vmem:[#allocation13 + $0x670] sm:$0xff]
          %v1895 = vld [vmem:[#allocation13 + $0x678] sm:$0xff]
          %v1896 = vld [vmem:[#allocation13 + $0x680] sm:$0xff]
          %v1897 = vld [vmem:[#allocation13 + $0x688] sm:$0xff]
          %v1898 = vld [vmem:[#allocation13 + $0x690] sm:$0xff]
          %v1899 = vld [vmem:[#allocation13 + $0x698] sm:$0xff]
          %v1900 = vld [vmem:[#allocation13 + $0x6a0] sm:$0xff]
          %v1901 = vld [vmem:[#allocation13 + $0x6a8] sm:$0xff]
          %v1902 = vld [vmem:[#allocation13 + $0x6b0] sm:$0xff]
          %v1903 = vld [vmem:[#allocation13 + $0x6b8] sm:$0xff]
          %v1904 = vld [vmem:[#allocation13 + $0x6c0] sm:$0xff]
          %v1905 = vld [vmem:[#allocation13 + $0x6c8] sm:$0xff]
          %v1906 = vld [vmem:[#allocation13 + $0x6d0] sm:$0xff]
          %v1907 = vld [vmem:[#allocation13 + $0x6d8] sm:$0xff]
          %v1908 = vld [vmem:[#allocation13 + $0x6e0] sm:$0xff]
          %v1909 = vld [vmem:[#allocation13 + $0x6e8] sm:$0xff]
          %v1910 = vld [vmem:[#allocation13 + $0x6f0] sm:$0xff]
          %v1911 = vld [vmem:[#allocation13 + $0x6f8] sm:$0xff]
          %v1912 = vld [vmem:[#allocation13 + $0x700] sm:$0xff]
          %v1913 = vld [vmem:[#allocation13 + $0x708] sm:$0xff]
          %v1914 = vld [vmem:[#allocation13 + $0x710] sm:$0xff]
          %v1915 = vld [vmem:[#allocation13 + $0x718] sm:$0xff]
          %v1916 = vld [vmem:[#allocation13 + $0x720] sm:$0xff]
          %v1917 = vld [vmem:[#allocation13 + $0x728] sm:$0xff]
          %v1918 = vld [vmem:[#allocation13 + $0x730] sm:$0xff]
          %v1919 = vld [vmem:[#allocation13 + $0x738] sm:$0xff]
          %v1920 = vld [vmem:[#allocation13 + $0x740] sm:$0xff]
          %v1921 = vld [vmem:[#allocation13 + $0x748] sm:$0xff]
          %v1922 = vld [vmem:[#allocation13 + $0x750] sm:$0xff]
          %v1923 = vld [vmem:[#allocation13 + $0x758] sm:$0xff]
          %v1924 = vld [vmem:[#allocation13 + $0x760] sm:$0xff]
          %v1925 = vld [vmem:[#allocation13 + $0x768] sm:$0xff]
          %v1926 = vld [vmem:[#allocation13 + $0x770] sm:$0xff]
          %v1927 = vld [vmem:[#allocation13 + $0x778] sm:$0xff]
          %v1928 = vld [vmem:[#allocation13 + $0x780] sm:$0xff]
          %v1929 = vld [vmem:[#allocation13 + $0x788] sm:$0xff]
          %v1930 = vld [vmem:[#allocation13 + $0x790] sm:$0xff]
          %v1931 = vld [vmem:[#allocation13 + $0x798] sm:$0xff]
          %v1932 = vld [vmem:[#allocation13 + $0x7a0] sm:$0xff]
          %v1933 = vld [vmem:[#allocation13 + $0x7a8] sm:$0xff]
          %v1934 = vld [vmem:[#allocation13 + $0x7b0] sm:$0xff]
          %v1935 = vld [vmem:[#allocation13 + $0x7b8] sm:$0xff]
          %v1936 = vld [vmem:[#allocation13 + $0x7c0] sm:$0xff]
          %v1937 = vld [vmem:[#allocation13 + $0x7c8] sm:$0xff]
          %v1938 = vld [vmem:[#allocation13 + $0x7d0] sm:$0xff]
          %v1939 = vld [vmem:[#allocation13 + $0x7d8] sm:$0xff]
          %v1940 = vld [vmem:[#allocation13 + $0x7e0] sm:$0xff]
          %v1941 = vld [vmem:[#allocation13 + $0x7e8] sm:$0xff]
          %v1942 = vld [vmem:[#allocation13 + $0x7f0] sm:$0xff]
          %v1943 = vld [vmem:[#allocation13 + $0x7f8] sm:$0xff]
          %v1944 = vld [vmem:[#allocation13 + $0x800] sm:$0xff]
          %v1945 = vld [vmem:[#allocation13 + $0x808] sm:$0xff]
          %v1946 = vld [vmem:[#allocation13 + $0x810] sm:$0xff]
          %v1947 = vld [vmem:[#allocation13 + $0x818] sm:$0xff]
          %v1948 = vld [vmem:[#allocation13 + $0x820] sm:$0xff]
          %v1949 = vld [vmem:[#allocation13 + $0x828] sm:$0xff]
          %v1950 = vld [vmem:[#allocation13 + $0x830] sm:$0xff]
          %v1951 = vld [vmem:[#allocation13 + $0x838] sm:$0xff]
          %v1952 = vld [vmem:[#allocation13 + $0x840] sm:$0xff]
          %v1953 = vld [vmem:[#allocation13 + $0x848] sm:$0xff]
          %v1954 = vld [vmem:[#allocation13 + $0x850] sm:$0xff]
          %v1955 = vld [vmem:[#allocation13 + $0x858] sm:$0xff]
          %v1956 = vld [vmem:[#allocation13 + $0x860] sm:$0xff]
          %v1957 = vld [vmem:[#allocation13 + $0x868] sm:$0xff]
          %v1958 = vld [vmem:[#allocation13 + $0x870] sm:$0xff]
          %v1959 = vld [vmem:[#allocation13 + $0x878] sm:$0xff]
          %v1960 = vld [vmem:[#allocation13 + $0x880] sm:$0xff]
          %v1961 = vld [vmem:[#allocation13 + $0x888] sm:$0xff]
          %v1962 = vld [vmem:[#allocation13 + $0x890] sm:$0xff]
          %v1963 = vld [vmem:[#allocation13 + $0x898] sm:$0xff]
          %v1964 = vld [vmem:[#allocation13 + $0x8a0] sm:$0xff]
          %v1965 = vld [vmem:[#allocation13 + $0x8a8] sm:$0xff]
          %v1966 = vld [vmem:[#allocation13 + $0x8b0] sm:$0xff]
          %v1967 = vld [vmem:[#allocation13 + $0x8b8] sm:$0xff]
          %v1968 = vld [vmem:[#allocation13 + $0x8c0] sm:$0xff]
          %v1969 = vld [vmem:[#allocation13 + $0x8c8] sm:$0xff]
          %v1970 = vld [vmem:[#allocation13 + $0x8d0] sm:$0xff]
          %v1971 = vld [vmem:[#allocation13 + $0x8d8] sm:$0xff]
          %v1972 = vld [vmem:[#allocation13 + $0x8e0] sm:$0xff]
          %v1973 = vld [vmem:[#allocation13 + $0x8e8] sm:$0xff]
          %v1974 = vld [vmem:[#allocation13 + $0x8f0] sm:$0xff]
          %v1975 = vld [vmem:[#allocation13 + $0x8f8] sm:$0xff]
          %v1976 = vld [vmem:[#allocation13 + $0x900] sm:$0xff]
          %v1977 = vld [vmem:[#allocation13 + $0x908] sm:$0xff]
          %v1978 = vld [vmem:[#allocation13 + $0x910] sm:$0xff]
          %v1979 = vld [vmem:[#allocation13 + $0x918] sm:$0xff]
          %v1980 = vld [vmem:[#allocation13 + $0x920] sm:$0xff]
          %v1981 = vld [vmem:[#allocation13 + $0x928] sm:$0xff]
          %v1982 = vld [vmem:[#allocation13 + $0x930] sm:$0xff]
          %v1983 = vld [vmem:[#allocation13 + $0x938] sm:$0xff]
          %v1984 = vld [vmem:[#allocation13 + $0x940] sm:$0xff]
          %v1985 = vld [vmem:[#allocation13 + $0x948] sm:$0xff]
          %v1986 = vld [vmem:[#allocation13 + $0x950] sm:$0xff]
          %v1987 = vld [vmem:[#allocation13 + $0x958] sm:$0xff]
          %v1988 = vld [vmem:[#allocation13 + $0x960] sm:$0xff]
          %v1989 = vld [vmem:[#allocation13 + $0x968] sm:$0xff]
          %v1990 = vld [vmem:[#allocation13 + $0x970] sm:$0xff]
          %v1991 = vld [vmem:[#allocation13 + $0x978] sm:$0xff]
          %v1992 = vld [vmem:[#allocation13 + $0x980] sm:$0xff]
          %v1993 = vld [vmem:[#allocation13 + $0x988] sm:$0xff]
          %v1994 = vld [vmem:[#allocation13 + $0x990] sm:$0xff]
          %v1995 = vld [vmem:[#allocation13 + $0x998] sm:$0xff]
          %v1996 = vld [vmem:[#allocation13 + $0x9a0] sm:$0xff]
          %v1997 = vld [vmem:[#allocation13 + $0x9a8] sm:$0xff]
          %v1998 = vld [vmem:[#allocation13 + $0x9b0] sm:$0xff]
          %v1999 = vld [vmem:[#allocation13 + $0x9b8] sm:$0xff]
          %v2000 = vld [vmem:[#allocation13 + $0x9c0] sm:$0xff]
          %v2001 = vld [vmem:[#allocation13 + $0x9c8] sm:$0xff]
          %v2002 = vld [vmem:[#allocation13 + $0x9d0] sm:$0xff]
          %v2003 = vld [vmem:[#allocation13 + $0x9d8] sm:$0xff]
          %v2004 = vld [vmem:[#allocation13 + $0x9e0] sm:$0xff]
          %v2005 = vld [vmem:[#allocation13 + $0x9e8] sm:$0xff]
          %v2006 = vld [vmem:[#allocation13 + $0x9f0] sm:$0xff]
          %v2007 = vld [vmem:[#allocation13 + $0x9f8] sm:$0xff]
          %v2008 = vld [vmem:[#allocation13 + $0xa00] sm:$0xff]
          %v2009 = vld [vmem:[#allocation13 + $0xa08] sm:$0xff]
          %v2010 = vld [vmem:[#allocation13 + $0xa10] sm:$0xff]
          %v2011 = vld [vmem:[#allocation13 + $0xa18] sm:$0xff]
          %v2012 = vld [vmem:[#allocation13 + $0xa20] sm:$0xff]
          %v2013 = vld [vmem:[#allocation13 + $0xa28] sm:$0xff]
          %v2014 = vld [vmem:[#allocation13 + $0xa30] sm:$0xff]
          %v2015 = vld [vmem:[#allocation13 + $0xa38] sm:$0xff]
          %v2016 = vld [vmem:[#allocation13 + $0xa40] sm:$0xff]
          %v2017 = vld [vmem:[#allocation13 + $0xa48] sm:$0xff]
          %v2018 = vld [vmem:[#allocation13 + $0xa50] sm:$0xff]
          %v2019 = vld [vmem:[#allocation13 + $0xa58] sm:$0xff]
          %v2020 = vld [vmem:[#allocation13 + $0xa60] sm:$0xff]
          %v2021 = vld [vmem:[#allocation13 + $0xa68] sm:$0xff]
          %v2022 = vld [vmem:[#allocation13 + $0xa70] sm:$0xff]
          %v2023 = vld [vmem:[#allocation13 + $0xa78] sm:$0xff]
          %v2024 = vld [vmem:[#allocation13 + $0xa80] sm:$0xff]
          %v2025 = vld [vmem:[#allocation13 + $0xa88] sm:$0xff]
          %v2026 = vld [vmem:[#allocation13 + $0xa90] sm:$0xff]
          %v2027 = vld [vmem:[#allocation13 + $0xa98] sm:$0xff]
          %v2028 = vld [vmem:[#allocation13 + $0xaa0] sm:$0xff]
          %v2029 = vld [vmem:[#allocation13 + $0xaa8] sm:$0xff]
          %v2030 = vld [vmem:[#allocation13 + $0xab0] sm:$0xff]
          %v2031 = vld [vmem:[#allocation13 + $0xab8] sm:$0xff]
          %v2032 = vld [vmem:[#allocation13 + $0xac0] sm:$0xff]
          %v2033 = vld [vmem:[#allocation13 + $0xac8] sm:$0xff]
          %v2034 = vld [vmem:[#allocation13 + $0xad0] sm:$0xff]
          %v2035 = vld [vmem:[#allocation13 + $0xad8] sm:$0xff]
          %v2036 = vld [vmem:[#allocation13 + $0xae0] sm:$0xff]
          %v2037 = vld [vmem:[#allocation13 + $0xae8] sm:$0xff]
          %v2038 = vld [vmem:[#allocation13 + $0xaf0] sm:$0xff]
          %v2039 = vld [vmem:[#allocation13 + $0xaf8] sm:$0xff]
          %v2040 = vld [vmem:[#allocation13 + $0xb00] sm:$0xff]
          %v2041 = vld [vmem:[#allocation13 + $0xb08] sm:$0xff]
          %v2042 = vld [vmem:[#allocation13 + $0xb10] sm:$0xff]
          %v2043 = vld [vmem:[#allocation13 + $0xb18] sm:$0xff]
          %v2044 = vld [vmem:[#allocation13 + $0xb20] sm:$0xff]
          %v2045 = vld [vmem:[#allocation13 + $0xb28] sm:$0xff]
          %v2046 = vld [vmem:[#allocation13 + $0xb30] sm:$0xff]
          %v2047 = vld [vmem:[#allocation13 + $0xb38] sm:$0xff]
          %v2048 = vld [vmem:[#allocation13 + $0xb40] sm:$0xff]
          %v2049 = vld [vmem:[#allocation13 + $0xb48] sm:$0xff]
          %v2050 = vld [vmem:[#allocation13 + $0xb50] sm:$0xff]
          %v2051 = vld [vmem:[#allocation13 + $0xb58] sm:$0xff]
          %v2052 = vld [vmem:[#allocation13 + $0xb60] sm:$0xff]
          %v2053 = vld [vmem:[#allocation13 + $0xb68] sm:$0xff]
          %v2054 = vld [vmem:[#allocation13 + $0xb70] sm:$0xff]
          %v2055 = vld [vmem:[#allocation13 + $0xb78] sm:$0xff]
          %v2056 = vld [vmem:[#allocation13 + $0xb80] sm:$0xff]
          %v2057 = vld [vmem:[#allocation13 + $0xb88] sm:$0xff]
          %v2058 = vld [vmem:[#allocation13 + $0xb90] sm:$0xff]
          %v2059 = vld [vmem:[#allocation13 + $0xb98] sm:$0xff]
          %v2060 = vld [vmem:[#allocation13 + $0xba0] sm:$0xff]
          %v2061 = vld [vmem:[#allocation13 + $0xba8] sm:$0xff]
          %v2062 = vld [vmem:[#allocation13 + $0xbb0] sm:$0xff]
          %v2063 = vld [vmem:[#allocation13 + $0xbb8] sm:$0xff]
          %v2064 = vld [vmem:[#allocation13 + $0xbc0] sm:$0xff]
          %v2065 = vld [vmem:[#allocation13 + $0xbc8] sm:$0xff]
          %v2066 = vld [vmem:[#allocation13 + $0xbd0] sm:$0xff]
          %v2067 = vld [vmem:[#allocation13 + $0xbd8] sm:$0xff]
          %v2068 = vld [vmem:[#allocation13 + $0xbe0] sm:$0xff]
          %v2069 = vld [vmem:[#allocation13 + $0xbe8] sm:$0xff]
          %v2070 = vld [vmem:[#allocation13 + $0xbf0] sm:$0xff]
          %v2071 = vld [vmem:[#allocation13 + $0xbf8] sm:$0xff]
          %v2072 = vld [vmem:[#allocation15] sm:$0x3]
          %v2074 = vperm.slane %v2072, 0
          %v2075 = vperm.slane %v2072, 1
          %2081 = vst [vmem:[#allocation1] ss:$4 sm:$0xff] %v1685
          %s2082 = scalar_lea.vmem [#allocation1], 32
          %2083 = vst [vmem:[%s2082] ss:$4 sm:$0xff] %v1686
          %v2084 = vld.sshfl [vmem:[#allocation1] sm:$0xff pattern:$0x73625140]
          %v2085 = vld.sshfl [vmem:[#allocation1 + $0x8] sm:$0xff pattern:$0x73625140]
          %v2086 = vld.sshfl [vmem:[#allocation1 + $0x10] sm:$0xff pattern:$0x73625140]
          %v2087 = vld.sshfl [vmem:[#allocation1 + $0x18] sm:$0xff pattern:$0x73625140]
          %v2088 = vld.sshfl [vmem:[#allocation1 + $0x20] sm:$0xff pattern:$0x73625140]
          %v2089 = vld.sshfl [vmem:[#allocation1 + $0x28] sm:$0xff pattern:$0x73625140]
          %v2090 = vld.sshfl [vmem:[#allocation1 + $0x30] sm:$0xff pattern:$0x73625140]
          %v2091 = vld.sshfl [vmem:[#allocation1 + $0x38] sm:$0xff pattern:$0x73625140]
          %2092 = vst [vmem:[#allocation1] ss:$4 sm:$0xff] %v1687
          %v2093 = vld.sshfl [vmem:[#allocation1] sm:$0xff pattern:$0x73625140]
          %v2094 = vld.sshfl [vmem:[#allocation1 + $0x8] sm:$0xff pattern:$0x73625140]
          %v2095 = vld.sshfl [vmem:[#allocation1 + $0x10] sm:$0xff pattern:$0x73625140]
          %v2096 = vld.sshfl [vmem:[#allocation1 + $0x18] sm:$0xff pattern:$0x73625140]
          %2109 = vmatpush.msra.mxu0 %v1718
          %2110 = vmatpush.msra.mxu0 %v1716
          %2111 = vmatpush.msra.mxu0 %v1714
          %2112 = vmatpush.msra.mxu0 %v1712
          %2113 = vmatpush.msra.mxu0 %v1710
          %2114 = vmatpush.msra.mxu0 %v1708
          %2115 = vmatpush.msra.mxu0 %v1706
          %2116 = vmatpush.msra.mxu0 %v1704
          %2117 = vmatpush.msra.mxu0 %v1702
          %2118 = vmatpush.msra.mxu0 %v1700
          %2119 = vmatpush.msra.mxu0 %v1698
          %2120 = vmatpush.msra.mxu0 %v1696
          %2121 = vmatpush.msra.mxu0 %v1694
          %2122 = vmatpush.msra.mxu0 %v1692
          %2123 = vmatpush.msra.mxu0 %v1690
          %2124 = vmatpush.msra.mxu0 %v1688
          %2125 = vmatmul.f32.gmra.mxu0 %v2084
          %v2126 = vpop.f32.mrf.mxu0
          %v2127 = vadd.f32 %v2074, %v2126
          %2128 = vdwg.mxu0
          %2129 = vmatpush.msra.mxu0 %v1750
          %2130 = vmatpush.msra.mxu0 %v1748
          %2131 = vmatpush.msra.mxu0 %v1746
          %2132 = vmatpush.msra.mxu0 %v1744
          %2133 = vmatpush.msra.mxu0 %v1742
          %2134 = vmatpush.msra.mxu0 %v1740
          %2135 = vmatpush.msra.mxu0 %v1738
          %2136 = vmatpush.msra.mxu0 %v1736
          %2137 = vmatpush.msra.mxu0 %v1734
          %2138 = vmatpush.msra.mxu0 %v1732
          %2139 = vmatpush.msra.mxu0 %v1730
          %2140 = vmatpush.msra.mxu0 %v1728
          %2141 = vmatpush.msra.mxu0 %v1726
          %2142 = vmatpush.msra.mxu0 %v1724
          %2143 = vmatpush.msra.mxu0 %v1722
          %2144 = vmatpush.msra.mxu0 %v1720
          %2145 = vmatmul.f32.gmra.mxu0 %v2085
          %v2146 = vpop.f32.mrf.mxu0
          %v2147 = vadd.f32 %v2127, %v2146
          %2148 = vdwg.mxu0
          %2149 = vmatpush.msra.mxu0 %v1782
          %2150 = vmatpush.msra.mxu0 %v1780
          %2151 = vmatpush.msra.mxu0 %v1778
          %2152 = vmatpush.msra.mxu0 %v1776
          %2153 = vmatpush.msra.mxu0 %v1774
          %2154 = vmatpush.msra.mxu0 %v1772
          %2155 = vmatpush.msra.mxu0 %v1770
          %2156 = vmatpush.msra.mxu0 %v1768
          %2157 = vmatpush.msra.mxu0 %v1766
          %2158 = vmatpush.msra.mxu0 %v1764
          %2159 = vmatpush.msra.mxu0 %v1762
          %2160 = vmatpush.msra.mxu0 %v1760
          %2161 = vmatpush.msra.mxu0 %v1758
          %2162 = vmatpush.msra.mxu0 %v1756
          %2163 = vmatpush.msra.mxu0 %v1754
          %2164 = vmatpush.msra.mxu0 %v1752
          %2165 = vmatmul.f32.gmra.mxu0 %v2086
          %v2166 = vpop.f32.mrf.mxu0
          %v2167 = vadd.f32 %v2147, %v2166
          %2168 = vdwg.mxu0
          %2169 = vmatpush.msra.mxu0 %v1814
          %2170 = vmatpush.msra.mxu0 %v1812
          %2171 = vmatpush.msra.mxu0 %v1810
          %2172 = vmatpush.msra.mxu0 %v1808
          %2173 = vmatpush.msra.mxu0 %v1806
          %2174 = vmatpush.msra.mxu0 %v1804
          %2175 = vmatpush.msra.mxu0 %v1802
          %2176 = vmatpush.msra.mxu0 %v1800
          %2177 = vmatpush.msra.mxu0 %v1798
          %2178 = vmatpush.msra.mxu0 %v1796
          %2179 = vmatpush.msra.mxu0 %v1794
          %2180 = vmatpush.msra.mxu0 %v1792
          %2181 = vmatpush.msra.mxu0 %v1790
          %2182 = vmatpush.msra.mxu0 %v1788
          %2183 = vmatpush.msra.mxu0 %v1786
          %2184 = vmatpush.msra.mxu0 %v1784
          %2185 = vmatmul.f32.gmra.mxu0 %v2087
          %v2186 = vpop.f32.mrf.mxu0
          %v2187 = vadd.f32 %v2167, %v2186
          %2188 = vdwg.mxu0
          %2189 = vmatpush.msra.mxu0 %v1846
          %2190 = vmatpush.msra.mxu0 %v1844
          %2191 = vmatpush.msra.mxu0 %v1842
          %2192 = vmatpush.msra.mxu0 %v1840
          %2193 = vmatpush.msra.mxu0 %v1838
          %2194 = vmatpush.msra.mxu0 %v1836
          %2195 = vmatpush.msra.mxu0 %v1834
          %2196 = vmatpush.msra.mxu0 %v1832
          %2197 = vmatpush.msra.mxu0 %v1830
          %2198 = vmatpush.msra.mxu0 %v1828
          %2199 = vmatpush.msra.mxu0 %v1826
          %2200 = vmatpush.msra.mxu0 %v1824
          %2201 = vmatpush.msra.mxu0 %v1822
          %2202 = vmatpush.msra.mxu0 %v1820
          %2203 = vmatpush.msra.mxu0 %v1818
          %2204 = vmatpush.msra.mxu0 %v1816
          %2205 = vmatmul.f32.gmra.mxu0 %v2088
          %v2206 = vpop.f32.mrf.mxu0
          %v2207 = vadd.f32 %v2187, %v2206
          %2208 = vdwg.mxu0
          %2209 = vmatpush.msra.mxu0 %v1878
          %2210 = vmatpush.msra.mxu0 %v1876
          %2211 = vmatpush.msra.mxu0 %v1874
          %2212 = vmatpush.msra.mxu0 %v1872
          %2213 = vmatpush.msra.mxu0 %v1870
          %2214 = vmatpush.msra.mxu0 %v1868
          %2215 = vmatpush.msra.mxu0 %v1866
          %2216 = vmatpush.msra.mxu0 %v1864
          %2217 = vmatpush.msra.mxu0 %v1862
          %2218 = vmatpush.msra.mxu0 %v1860
          %2219 = vmatpush.msra.mxu0 %v1858
          %2220 = vmatpush.msra.mxu0 %v1856
          %2221 = vmatpush.msra.mxu0 %v1854
          %2222 = vmatpush.msra.mxu0 %v1852
          %2223 = vmatpush.msra.mxu0 %v1850
          %2224 = vmatpush.msra.mxu0 %v1848
          %2225 = vmatmul.f32.gmra.mxu0 %v2089
          %v2226 = vpop.f32.mrf.mxu0
          %v2227 = vadd.f32 %v2207, %v2226
          %2228 = vdwg.mxu0
          %2229 = vmatpush.msra.mxu0 %v1910
          %2230 = vmatpush.msra.mxu0 %v1908
          %2231 = vmatpush.msra.mxu0 %v1906
          %2232 = vmatpush.msra.mxu0 %v1904
          %2233 = vmatpush.msra.mxu0 %v1902
          %2234 = vmatpush.msra.mxu0 %v1900
          %2235 = vmatpush.msra.mxu0 %v1898
          %2236 = vmatpush.msra.mxu0 %v1896
          %2237 = vmatpush.msra.mxu0 %v1894
          %2238 = vmatpush.msra.mxu0 %v1892
          %2239 = vmatpush.msra.mxu0 %v1890
          %2240 = vmatpush.msra.mxu0 %v1888
          %2241 = vmatpush.msra.mxu0 %v1886
          %2242 = vmatpush.msra.mxu0 %v1884
          %2243 = vmatpush.msra.mxu0 %v1882
          %2244 = vmatpush.msra.mxu0 %v1880
          %2245 = vmatmul.f32.gmra.mxu0 %v2090
          %v2246 = vpop.f32.mrf.mxu0
          %v2247 = vadd.f32 %v2227, %v2246
          %2248 = vdwg.mxu0
          %2249 = vmatpush.msra.mxu0 %v1942
          %2250 = vmatpush.msra.mxu0 %v1940
          %2251 = vmatpush.msra.mxu0 %v1938
          %2252 = vmatpush.msra.mxu0 %v1936
          %2253 = vmatpush.msra.mxu0 %v1934
          %2254 = vmatpush.msra.mxu0 %v1932
          %2255 = vmatpush.msra.mxu0 %v1930
          %2256 = vmatpush.msra.mxu0 %v1928
          %2257 = vmatpush.msra.mxu0 %v1926
          %2258 = vmatpush.msra.mxu0 %v1924
          %2259 = vmatpush.msra.mxu0 %v1922
          %2260 = vmatpush.msra.mxu0 %v1920
          %2261 = vmatpush.msra.mxu0 %v1918
          %2262 = vmatpush.msra.mxu0 %v1916
          %2263 = vmatpush.msra.mxu0 %v1914
          %2264 = vmatpush.msra.mxu0 %v1912
          %2265 = vmatmul.f32.gmra.mxu0 %v2091
          %v2266 = vpop.f32.mrf.mxu0
          %v2267 = vadd.f32 %v2247, %v2266
          %2268 = vdwg.mxu0
          %2269 = vmatpush.msra.mxu0 %v1974
          %2270 = vmatpush.msra.mxu0 %v1972
          %2271 = vmatpush.msra.mxu0 %v1970
          %2272 = vmatpush.msra.mxu0 %v1968
          %2273 = vmatpush.msra.mxu0 %v1966
          %2274 = vmatpush.msra.mxu0 %v1964
          %2275 = vmatpush.msra.mxu0 %v1962
          %2276 = vmatpush.msra.mxu0 %v1960
          %2277 = vmatpush.msra.mxu0 %v1958
          %2278 = vmatpush.msra.mxu0 %v1956
          %2279 = vmatpush.msra.mxu0 %v1954
          %2280 = vmatpush.msra.mxu0 %v1952
          %2281 = vmatpush.msra.mxu0 %v1950
          %2282 = vmatpush.msra.mxu0 %v1948
          %2283 = vmatpush.msra.mxu0 %v1946
          %2284 = vmatpush.msra.mxu0 %v1944
          %2285 = vmatmul.f32.gmra.mxu0 %v2093
          %v2286 = vpop.f32.mrf.mxu0
          %v2287 = vadd.f32 %v2267, %v2286
          %2288 = vdwg.mxu0
          %2289 = vmatpush.msra.mxu0 %v2006
          %2290 = vmatpush.msra.mxu0 %v2004
          %2291 = vmatpush.msra.mxu0 %v2002
          %2292 = vmatpush.msra.mxu0 %v2000
          %2293 = vmatpush.msra.mxu0 %v1998
          %2294 = vmatpush.msra.mxu0 %v1996
          %2295 = vmatpush.msra.mxu0 %v1994
          %2296 = vmatpush.msra.mxu0 %v1992
          %2297 = vmatpush.msra.mxu0 %v1990
          %2298 = vmatpush.msra.mxu0 %v1988
          %2299 = vmatpush.msra.mxu0 %v1986
          %2300 = vmatpush.msra.mxu0 %v1984
          %2301 = vmatpush.msra.mxu0 %v1982
          %2302 = vmatpush.msra.mxu0 %v1980
          %2303 = vmatpush.msra.mxu0 %v1978
          %2304 = vmatpush.msra.mxu0 %v1976
          %2305 = vmatmul.f32.gmra.mxu0 %v2094
          %v2306 = vpop.f32.mrf.mxu0
          %v2307 = vadd.f32 %v2287, %v2306
          %2308 = vdwg.mxu0
          %2309 = vmatpush.msra.mxu0 %v2038
          %2310 = vmatpush.msra.mxu0 %v2036
          %2311 = vmatpush.msra.mxu0 %v2034
          %2312 = vmatpush.msra.mxu0 %v2032
          %2313 = vmatpush.msra.mxu0 %v2030
          %2314 = vmatpush.msra.mxu0 %v2028
          %2315 = vmatpush.msra.mxu0 %v2026
          %2316 = vmatpush.msra.mxu0 %v2024
          %2317 = vmatpush.msra.mxu0 %v2022
          %2318 = vmatpush.msra.mxu0 %v2020
          %2319 = vmatpush.msra.mxu0 %v2018
          %2320 = vmatpush.msra.mxu0 %v2016
          %2321 = vmatpush.msra.mxu0 %v2014
          %2322 = vmatpush.msra.mxu0 %v2012
          %2323 = vmatpush.msra.mxu0 %v2010
          %2324 = vmatpush.msra.mxu0 %v2008
          %2325 = vmatmul.f32.gmra.mxu0 %v2095
          %v2326 = vpop.f32.mrf.mxu0
          %v2327 = vadd.f32 %v2307, %v2326
          %2328 = vdwg.mxu0
          %2329 = vmatpush.msra.mxu0 %v2070
          %2330 = vmatpush.msra.mxu0 %v2068
          %2331 = vmatpush.msra.mxu0 %v2066
          %2332 = vmatpush.msra.mxu0 %v2064
          %2333 = vmatpush.msra.mxu0 %v2062
          %2334 = vmatpush.msra.mxu0 %v2060
          %2335 = vmatpush.msra.mxu0 %v2058
          %2336 = vmatpush.msra.mxu0 %v2056
          %2337 = vmatpush.msra.mxu0 %v2054
          %2338 = vmatpush.msra.mxu0 %v2052
          %2339 = vmatpush.msra.mxu0 %v2050
          %2340 = vmatpush.msra.mxu0 %v2048
          %2341 = vmatpush.msra.mxu0 %v2046
          %2342 = vmatpush.msra.mxu0 %v2044
          %2343 = vmatpush.msra.mxu0 %v2042
          %2344 = vmatpush.msra.mxu0 %v2040
          %2345 = vmatmul.f32.gmra.mxu0 %v2096
          %v2346 = vpop.f32.mrf.mxu0
          %v2347 = vadd.f32 %v2327, %v2346
          %2348 = vdwg.mxu0
          %2349 = vmatpush.msra.mxu0 %v1719
          %2350 = vmatpush.msra.mxu0 %v1717
          %2351 = vmatpush.msra.mxu0 %v1715
          %2352 = vmatpush.msra.mxu0 %v1713
          %2353 = vmatpush.msra.mxu0 %v1711
          %2354 = vmatpush.msra.mxu0 %v1709
          %2355 = vmatpush.msra.mxu0 %v1707
          %2356 = vmatpush.msra.mxu0 %v1705
          %2357 = vmatpush.msra.mxu0 %v1703
          %2358 = vmatpush.msra.mxu0 %v1701
          %2359 = vmatpush.msra.mxu0 %v1699
          %2360 = vmatpush.msra.mxu0 %v1697
          %2361 = vmatpush.msra.mxu0 %v1695
          %2362 = vmatpush.msra.mxu0 %v1693
          %2363 = vmatpush.msra.mxu0 %v1691
          %2364 = vmatpush.msra.mxu0 %v1689
          %2365 = vmatmul.f32.gmra.mxu0 %v2084
          %v2366 = vpop.f32.mrf.mxu0
          %v2367 = vadd.f32 %v2075, %v2366
          %2368 = vdwg.mxu0
          %2369 = vmatpush.msra.mxu0 %v1751
          %2370 = vmatpush.msra.mxu0 %v1749
          %2371 = vmatpush.msra.mxu0 %v1747
          %2372 = vmatpush.msra.mxu0 %v1745
          %2373 = vmatpush.msra.mxu0 %v1743
          %2374 = vmatpush.msra.mxu0 %v1741
          %2375 = vmatpush.msra.mxu0 %v1739
          %2376 = vmatpush.msra.mxu0 %v1737
          %2377 = vmatpush.msra.mxu0 %v1735
          %2378 = vmatpush.msra.mxu0 %v1733
          %2379 = vmatpush.msra.mxu0 %v1731
          %2380 = vmatpush.msra.mxu0 %v1729
          %2381 = vmatpush.msra.mxu0 %v1727
          %2382 = vmatpush.msra.mxu0 %v1725
          %2383 = vmatpush.msra.mxu0 %v1723
          %2384 = vmatpush.msra.mxu0 %v1721
          %2385 = vmatmul.f32.gmra.mxu0 %v2085
          %v2386 = vpop.f32.mrf.mxu0
          %v2387 = vadd.f32 %v2367, %v2386
          %2388 = vdwg.mxu0
          %2389 = vmatpush.msra.mxu0 %v1783
          %2390 = vmatpush.msra.mxu0 %v1781
          %2391 = vmatpush.msra.mxu0 %v1779
          %2392 = vmatpush.msra.mxu0 %v1777
          %2393 = vmatpush.msra.mxu0 %v1775
          %2394 = vmatpush.msra.mxu0 %v1773
          %2395 = vmatpush.msra.mxu0 %v1771
          %2396 = vmatpush.msra.mxu0 %v1769
          %2397 = vmatpush.msra.mxu0 %v1767
          %2398 = vmatpush.msra.mxu0 %v1765
          %2399 = vmatpush.msra.mxu0 %v1763
          %2400 = vmatpush.msra.mxu0 %v1761
          %2401 = vmatpush.msra.mxu0 %v1759
          %2402 = vmatpush.msra.mxu0 %v1757
          %2403 = vmatpush.msra.mxu0 %v1755
          %2404 = vmatpush.msra.mxu0 %v1753
          %2405 = vmatmul.f32.gmra.mxu0 %v2086
          %v2406 = vpop.f32.mrf.mxu0
          %v2407 = vadd.f32 %v2387, %v2406
          %2408 = vdwg.mxu0
          %2409 = vmatpush.msra.mxu0 %v1815
          %2410 = vmatpush.msra.mxu0 %v1813
          %2411 = vmatpush.msra.mxu0 %v1811
          %2412 = vmatpush.msra.mxu0 %v1809
          %2413 = vmatpush.msra.mxu0 %v1807
          %2414 = vmatpush.msra.mxu0 %v1805
          %2415 = vmatpush.msra.mxu0 %v1803
          %2416 = vmatpush.msra.mxu0 %v1801
          %2417 = vmatpush.msra.mxu0 %v1799
          %2418 = vmatpush.msra.mxu0 %v1797
          %2419 = vmatpush.msra.mxu0 %v1795
          %2420 = vmatpush.msra.mxu0 %v1793
          %2421 = vmatpush.msra.mxu0 %v1791
          %2422 = vmatpush.msra.mxu0 %v1789
          %2423 = vmatpush.msra.mxu0 %v1787
          %2424 = vmatpush.msra.mxu0 %v1785
          %2425 = vmatmul.f32.gmra.mxu0 %v2087
          %v2426 = vpop.f32.mrf.mxu0
          %v2427 = vadd.f32 %v2407, %v2426
          %2428 = vdwg.mxu0
          %2429 = vmatpush.msra.mxu0 %v1847
          %2430 = vmatpush.msra.mxu0 %v1845
          %2431 = vmatpush.msra.mxu0 %v1843
          %2432 = vmatpush.msra.mxu0 %v1841
          %2433 = vmatpush.msra.mxu0 %v1839
          %2434 = vmatpush.msra.mxu0 %v1837
          %2435 = vmatpush.msra.mxu0 %v1835
          %2436 = vmatpush.msra.mxu0 %v1833
          %2437 = vmatpush.msra.mxu0 %v1831
          %2438 = vmatpush.msra.mxu0 %v1829
          %2439 = vmatpush.msra.mxu0 %v1827
          %2440 = vmatpush.msra.mxu0 %v1825
          %2441 = vmatpush.msra.mxu0 %v1823
          %2442 = vmatpush.msra.mxu0 %v1821
          %2443 = vmatpush.msra.mxu0 %v1819
          %2444 = vmatpush.msra.mxu0 %v1817
          %2445 = vmatmul.f32.gmra.mxu0 %v2088
          %v2446 = vpop.f32.mrf.mxu0
          %v2447 = vadd.f32 %v2427, %v2446
          %2448 = vdwg.mxu0
          %2449 = vmatpush.msra.mxu0 %v1879
          %2450 = vmatpush.msra.mxu0 %v1877
          %2451 = vmatpush.msra.mxu0 %v1875
          %2452 = vmatpush.msra.mxu0 %v1873
          %2453 = vmatpush.msra.mxu0 %v1871
          %2454 = vmatpush.msra.mxu0 %v1869
          %2455 = vmatpush.msra.mxu0 %v1867
          %2456 = vmatpush.msra.mxu0 %v1865
          %2457 = vmatpush.msra.mxu0 %v1863
          %2458 = vmatpush.msra.mxu0 %v1861
          %2459 = vmatpush.msra.mxu0 %v1859
          %2460 = vmatpush.msra.mxu0 %v1857
          %2461 = vmatpush.msra.mxu0 %v1855
          %2462 = vmatpush.msra.mxu0 %v1853
          %2463 = vmatpush.msra.mxu0 %v1851
          %2464 = vmatpush.msra.mxu0 %v1849
          %2465 = vmatmul.f32.gmra.mxu0 %v2089
          %v2466 = vpop.f32.mrf.mxu0
          %v2467 = vadd.f32 %v2447, %v2466
          %2468 = vdwg.mxu0
          %2469 = vmatpush.msra.mxu0 %v1911
          %2470 = vmatpush.msra.mxu0 %v1909
          %2471 = vmatpush.msra.mxu0 %v1907
          %2472 = vmatpush.msra.mxu0 %v1905
          %2473 = vmatpush.msra.mxu0 %v1903
          %2474 = vmatpush.msra.mxu0 %v1901
          %2475 = vmatpush.msra.mxu0 %v1899
          %2476 = vmatpush.msra.mxu0 %v1897
          %2477 = vmatpush.msra.mxu0 %v1895
          %2478 = vmatpush.msra.mxu0 %v1893
          %2479 = vmatpush.msra.mxu0 %v1891
          %2480 = vmatpush.msra.mxu0 %v1889
          %2481 = vmatpush.msra.mxu0 %v1887
          %2482 = vmatpush.msra.mxu0 %v1885
          %2483 = vmatpush.msra.mxu0 %v1883
          %2484 = vmatpush.msra.mxu0 %v1881
          %2485 = vmatmul.f32.gmra.mxu0 %v2090
          %v2486 = vpop.f32.mrf.mxu0
          %v2487 = vadd.f32 %v2467, %v2486
          %2488 = vdwg.mxu0
          %2489 = vmatpush.msra.mxu0 %v1943
          %2490 = vmatpush.msra.mxu0 %v1941
          %2491 = vmatpush.msra.mxu0 %v1939
          %2492 = vmatpush.msra.mxu0 %v1937
          %2493 = vmatpush.msra.mxu0 %v1935
          %2494 = vmatpush.msra.mxu0 %v1933
          %2495 = vmatpush.msra.mxu0 %v1931
          %2496 = vmatpush.msra.mxu0 %v1929
          %2497 = vmatpush.msra.mxu0 %v1927
          %2498 = vmatpush.msra.mxu0 %v1925
          %2499 = vmatpush.msra.mxu0 %v1923
          %2500 = vmatpush.msra.mxu0 %v1921
          %2501 = vmatpush.msra.mxu0 %v1919
          %2502 = vmatpush.msra.mxu0 %v1917
          %2503 = vmatpush.msra.mxu0 %v1915
          %2504 = vmatpush.msra.mxu0 %v1913
          %2505 = vmatmul.f32.gmra.mxu0 %v2091
          %v2506 = vpop.f32.mrf.mxu0
          %v2507 = vadd.f32 %v2487, %v2506
          %2508 = vdwg.mxu0
          %2509 = vmatpush.msra.mxu0 %v1975
          %2510 = vmatpush.msra.mxu0 %v1973
          %2511 = vmatpush.msra.mxu0 %v1971
          %2512 = vmatpush.msra.mxu0 %v1969
          %2513 = vmatpush.msra.mxu0 %v1967
          %2514 = vmatpush.msra.mxu0 %v1965
          %2515 = vmatpush.msra.mxu0 %v1963
          %2516 = vmatpush.msra.mxu0 %v1961
          %2517 = vmatpush.msra.mxu0 %v1959
          %2518 = vmatpush.msra.mxu0 %v1957
          %2519 = vmatpush.msra.mxu0 %v1955
          %2520 = vmatpush.msra.mxu0 %v1953
          %2521 = vmatpush.msra.mxu0 %v1951
          %2522 = vmatpush.msra.mxu0 %v1949
          %2523 = vmatpush.msra.mxu0 %v1947
          %2524 = vmatpush.msra.mxu0 %v1945
          %2525 = vmatmul.f32.gmra.mxu0 %v2093
          %v2526 = vpop.f32.mrf.mxu0
          %v2527 = vadd.f32 %v2507, %v2526
          %2528 = vdwg.mxu0
          %2529 = vmatpush.msra.mxu0 %v2007
          %2530 = vmatpush.msra.mxu0 %v2005
          %2531 = vmatpush.msra.mxu0 %v2003
          %2532 = vmatpush.msra.mxu0 %v2001
          %2533 = vmatpush.msra.mxu0 %v1999
          %2534 = vmatpush.msra.mxu0 %v1997
          %2535 = vmatpush.msra.mxu0 %v1995
          %2536 = vmatpush.msra.mxu0 %v1993
          %2537 = vmatpush.msra.mxu0 %v1991
          %2538 = vmatpush.msra.mxu0 %v1989
          %2539 = vmatpush.msra.mxu0 %v1987
          %2540 = vmatpush.msra.mxu0 %v1985
          %2541 = vmatpush.msra.mxu0 %v1983
          %2542 = vmatpush.msra.mxu0 %v1981
          %2543 = vmatpush.msra.mxu0 %v1979
          %2544 = vmatpush.msra.mxu0 %v1977
          %2545 = vmatmul.f32.gmra.mxu0 %v2094
          %v2546 = vpop.f32.mrf.mxu0
          %v2547 = vadd.f32 %v2527, %v2546
          %2548 = vdwg.mxu0
          %2549 = vmatpush.msra.mxu0 %v2039
          %2550 = vmatpush.msra.mxu0 %v2037
          %2551 = vmatpush.msra.mxu0 %v2035
          %2552 = vmatpush.msra.mxu0 %v2033
          %2553 = vmatpush.msra.mxu0 %v2031
          %2554 = vmatpush.msra.mxu0 %v2029
          %2555 = vmatpush.msra.mxu0 %v2027
          %2556 = vmatpush.msra.mxu0 %v2025
          %2557 = vmatpush.msra.mxu0 %v2023
          %2558 = vmatpush.msra.mxu0 %v2021
          %2559 = vmatpush.msra.mxu0 %v2019
          %2560 = vmatpush.msra.mxu0 %v2017
          %2561 = vmatpush.msra.mxu0 %v2015
          %2562 = vmatpush.msra.mxu0 %v2013
          %2563 = vmatpush.msra.mxu0 %v2011
          %2564 = vmatpush.msra.mxu0 %v2009
          %2565 = vmatmul.f32.gmra.mxu0 %v2095
          %v2566 = vpop.f32.mrf.mxu0
          %v2567 = vadd.f32 %v2547, %v2566
          %2568 = vdwg.mxu0
          %2569 = vmatpush.msra.mxu0 %v2071
          %2570 = vmatpush.msra.mxu0 %v2069
          %2571 = vmatpush.msra.mxu0 %v2067
          %2572 = vmatpush.msra.mxu0 %v2065
          %2573 = vmatpush.msra.mxu0 %v2063
          %2574 = vmatpush.msra.mxu0 %v2061
          %2575 = vmatpush.msra.mxu0 %v2059
          %2576 = vmatpush.msra.mxu0 %v2057
          %2577 = vmatpush.msra.mxu0 %v2055
          %2578 = vmatpush.msra.mxu0 %v2053
          %2579 = vmatpush.msra.mxu0 %v2051
          %2580 = vmatpush.msra.mxu0 %v2049
          %2581 = vmatpush.msra.mxu0 %v2047
          %2582 = vmatpush.msra.mxu0 %v2045
          %2583 = vmatpush.msra.mxu0 %v2043
          %2584 = vmatpush.msra.mxu0 %v2041
          %2585 = vmatmul.f32.gmra.mxu0 %v2096
          %v2586 = vpop.f32.mrf.mxu0
          %v2587 = vadd.f32 %v2567, %v2586
          %2588 = vdwg.mxu0
          %v2589 = vmul.f32 %v2347, %v2347
          %v2590 = vmul.f32 %v2587, %v2587
          %v2591 = vsel %vm887, %v2589, 0.0
          %v2592 = vsel %vm887, %v2590, 0.0
          %v2593 = vadd.f32 %v2591, %v2592
          %2594 = vadd.xlane.f32.xlu0 %v2593
          %v2595 = vpop.xlane.xlu0 %2594
          %v2596 = vmax.f32 %v2595, 1e-24
          %v2597 = vrsqrt.pop %v2596
          %v2598 = vmul.f32 %v2597, %v2596
          %v2599 = vmul.f32 %v2598, %v2597
          %v2600 = vmul.f32 0.5, %v2599
          %v2601 = vsub.f32 1.5, %v2600
          %v2602 = vmul.f32 %v2597, %v2601
          %vm2603 = vweird.f32 %v2596
          %vm2604 = vweird.f32 %v2597
          %vm2605 = vmor %vm2603, %vm2604
          %v2606 = vsel %vm2605, %v2597, %v2602
          %v2607 = vmul.f32 %v2347, %v2606
          %v2608 = vmul.f32 %v2587, %v2606
          %v2611 = vrot.slane %v2608, 6
          %v2612 = vsel %vm887, %v2607, %v2611
          %2614 = vst [vmem:[#allocation16] sm:$0xf] %v2612
        $region84: #{tpu_custom_call.1} parent=47 // pred_fallthru
          _
        // Predicated region
        $region85: #{tpu_custom_call.1} parent=47 // pred_check
          %p2615 = pneg %p209
        $region86: #{tpu_custom_call.1} parent=47 // pred_check_branch
          %2617 = sbr.rel (%p2615) target = $region88
        $region87: #{tpu_custom_call.1} parent=47 // pred_region
          %2619 = vsyncadd [#allocation6], 0
          %s2620 = smul.addr %s29, 2
          %s2621 = smul.addr %s2620, 2
          %s2622 = scalar_lea.hbm %s7, %s2621
          %s2624 = sshll.u32 [#allocation16], 4
          %s2625 = int_to_ptr.vmem [resolvable:$true] %s2624
          %s2626 = sshll.u32 %s2622, 4
          %s2627 = int_to_ptr.hbm [resolvable:$true] %s2626
          %2629 = dma.vmem_to_hbm [thread:$0]  %s2625, 64, %s2627, [#allocation6]
        $region88: #{tpu_custom_call.1} parent=47 // pred_fallthru
          _
        // Predicated region
        $region89: #{tpu_custom_call.1} parent=47 // pred_check
          %p2630 = pneg %p209
        $region90: #{tpu_custom_call.1} parent=47 // pred_check_branch
          %2632 = sbr.rel (%p2630) target = $region92
        $region91: #{tpu_custom_call.1} parent=47 // pred_region
          %2634 = dma.done [#allocation6], 64
        $region92: #{tpu_custom_call.1} parent=47 // pred_fallthru
          _
      $region48: #{tpu_custom_call.1} parent=5 // pred_fallthru
        _
      %p2635 = scmp.le.s32.totalorder 2, %s20
      // Predicated region
      $region93: #{tpu_custom_call.1} parent=5 // pred_check
        %p2636 = pneg %p2635
      $region94: #{tpu_custom_call.1} parent=5 // pred_check_branch
        %2638 = sbr.rel (%p2636) target = $region96
      $region95: #{tpu_custom_call.1} parent=5 // pred_region
        %s2639 = ssub.s32 %s20, 2
      $region96: #{tpu_custom_call.1} parent=5 // pred_fallthru
        _
    $region6: #{tpu_custom_call.1} parent=1 // loop_footer
      %s24 = sadd.s32 1, %s20
    $region7: #{tpu_custom_call.1} parent=1 // loop_footer_branch
      %19 = sbr.rel target = $region3
    $region8: #{tpu_custom_call.1} parent=1 // loop_exit
      _
    %2640 = vsyncpa [#allocation5], 1
    %s2641 = scalar_lea.sflag [#allocation5], 1
    %2642 = vsyncpa %s2641, 1
    %2643 = vsyncpa [#allocation8], 1
    %2644 = vsyncpa [#allocation11], 1
    %2645 = vsyncpa [#allocation14], 1
    %2646 = vsyncpa [#allocation6], 1
    %s2647 = scalar_lea.sflag [#allocation6], 1
    %2648 = vsyncpa %s2647, 1

// kernel: tpu_custom_call.1
$region0: #{tpu_custom_call.1}
  #allocation0 [shape = 'u32[]', space=smem, size = 0x4, offset = 0x4, fixed_abs, tag = 'smem constant byte address 0x4 - core index']
  #allocation1 [shape = 'u32[72,128]{1,0:T(1,128)}', space=vmem, size = 0x9000, scoped, tag = 'internal scratch']
  #allocation2 [shape = 'f32[2,1536]{1,0:T(2,128)}', space=vmem, size = 0x3000, scoped, tag = 'scratch operand']
  #allocation3 [shape = 'f32[2,2048]{1,0:T(2,128)}', space=vmem, size = 0x4000, scoped, tag = 'scratch operand']
  %s0 = inlined_call_operand.hbm [shape: f32[2,16,32], index: 0, kind: input, shape index: {}]
  %s1 = inlined_call_operand.hbm [shape: bf16[32,512], index: 1, kind: input, shape index: {}]
  %s2 = inlined_call_operand.hbm [shape: bf16[32,1024], index: 2, kind: input, shape index: {}]
  %s3 = inlined_call_operand.hbm [shape: bf16[32,1536], index: 3, kind: input, shape index: {}]
  %s4 = inlined_call_operand.hbm [shape: f32[1,1536], index: 4, kind: input, shape index: {}]
  %s5 = inlined_call_operand.hbm [shape: f32[1536,256], index: 5, kind: input, shape index: {}]
  %s6 = inlined_call_operand.hbm [shape: f32[1,256], index: 6, kind: input, shape index: {}]
  %s7 = inlined_call_operand.hbm [shape: f32[2,256], index: 7, kind: output, shape index: {}]
  %s8 = sld [smem:[#allocation0]]
  $region97: #{tpu_custom_call.1} parent=0
    _
  %s10 = ssub.s32 1, %s8
  %s11 = scalar_select 0, %s10, %s8
  $region1: #{tpu_custom_call.1} parent=0
    #allocation4 [shape = 'u8[16384]{0}', space=vmem, size = 0x4000, scoped, tag = 'input window, operand 0']
    #allocation5 [shape = 's32[2]{0}', space=sflag, size = 0x8, scoped, tag = 'scoped memory for tpu_custom_call.1']
    #allocation6 [shape = 's32[2]{0}', space=sflag, size = 0x8, scoped, tag = 'scoped memory for tpu_custom_call.1']
    #allocation7 [shape = 'u8[32768]{0}', space=vmem, size = 0x8000, scoped, tag = 'input window, operand 1, single buffered']
    #allocation8 [shape = 's32[1]{0}', space=sflag, size = 0x4, scoped, tag = 'scoped memory for tpu_custom_call.1']
    #allocation9 [shape = 'u8[65536]{0}', space=vmem, size = 0x10000, scoped, tag = 'input window, operand 2, single buffered']
    #allocation10 [shape = 'u8[98304]{0}', space=vmem, size = 0x18000, scoped, tag = 'input window, operand 3, single buffered']
    #allocation11 [shape = 's32[1]{0}', space=sflag, size = 0x4, scoped, tag = 'scoped memory for tpu_custom_call.1']
    #allocation12 [shape = 'u8[6144]{0}', space=vmem, size = 0x1800, scoped, tag = 'input window, operand 4, single buffered']
    #allocation13 [shape = 'u8[1572864]{0}', space=vmem, size = 0x180000, scoped, tag = 'input window, operand 5, single buffered']
    #allocation14 [shape = 's32[1]{0}', space=sflag, size = 0x4, scoped, tag = 'scoped memory for tpu_custom_call.1']
    #allocation15 [shape = 'u8[1024]{0}', space=vmem, size = 0x400, scoped, tag = 'input window, operand 6, single buffered']
    #allocation16 [shape = 'u8[2048]{0}', space=vmem, size = 0x800, scoped, tag = 'output window, operand 0, single buffered']
    %12 = vsyncpa [#allocation5], 0
    %s13 = scalar_lea.sflag [#allocation5], 1
    %14 = vsyncpa %s13, 0
    %15 = vsyncpa [#allocation8], 0
    %16 = vsyncpa [#allocation11], 0
    %17 = vsyncpa [#allocation14], 0
    %18 = vsyncpa [#allocation6], 0
    loop: start=0, step=1, limit=4
    $region2: #{tpu_custom_call.1} parent=1 // loop_pre_header
      _
    $region3: #{tpu_custom_call.1} parent=1 // loop_header
      %s20 = sphi 0, %s24
      %p21 = scmp.ge.s32.totalorder %s20, 4
      %s27 = sphi 0, %s39
      %s28 = sphi 0, %s35
      %s29 = sphi 0, %s27
      %s30 = sphi 0, %s28
      %s31 = sphi 0, %s29
      %s32 = sphi 0, %s30
      %s44 = sphi 0, %s46
      %s47 = sphi 0, %s44
      %s48 = sphi 0, %s47
      %s64 = sphi 0, %s48
      %s68 = sphi 0, %s68
      %s70 = sphi 0, %s68
      %s71 = sphi 0, %s70
      %s85 = sphi 0, %s71
      %s89 = sphi 0, %s89
      %s91 = sphi 0, %s89
      %s92 = sphi 0, %s91
      %s106 = sphi 0, %s92
      %s110 = sphi 0, %s110
      %s112 = sphi 0, %s110
      %s113 = sphi 0, %s112
      %s127 = sphi 0, %s113
      %s131 = sphi 0, %s131
      %s133 = sphi 0, %s131
      %s134 = sphi 0, %s133
      %s148 = sphi 0, %s134
      %s152 = sphi 0, %s152
      %s154 = sphi 0, %s152
      %s155 = sphi 0, %s154
      %s169 = sphi 0, %s155
      %s173 = sphi 0, %s173
      %s175 = sphi 0, %s173
      %s176 = sphi 0, %s175
      %s190 = sphi 0, %s176
      %s196 = sphi 0, %s198
      %s199 = sphi 0, %s196
      %s200 = sphi 0, %s199
      %s216 = sphi 0, %s200
    $region4: #{tpu_custom_call.1} parent=1 // loop_header_branch
      %23 = sbr.rel (%p21) target = $region8
    $region5: #{tpu_custom_call.1} parent=1 // loop_body
      %s25 = ssub.s32 %s20, 1
      %s26 = ssub.s32 %s20, 2
      %s33 = sadd.s32 1, %s28
      %p34 = scmp.ge.s32.totalorder %s33, 2
      %s35 = scalar_select %p34, 0, %s33
      %s36 = sadd.s32 1, %s27
      %s37 = scalar_select %p34, %s36, %s27
      %p38 = scmp.ge.s32.totalorder %s37, 1
      %s39 = scalar_select %p38, 0, %s37
      %s40 = ssub.s32 %s27, %s39
      %s41 = ssub.s32 %s28, %s35
      %s42 = sor.u32 %s40, %s41
      %p43 = scmp.eq.s32.totalorder %s42, 0
      %s45 = sadd.s32 %s44, 1
      %s46 = scalar_select %p43, %s44, %s45
      %p49 = pneg %p43
      %p50 = scmp.eq.s32.totalorder %s20, 1
      %p51 = por %p49, %p50
      %p52 = scmp.ne.s32.totalorder %s44, %s47
      %p53 = scmp.eq.s32.totalorder %s20, 0
      %p54 = por %p52, %p53
      %p55 = scmp.ne.s32.totalorder %s44, %s47
      %p56 = scmp.eq.s32.totalorder %s25, 1
      %p57 = por %p55, %p56
      %p58 = scmp.ne.s32.totalorder %s47, %s48
      %p59 = scmp.eq.s32.totalorder %s25, 0
      %p60 = por %p58, %p59
      %p61 = scmp.ne.s32.totalorder %s47, %s48
      %p62 = scmp.eq.s32.totalorder %s26, 1
      %p63 = por %p61, %p62
      %p65 = scmp.ne.s32.totalorder %s48, %s64
      %p66 = scmp.eq.s32.totalorder %s26, 0
      %p67 = por %p65, %p66
      %s69 = sadd.s32 %s68, 1
      %p72 = scmp.eq.s32.totalorder %s20, 1
      %p73 = scmp.ne.s32.totalorder %s68, %s70
      %p74 = scmp.eq.s32.totalorder %s20, 0
      %p75 = por %p73, %p74
      %p76 = scmp.ne.s32.totalorder %s68, %s70
      %p77 = scmp.eq.s32.totalorder %s25, 1
      %p78 = por %p76, %p77
      %p79 = scmp.ne.s32.totalorder %s70, %s71
      %p80 = scmp.eq.s32.totalorder %s25, 0
      %p81 = por %p79, %p80
      %p82 = scmp.ne.s32.totalorder %s70, %s71
      %p83 = scmp.eq.s32.totalorder %s26, 1
      %p84 = por %p82, %p83
      %p86 = scmp.ne.s32.totalorder %s71, %s85
      %p87 = scmp.eq.s32.totalorder %s26, 0
      %p88 = por %p86, %p87
      %s90 = sadd.s32 %s89, 1
      %p93 = scmp.eq.s32.totalorder %s20, 1
      %p94 = scmp.ne.s32.totalorder %s89, %s91
      %p95 = scmp.eq.s32.totalorder %s20, 0
      %p96 = por %p94, %p95
      %p97 = scmp.ne.s32.totalorder %s89, %s91
      %p98 = scmp.eq.s32.totalorder %s25, 1
      %p99 = por %p97, %p98
      %p100 = scmp.ne.s32.totalorder %s91, %s92
      %p101 = scmp.eq.s32.totalorder %s25, 0
      %p102 = por %p100, %p101
      %p103 = scmp.ne.s32.totalorder %s91, %s92
      %p104 = scmp.eq.s32.totalorder %s26, 1
      %p105 = por %p103, %p104
      %p107 = scmp.ne.s32.totalorder %s92, %s106
      %p108 = scmp.eq.s32.totalorder %s26, 0
      %p109 = por %p107, %p108
      %s111 = sadd.s32 %s110, 1
      %p114 = scmp.eq.s32.totalorder %s20, 1
      %p115 = scmp.ne.s32.totalorder %s110, %s112
      %p116 = scmp.eq.s32.totalorder %s20, 0
      %p117 = por %p115, %p116
      %p118 = scmp.ne.s32.totalorder %s110, %s112
      %p119 = scmp.eq.s32.totalorder %s25, 1
      %p120 = por %p118, %p119
      %p121 = scmp.ne.s32.totalorder %s112, %s113
      %p122 = scmp.eq.s32.totalorder %s25, 0
      %p123 = por %p121, %p122
      %p124 = scmp.ne.s32.totalorder %s112, %s113
      %p125 = scmp.eq.s32.totalorder %s26, 1
      %p126 = por %p124, %p125
      %p128 = scmp.ne.s32.totalorder %s113, %s127
      %p129 = scmp.eq.s32.totalorder %s26, 0
      %p130 = por %p128, %p129
      %s132 = sadd.s32 %s131, 1
      %p135 = scmp.eq.s32.totalorder %s20, 1
      %p136 = scmp.ne.s32.totalorder %s131, %s133
      %p137 = scmp.eq.s32.totalorder %s20, 0
      %p138 = por %p136, %p137
      %p139 = scmp.ne.s32.totalorder %s131, %s133
      %p140 = scmp.eq.s32.totalorder %s25, 1
      %p141 = por %p139, %p140
      %p142 = scmp.ne.s32.totalorder %s133, %s134
      %p143 = scmp.eq.s32.totalorder %s25, 0
      %p144 = por %p142, %p143
      %p145 = scmp.ne.s32.totalorder %s133, %s134
      %p146 = scmp.eq.s32.totalorder %s26, 1
      %p147 = por %p145, %p146
      %p149 = scmp.ne.s32.totalorder %s134, %s148
      %p150 = scmp.eq.s32.totalorder %s26, 0
      %p151 = por %p149, %p150
      %s153 = sadd.s32 %s152, 1
      %p156 = scmp.eq.s32.totalorder %s20, 1
      %p157 = scmp.ne.s32.totalorder %s152, %s154
      %p158 = scmp.eq.s32.totalorder %s20, 0
      %p159 = por %p157, %p158
      %p160 = scmp.ne.s32.totalorder %s152, %s154
      %p161 = scmp.eq.s32.totalorder %s25, 1
      %p162 = por %p160, %p161
      %p163 = scmp.ne.s32.totalorder %s154, %s155
      %p164 = scmp.eq.s32.totalorder %s25, 0
      %p165 = por %p163, %p164
      %p166 = scmp.ne.s32.totalorder %s154, %s155
      %p167 = scmp.eq.s32.totalorder %s26, 1
      %p168 = por %p166, %p167
      %p170 = scmp.ne.s32.totalorder %s155, %s169
      %p171 = scmp.eq.s32.totalorder %s26, 0
      %p172 = por %p170, %p171
      %s174 = sadd.s32 %s173, 1
      %p177 = scmp.eq.s32.totalorder %s20, 1
      %p178 = scmp.ne.s32.totalorder %s173, %s175
      %p179 = scmp.eq.s32.totalorder %s20, 0
      %p180 = por %p178, %p179
      %p181 = scmp.ne.s32.totalorder %s173, %s175
      %p182 = scmp.eq.s32.totalorder %s25, 1
      %p183 = por %p181, %p182
      %p184 = scmp.ne.s32.totalorder %s175, %s176
      %p185 = scmp.eq.s32.totalorder %s25, 0
      %p186 = por %p184, %p185
      %p187 = scmp.ne.s32.totalorder %s175, %s176
      %p188 = scmp.eq.s32.totalorder %s26, 1
      %p189 = por %p187, %p188
      %p191 = scmp.ne.s32.totalorder %s176, %s190
      %p192 = scmp.eq.s32.totalorder %s26, 0
      %p193 = por %p191, %p192
      %s194 = ssub.s32 %s27, %s39
      %p195 = scmp.eq.s32.totalorder %s194, 0
      %s197 = sadd.s32 %s196, 1
      %s198 = scalar_select %p195, %s196, %s197
      %p201 = pneg %p195
      %p202 = scmp.eq.s32.totalorder %s20, 1
      %p203 = por %p201, %p202
      %p204 = scmp.ne.s32.totalorder %s196, %s199
      %p205 = scmp.eq.s32.totalorder %s20, 0
      %p206 = por %p204, %p205
      %p207 = scmp.ne.s32.totalorder %s196, %s199
      %p208 = scmp.eq.s32.totalorder %s25, 1
      %p209 = por %p207, %p208
      %p210 = scmp.ne.s32.totalorder %s199, %s200
      %p211 = scmp.eq.s32.totalorder %s25, 0
      %p212 = por %p210, %p211
      %p213 = scmp.ne.s32.totalorder %s199, %s200
      %p214 = scmp.eq.s32.totalorder %s26, 1
      %p215 = por %p213, %p214
      %p217 = scmp.ne.s32.totalorder %s200, %s216
      %p218 = scmp.eq.s32.totalorder %s26, 0
      %p219 = por %p217, %p218
      %p220 = scmp.le.s32.totalorder 1, %s20
      %p221 = scmp.lt.s32.totalorder %s20, 3
      %p222 = pnand %p220, %p221
      %p223 = pneg %p222
      // Predicated region
      $region9: #{tpu_custom_call.1} parent=5 // pred_check
        _
      $region10: #{tpu_custom_call.1} parent=5 // pred_check_branch
        %225 = sbr.rel (%p222) target = $region12
      $region11: #{tpu_custom_call.1} parent=5 // pred_region
        %s226 = ssub.s32 %s20, 1
        // Predicated region
        $region13: #{tpu_custom_call.1} parent=11 // pred_check
          %p227 = pneg %p81
        $region14: #{tpu_custom_call.1} parent=11 // pred_check_branch
          %229 = sbr.rel (%p227) target = $region16
        $region15: #{tpu_custom_call.1} parent=11 // pred_region
          %231 = vsyncadd [#allocation8], 0
          %s232 = sshll.u32 %s1, 4
          %s233 = int_to_ptr.hbm [resolvable:$true] %s232
          %s234 = sshll.u32 [#allocation7], 4
          %s235 = int_to_ptr.vmem [resolvable:$true] %s234
          %240 = dma.hbm_to_vmem [thread:$0]  %s233, 1024, %s235, [#allocation8], 256, 256, 16
        $region16: #{tpu_custom_call.1} parent=11 // pred_fallthru
          _
        // Predicated region
        $region17: #{tpu_custom_call.1} parent=11 // pred_check
          %p241 = pneg %p102
        $region18: #{tpu_custom_call.1} parent=11 // pred_check_branch
          %243 = sbr.rel (%p241) target = $region20
        $region19: #{tpu_custom_call.1} parent=11 // pred_region
          %245 = vsyncadd [#allocation8], 0
          %s246 = sshll.u32 %s2, 4
          %s247 = int_to_ptr.hbm [resolvable:$true] %s246
          %s248 = sshll.u32 [#allocation9], 4
          %s249 = int_to_ptr.vmem [resolvable:$true] %s248
          %254 = dma.hbm_to_vmem [thread:$0]  %s247, 2048, %s249, [#allocation8], 512, 512, 32
        $region20: #{tpu_custom_call.1} parent=11 // pred_fallthru
          _
        // Predicated region
        $region21: #{tpu_custom_call.1} parent=11 // pred_check
          %p255 = pneg %p123
        $region22: #{tpu_custom_call.1} parent=11 // pred_check_branch
          %257 = sbr.rel (%p255) target = $region24
        $region23: #{tpu_custom_call.1} parent=11 // pred_region
          %259 = vsyncadd [#allocation11], 0
          %s260 = sshll.u32 %s3, 4
          %s261 = int_to_ptr.hbm [resolvable:$true] %s260
          %s262 = sshll.u32 [#allocation10], 4
          %s263 = int_to_ptr.vmem [resolvable:$true] %s262
          %268 = dma.hbm_to_vmem [thread:$0]  %s261, 3072, %s263, [#allocation11], 768, 768, 48
        $region24: #{tpu_custom_call.1} parent=11 // pred_fallthru
          _
        // Predicated region
        $region25: #{tpu_custom_call.1} parent=11 // pred_check
          %p269 = pneg %p144
        $region26: #{tpu_custom_call.1} parent=11 // pred_check_branch
          %271 = sbr.rel (%p269) target = $region28
        $region27: #{tpu_custom_call.1} parent=11 // pred_region
          %273 = vsyncadd [#allocation11], 0
          %s275 = sshll.u32 %s4, 4
          %s276 = int_to_ptr.hbm [resolvable:$true] %s275
          %s277 = sshll.u32 [#allocation12], 4
          %s278 = int_to_ptr.vmem [resolvable:$true] %s277
          %280 = dma.hbm_to_vmem [thread:$0]  %s276, 192, %s278, [#allocation11]
        $region28: #{tpu_custom_call.1} parent=11 // pred_fallthru
          _
        // Predicated region
        $region29: #{tpu_custom_call.1} parent=11 // pred_check
          %p281 = pneg %p165
        $region30: #{tpu_custom_call.1} parent=11 // pred_check_branch
          %283 = sbr.rel (%p281) target = $region32
        $region31: #{tpu_custom_call.1} parent=11 // pred_region
          %285 = vsyncadd [#allocation14], 0
          %s286 = sshll.u32 %s5, 4
          %s287 = int_to_ptr.hbm [resolvable:$true] %s286
          %s288 = sshll.u32 [#allocation13], 4
          %s289 = int_to_ptr.vmem [resolvable:$true] %s288
          %294 = dma.hbm_to_vmem [thread:$0]  %s287, 49152, %s289, [#allocation14], 256, 256, 16
        $region32: #{tpu_custom_call.1} parent=11 // pred_fallthru
          _
        // Predicated region
        $region33: #{tpu_custom_call.1} parent=11 // pred_check
          %p295 = pneg %p186
        $region34: #{tpu_custom_call.1} parent=11 // pred_check_branch
          %297 = sbr.rel (%p295) target = $region36
        $region35: #{tpu_custom_call.1} parent=11 // pred_region
          %299 = vsyncadd [#allocation14], 0
          %s301 = sshll.u32 %s6, 4
          %s302 = int_to_ptr.hbm [resolvable:$true] %s301
          %s303 = sshll.u32 [#allocation15], 4
          %s304 = int_to_ptr.vmem [resolvable:$true] %s303
          %306 = dma.hbm_to_vmem [thread:$0]  %s302, 32, %s304, [#allocation14]
        $region36: #{tpu_custom_call.1} parent=11 // pred_fallthru
          _
      $region12: #{tpu_custom_call.1} parent=5 // pred_fallthru
        _
      %p307 = scmp.lt.s32.totalorder %s20, 2
      // Predicated region
      $region37: #{tpu_custom_call.1} parent=5 // pred_check
        %p308 = pneg %p307
      $region38: #{tpu_custom_call.1} parent=5 // pred_check_branch
        %310 = sbr.rel (%p308) target = $region40
      $region39: #{tpu_custom_call.1} parent=5 // pred_region
        // Predicated region
        $region41: #{tpu_custom_call.1} parent=39 // pred_check
          %p311 = pneg %p54
        $region42: #{tpu_custom_call.1} parent=39 // pred_check_branch
          %313 = sbr.rel (%p311) target = $region44
        $region43: #{tpu_custom_call.1} parent=39 // pred_region
          %s314 = sand.u32 %s44, 1
          %s315 = scalar_lea.sflag [#allocation5], %s314
          %s316 = sand.u32 %s44, 1
          %s317 = smul.addr %s316, 16
          %s318 = scalar_lea.vmem [#allocation4], %s317
          %s319 = smul.u32 2, %s27
          %321 = vsyncadd %s315, 0
          %s322 = smul.addr %s319, 2
          %s323 = sadd.s32 %s28, %s322
          %s324 = smul.addr %s323, 8
          %s325 = scalar_lea.hbm %s0, %s324
          %s326 = sshll.u32 %s325, 4
          %s327 = int_to_ptr.hbm [resolvable:$true] %s326
          %s328 = sshll.u32 %s318, 4
          %s329 = int_to_ptr.vmem [resolvable:$true] %s328
          %334 = dma.hbm_to_vmem [thread:$0]  %s327, 256, %s329, %s315, 256, 128, 8
        $region44: #{tpu_custom_call.1} parent=39 // pred_fallthru
          _
      $region40: #{tpu_custom_call.1} parent=5 // pred_fallthru
        _
      %p335 = scmp.le.s32.totalorder 1, %s20
      %p336 = scmp.lt.s32.totalorder %s20, 3
      %p337 = pnand %p335, %p336
      %p338 = pneg %p337
      // Predicated region
      $region45: #{tpu_custom_call.1} parent=5 // pred_check
        _
      $region46: #{tpu_custom_call.1} parent=5 // pred_check_branch
        %340 = sbr.rel (%p337) target = $region48
      $region47: #{tpu_custom_call.1} parent=5 // pred_region
        %s341 = ssub.s32 %s20, 1
        %s342 = sand.u32 %s47, 1
        %s343 = scalar_lea.sflag [#allocation5], %s342
        %s344 = sand.u32 %s47, 1
        %s345 = smul.addr %s344, 16
        %s346 = scalar_lea.vmem [#allocation4], %s345
        // Predicated region
        $region49: #{tpu_custom_call.1} parent=47 // pred_check
          %p347 = pneg %p60
        $region50: #{tpu_custom_call.1} parent=47 // pred_check_branch
          %349 = sbr.rel (%p347) target = $region52
        $region51: #{tpu_custom_call.1} parent=47 // pred_region
          %351 = dma.done %s343, 256
        $region52: #{tpu_custom_call.1} parent=47 // pred_fallthru
          _
        // Predicated region
        $region53: #{tpu_custom_call.1} parent=47 // pred_check
          %p352 = pneg %p81
        $region54: #{tpu_custom_call.1} parent=47 // pred_check_branch
          %354 = sbr.rel (%p352) target = $region56
        $region55: #{tpu_custom_call.1} parent=47 // pred_region
          %356 = dma.done [#allocation8], 1024
        $region56: #{tpu_custom_call.1} parent=47 // pred_fallthru
          _
        // Predicated region
        $region57: #{tpu_custom_call.1} parent=47 // pred_check
          %p357 = pneg %p102
        $region58: #{tpu_custom_call.1} parent=47 // pred_check_branch
          %359 = sbr.rel (%p357) target = $region60
        $region59: #{tpu_custom_call.1} parent=47 // pred_region
          %361 = dma.done [#allocation8], 2048
        $region60: #{tpu_custom_call.1} parent=47 // pred_fallthru
          _
        // Predicated region
        $region61: #{tpu_custom_call.1} parent=47 // pred_check
          %p362 = pneg %p123
        $region62: #{tpu_custom_call.1} parent=47 // pred_check_branch
          %364 = sbr.rel (%p362) target = $region64
        $region63: #{tpu_custom_call.1} parent=47 // pred_region
          %366 = dma.done [#allocation11], 3072
        $region64: #{tpu_custom_call.1} parent=47 // pred_fallthru
          _
        // Predicated region
        $region65: #{tpu_custom_call.1} parent=47 // pred_check
          %p367 = pneg %p144
        $region66: #{tpu_custom_call.1} parent=47 // pred_check_branch
          %369 = sbr.rel (%p367) target = $region68
        $region67: #{tpu_custom_call.1} parent=47 // pred_region
          %371 = dma.done [#allocation11], 192
        $region68: #{tpu_custom_call.1} parent=47 // pred_fallthru
          _
        // Predicated region
        $region69: #{tpu_custom_call.1} parent=47 // pred_check
          %p372 = pneg %p165
        $region70: #{tpu_custom_call.1} parent=47 // pred_check_branch
          %374 = sbr.rel (%p372) target = $region72
        $region71: #{tpu_custom_call.1} parent=47 // pred_region
          %376 = dma.done [#allocation14], 49152
        $region72: #{tpu_custom_call.1} parent=47 // pred_fallthru
          _
        // Predicated region
        $region73: #{tpu_custom_call.1} parent=47 // pred_check
          %p377 = pneg %p186
        $region74: #{tpu_custom_call.1} parent=47 // pred_check_branch
          %379 = sbr.rel (%p377) target = $region76
        $region75: #{tpu_custom_call.1} parent=47 // pred_region
          %381 = dma.done [#allocation14], 32
        $region76: #{tpu_custom_call.1} parent=47 // pred_fallthru
          _
        %s382 = sand.u32 %s47, 1
        %s383 = scalar_lea.sflag [#allocation5], %s382
        %s384 = sand.u32 %s47, 1
        %s385 = smul.addr %s384, 16
        %s386 = scalar_lea.vmem [#allocation4], %s385
        %p387 = pneg %p60
        %p388 = pneg %p57
        %p389 = pneg %p81
        %p390 = pneg %p78
        %p391 = pneg %p102
        %p392 = pneg %p99
        %p393 = pneg %p123
        %p394 = pneg %p120
        %p395 = pneg %p144
        %p396 = pneg %p141
        %p397 = pneg %p165
        %p398 = pneg %p162
        %p399 = pneg %p186
        %p400 = pneg %p183
        %p401 = pneg %p212
        %p402 = pneg %p209
        %s403 = smul.u32 2, %s29
        %p405 = scmp.eq.s32.totalorder %s30, 0
        // Predicated region
        $region77: #{tpu_custom_call.1} parent=47 // pred_check
          %p406 = pneg %p405
        $region78: #{tpu_custom_call.1} parent=47 // pred_check_branch
          %408 = sbr.rel (%p406) target = $region80
        $region79: #{tpu_custom_call.1} parent=47 // pred_region
          %409 = vst [vmem:[#allocation2] sm:$0xff] -inf
          %410 = vst [vmem:[#allocation2 + $0x8] sm:$0xff] -inf
          %411 = vst [vmem:[#allocation2 + $0x10] sm:$0xff] -inf
          %412 = vst [vmem:[#allocation3] sm:$0xff] 0.0
          %413 = vst [vmem:[#allocation3 + $0x8] sm:$0xff] 0.0
          %414 = vst [vmem:[#allocation3 + $0x10] sm:$0xff] 0.0
          %415 = vst [vmem:[#allocation3 + $0x18] sm:$0xff] 0.0
        $region80: #{tpu_custom_call.1} parent=47 // pred_fallthru
          _
        %v416 = vld [vmem:[%s346] sm:$0xff]
        %v417 = vld [vmem:[%s346 + $0x8] sm:$0xff]
        %v418 = vpack.c.bf16 %v417, %v416
        %v419 = vlaneseq
        %v420 = vshrl.u32 %v419, 7
        %v421 = vld [vmem:[#allocation3] sm:$0xff]
        %v422 = vld [vmem:[#allocation3 + $0x8] sm:$0xff]
        %v423 = vld [vmem:[#allocation3 + $0x10] sm:$0xff]
        %v424 = vld [vmem:[#allocation3 + $0x18] sm:$0xff]
        %p425 = scmp.gt.s32.totalorder %s30, 0
        %v426 = vld [vmem:[#allocation7] sm:$0xff]
        %v427 = vld [vmem:[#allocation7 + $0x8] sm:$0xff]
        %v428 = vld [vmem:[#allocation7 + $0x10] sm:$0xff]
        %v429 = vld [vmem:[#allocation7 + $0x18] sm:$0xff]
        %v430 = vld [vmem:[#allocation7 + $0x20] sm:$0xff]
        %v431 = vld [vmem:[#allocation7 + $0x28] sm:$0xff]
        %v432 = vld [vmem:[#allocation7 + $0x30] sm:$0xff]
        %v433 = vld [vmem:[#allocation7 + $0x38] sm:$0xff]
        %v442 = vunpack.c.l.b16 %v426
        %v443 = vunpack.c.h.b16 %v426
        %v444 = vunpack.c.l.b16 %v427
        %v445 = vunpack.c.h.b16 %v427
        %v446 = vunpack.c.l.b16 %v428
        %v447 = vunpack.c.h.b16 %v428
        %v448 = vunpack.c.l.b16 %v429
        %v449 = vunpack.c.h.b16 %v429
        %v450 = vunpack.c.l.b16 %v430
        %v451 = vunpack.c.h.b16 %v430
        %v452 = vunpack.c.l.b16 %v431
        %v453 = vunpack.c.h.b16 %v431
        %v454 = vunpack.c.l.b16 %v432
        %v455 = vunpack.c.h.b16 %v432
        %v456 = vunpack.c.l.b16 %v433
        %v457 = vunpack.c.h.b16 %v433
        %v458 = vpack.c.b16 %v446, %v442
        %v459 = vpack.c.b16 %v447, %v443
        %v460 = vpack.c.b16 %v448, %v444
        %v461 = vpack.c.b16 %v449, %v445
        %v462 = vpack.c.b16 %v454, %v450
        %v463 = vpack.c.b16 %v455, %v451
        %v464 = vpack.c.b16 %v456, %v452
        %v465 = vpack.c.b16 %v457, %v453
        %vm474 = vcmask 261120
        %v476 = vsel %vm474, %v418, 0
        %478 = vmatpush.bf16.msra.mxu0 0
        %479 = vmatpush.bf16.msra.mxu0 0
        %480 = vmatpush.bf16.msra.mxu0 0
        %481 = vmatpush.bf16.msra.mxu0 0
        %482 = vmatpush.bf16.msra.mxu0 0
        %483 = vmatpush.bf16.msra.mxu0 0
        %484 = vmatpush.bf16.msra.mxu0 %v462
        %485 = vmatpush.bf16.msra.mxu0 %v458
        %486 = vmatmul.bf16.gmra.mxu0 %v476
        %v487 = vpop.f32.mrf.mxu0
        %v488 = vadd.f32 0.0, %v487
        %v489 = vpop.f32.mrf.mxu0
        %v490 = vadd.f32 0.0, %v489
        %491 = vdwg.mxu0
        %492 = vmatpush.bf16.msra.mxu0 0
        %493 = vmatpush.bf16.msra.mxu0 0
        %494 = vmatpush.bf16.msra.mxu0 0
        %495 = vmatpush.bf16.msra.mxu0 0
        %496 = vmatpush.bf16.msra.mxu0 0
        %497 = vmatpush.bf16.msra.mxu0 0
        %498 = vmatpush.bf16.msra.mxu0 %v463
        %499 = vmatpush.bf16.msra.mxu0 %v459
        %500 = vmatmul.bf16.gmra.mxu0 %v476
        %v501 = vpop.f32.mrf.mxu0
        %v502 = vadd.f32 0.0, %v501
        %v503 = vpop.f32.mrf.mxu0
        %v504 = vadd.f32 0.0, %v503
        %505 = vdwg.mxu0
        %506 = vmatpush.bf16.msra.mxu0 0
        %507 = vmatpush.bf16.msra.mxu0 0
        %508 = vmatpush.bf16.msra.mxu0 0
        %509 = vmatpush.bf16.msra.mxu0 0
        %510 = vmatpush.bf16.msra.mxu0 0
        %511 = vmatpush.bf16.msra.mxu0 0
        %512 = vmatpush.bf16.msra.mxu0 %v464
        %513 = vmatpush.bf16.msra.mxu0 %v460
        %514 = vmatmul.bf16.gmra.mxu0 %v476
        %v515 = vpop.f32.mrf.mxu0
        %v516 = vadd.f32 0.0, %v515
        %v517 = vpop.f32.mrf.mxu0
        %v518 = vadd.f32 0.0, %v517
        %519 = vdwg.mxu0
        %520 = vmatpush.bf16.msra.mxu0 0
        %521 = vmatpush.bf16.msra.mxu0 0
        %522 = vmatpush.bf16.msra.mxu0 0
        %523 = vmatpush.bf16.msra.mxu0 0
        %524 = vmatpush.bf16.msra.mxu0 0
        %525 = vmatpush.bf16.msra.mxu0 0
        %526 = vmatpush.bf16.msra.mxu0 %v465
        %527 = vmatpush.bf16.msra.mxu0 %v461
        %528 = vmatmul.bf16.gmra.mxu0 %v476
        %v529 = vpop.f32.mrf.mxu0
        %v530 = vadd.f32 0.0, %v529
        %v531 = vpop.f32.mrf.mxu0
        %v532 = vadd.f32 0.0, %v531
        %533 = vdwg.mxu0
        %v534 = vrot.slane %v488, 4
        %v535 = vmax.f32 %v488, %v534
        %v536 = vrot.slane %v535, 2
        %v537 = vmax.f32 %v535, %v536
        %v538 = vrot.slane %v537, 1
        %v539 = vmax.f32 %v537, %v538
        %v540 = vrot.slane %v502, 4
        %v541 = vmax.f32 %v502, %v540
        %v542 = vrot.slane %v541, 2
        %v543 = vmax.f32 %v541, %v542
        %v544 = vrot.slane %v543, 1
        %v545 = vmax.f32 %v543, %v544
        %v546 = vrot.slane %v516, 4
        %v547 = vmax.f32 %v516, %v546
        %v548 = vrot.slane %v547, 2
        %v549 = vmax.f32 %v547, %v548
        %v550 = vrot.slane %v549, 1
        %v551 = vmax.f32 %v549, %v550
        %v552 = vrot.slane %v530, 4
        %v553 = vmax.f32 %v530, %v552
        %v554 = vrot.slane %v553, 2
        %v555 = vmax.f32 %v553, %v554
        %v556 = vrot.slane %v555, 1
        %v557 = vmax.f32 %v555, %v556
        %v558 = vrot.slane %v490, 4
        %v559 = vmax.f32 %v490, %v558
        %v560 = vrot.slane %v559, 2
        %v561 = vmax.f32 %v559, %v560
        %v562 = vrot.slane %v561, 1
        %v563 = vmax.f32 %v561, %v562
        %v564 = vrot.slane %v504, 4
        %v565 = vmax.f32 %v504, %v564
        %v566 = vrot.slane %v565, 2
        %v567 = vmax.f32 %v565, %v566
        %v568 = vrot.slane %v567, 1
        %v569 = vmax.f32 %v567, %v568
        %v570 = vrot.slane %v518, 4
        %v571 = vmax.f32 %v518, %v570
        %v572 = vrot.slane %v571, 2
        %v573 = vmax.f32 %v571, %v572
        %v574 = vrot.slane %v573, 1
        %v575 = vmax.f32 %v573, %v574
        %v576 = vrot.slane %v532, 4
        %v577 = vmax.f32 %v532, %v576
        %v578 = vrot.slane %v577, 2
        %v579 = vmax.f32 %v577, %v578
        %v580 = vrot.slane %v579, 1
        %v581 = vmax.f32 %v579, %v580
        %v582 = vld [vmem:[#allocation9] sm:$0xff]
        %v583 = vld [vmem:[#allocation9 + $0x8] sm:$0xff]
        %v584 = vld [vmem:[#allocation9 + $0x10] sm:$0xff]
        %v585 = vld [vmem:[#allocation9 + $0x18] sm:$0xff]
        %v586 = vld [vmem:[#allocation9 + $0x20] sm:$0xff]
        %v587 = vld [vmem:[#allocation9 + $0x28] sm:$0xff]
        %v588 = vld [vmem:[#allocation9 + $0x30] sm:$0xff]
        %v589 = vld [vmem:[#allocation9 + $0x38] sm:$0xff]
        %v590 = vld [vmem:[#allocation9 + $0x40] sm:$0xff]
        %v591 = vld [vmem:[#allocation9 + $0x48] sm:$0xff]
        %v592 = vld [vmem:[#allocation9 + $0x50] sm:$0xff]
        %v593 = vld [vmem:[#allocation9 + $0x58] sm:$0xff]
        %v594 = vld [vmem:[#allocation9 + $0x60] sm:$0xff]
        %v595 = vld [vmem:[#allocation9 + $0x68] sm:$0xff]
        %v596 = vld [vmem:[#allocation9 + $0x70] sm:$0xff]
        %v597 = vld [vmem:[#allocation9 + $0x78] sm:$0xff]
        %v614 = vunpack.c.l.b16 %v582
        %v615 = vunpack.c.h.b16 %v582
        %v616 = vunpack.c.l.b16 %v583
        %v617 = vunpack.c.h.b16 %v583
        %v618 = vunpack.c.l.b16 %v584
        %v619 = vunpack.c.h.b16 %v584
        %v620 = vunpack.c.l.b16 %v585
        %v621 = vunpack.c.h.b16 %v585
        %v622 = vunpack.c.l.b16 %v586
        %v623 = vunpack.c.h.b16 %v586
        %v624 = vunpack.c.l.b16 %v587
        %v625 = vunpack.c.h.b16 %v587
        %v626 = vunpack.c.l.b16 %v588
        %v627 = vunpack.c.h.b16 %v588
        %v628 = vunpack.c.l.b16 %v589
        %v629 = vunpack.c.h.b16 %v589
        %v630 = vunpack.c.l.b16 %v590
        %v631 = vunpack.c.h.b16 %v590
        %v632 = vunpack.c.l.b16 %v591
        %v633 = vunpack.c.h.b16 %v591
        %v634 = vunpack.c.l.b16 %v592
        %v635 = vunpack.c.h.b16 %v592
        %v636 = vunpack.c.l.b16 %v593
        %v637 = vunpack.c.h.b16 %v593
        %v638 = vunpack.c.l.b16 %v594
        %v639 = vunpack.c.h.b16 %v594
        %v640 = vunpack.c.l.b16 %v595
        %v641 = vunpack.c.h.b16 %v595
        %v642 = vunpack.c.l.b16 %v596
        %v643 = vunpack.c.h.b16 %v596
        %v644 = vunpack.c.l.b16 %v597
        %v645 = vunpack.c.h.b16 %v597
        %v646 = vpack.c.b16 %v622, %v614
        %v647 = vpack.c.b16 %v623, %v615
        %v648 = vpack.c.b16 %v624, %v616
        %v649 = vpack.c.b16 %v625, %v617
        %v650 = vpack.c.b16 %v626, %v618
        %v651 = vpack.c.b16 %v627, %v619
        %v652 = vpack.c.b16 %v628, %v620
        %v653 = vpack.c.b16 %v629, %v621
        %v654 = vpack.c.b16 %v638, %v630
        %v655 = vpack.c.b16 %v639, %v631
        %v656 = vpack.c.b16 %v640, %v632
        %v657 = vpack.c.b16 %v641, %v633
        %v658 = vpack.c.b16 %v642, %v634
        %v659 = vpack.c.b16 %v643, %v635
        %v660 = vpack.c.b16 %v644, %v636
        %v661 = vpack.c.b16 %v645, %v637
        %678 = vmatpush.bf16.msra.mxu0 0
        %679 = vmatpush.bf16.msra.mxu0 0
        %680 = vmatpush.bf16.msra.mxu0 0
        %681 = vmatpush.bf16.msra.mxu0 0
        %682 = vmatpush.bf16.msra.mxu0 0
        %683 = vmatpush.bf16.msra.mxu0 0
        %684 = vmatpush.bf16.msra.mxu0 %v654
        %685 = vmatpush.bf16.msra.mxu0 %v646
        %686 = vmatmul.bf16.gmra.mxu0 %v476
        %v687 = vpop.f32.mrf.mxu0
        %v688 = vadd.f32 0.0, %v687
        %v689 = vpop.f32.mrf.mxu0
        %v690 = vadd.f32 0.0, %v689
        %691 = vdwg.mxu0
        %692 = vmatpush.bf16.msra.mxu0 0
        %693 = vmatpush.bf16.msra.mxu0 0
        %694 = vmatpush.bf16.msra.mxu0 0
        %695 = vmatpush.bf16.msra.mxu0 0
        %696 = vmatpush.bf16.msra.mxu0 0
        %697 = vmatpush.bf16.msra.mxu0 0
        %698 = vmatpush.bf16.msra.mxu0 %v655
        %699 = vmatpush.bf16.msra.mxu0 %v647
        %700 = vmatmul.bf16.gmra.mxu0 %v476
        %v701 = vpop.f32.mrf.mxu0
        %v702 = vadd.f32 0.0, %v701
        %v703 = vpop.f32.mrf.mxu0
        %v704 = vadd.f32 0.0, %v703
        %705 = vdwg.mxu0
        %706 = vmatpush.bf16.msra.mxu0 0
        %707 = vmatpush.bf16.msra.mxu0 0
        %708 = vmatpush.bf16.msra.mxu0 0
        %709 = vmatpush.bf16.msra.mxu0 0
        %710 = vmatpush.bf16.msra.mxu0 0
        %711 = vmatpush.bf16.msra.mxu0 0
        %712 = vmatpush.bf16.msra.mxu0 %v656
        %713 = vmatpush.bf16.msra.mxu0 %v648
        %714 = vmatmul.bf16.gmra.mxu0 %v476
        %v715 = vpop.f32.mrf.mxu0
        %v716 = vadd.f32 0.0, %v715
        %v717 = vpop.f32.mrf.mxu0
        %v718 = vadd.f32 0.0, %v717
        %719 = vdwg.mxu0
        %720 = vmatpush.bf16.msra.mxu0 0
        %721 = vmatpush.bf16.msra.mxu0 0
        %722 = vmatpush.bf16.msra.mxu0 0
        %723 = vmatpush.bf16.msra.mxu0 0
        %724 = vmatpush.bf16.msra.mxu0 0
        %725 = vmatpush.bf16.msra.mxu0 0
        %726 = vmatpush.bf16.msra.mxu0 %v657
        %727 = vmatpush.bf16.msra.mxu0 %v649
        %728 = vmatmul.bf16.gmra.mxu0 %v476
        %v729 = vpop.f32.mrf.mxu0
        %v730 = vadd.f32 0.0, %v729
        %v731 = vpop.f32.mrf.mxu0
        %v732 = vadd.f32 0.0, %v731
        %733 = vdwg.mxu0
        %734 = vmatpush.bf16.msra.mxu0 0
        %735 = vmatpush.bf16.msra.mxu0 0
        %736 = vmatpush.bf16.msra.mxu0 0
        %737 = vmatpush.bf16.msra.mxu0 0
        %738 = vmatpush.bf16.msra.mxu0 0
        %739 = vmatpush.bf16.msra.mxu0 0
        %740 = vmatpush.bf16.msra.mxu0 %v658
        %741 = vmatpush.bf16.msra.mxu0 %v650
        %742 = vmatmul.bf16.gmra.mxu0 %v476
        %v743 = vpop.f32.mrf.mxu0
        %v744 = vadd.f32 0.0, %v743
        %v745 = vpop.f32.mrf.mxu0
        %v746 = vadd.f32 0.0, %v745
        %747 = vdwg.mxu0
        %748 = vmatpush.bf16.msra.mxu0 0
        %749 = vmatpush.bf16.msra.mxu0 0
        %750 = vmatpush.bf16.msra.mxu0 0
        %751 = vmatpush.bf16.msra.mxu0 0
        %752 = vmatpush.bf16.msra.mxu0 0
        %753 = vmatpush.bf16.msra.mxu0 0
        %754 = vmatpush.bf16.msra.mxu0 %v659
        %755 = vmatpush.bf16.msra.mxu0 %v651
        %756 = vmatmul.bf16.gmra.mxu0 %v476
        %v757 = vpop.f32.mrf.mxu0
        %v758 = vadd.f32 0.0, %v757
        %v759 = vpop.f32.mrf.mxu0
        %v760 = vadd.f32 0.0, %v759
        %761 = vdwg.mxu0
        %762 = vmatpush.bf16.msra.mxu0 0
        %763 = vmatpush.bf16.msra.mxu0 0
        %764 = vmatpush.bf16.msra.mxu0 0
        %765 = vmatpush.bf16.msra.mxu0 0
        %766 = vmatpush.bf16.msra.mxu0 0
        %767 = vmatpush.bf16.msra.mxu0 0
        %768 = vmatpush.bf16.msra.mxu0 %v660
        %769 = vmatpush.bf16.msra.mxu0 %v652
        %770 = vmatmul.bf16.gmra.mxu0 %v476
        %v771 = vpop.f32.mrf.mxu0
        %v772 = vadd.f32 0.0, %v771
        %v773 = vpop.f32.mrf.mxu0
        %v774 = vadd.f32 0.0, %v773
        %775 = vdwg.mxu0
        %776 = vmatpush.bf16.msra.mxu0 0
        %777 = vmatpush.bf16.msra.mxu0 0
        %778 = vmatpush.bf16.msra.mxu0 0
        %779 = vmatpush.bf16.msra.mxu0 0
        %780 = vmatpush.bf16.msra.mxu0 0
        %781 = vmatpush.bf16.msra.mxu0 0
        %782 = vmatpush.bf16.msra.mxu0 %v661
        %783 = vmatpush.bf16.msra.mxu0 %v653
        %784 = vmatmul.bf16.gmra.mxu0 %v476
        %v785 = vpop.f32.mrf.mxu0
        %v786 = vadd.f32 0.0, %v785
        %v787 = vpop.f32.mrf.mxu0
        %v788 = vadd.f32 0.0, %v787
        %789 = vdwg.mxu0
        %v790 = vrot.slane %v744, 1
        %v791 = vrot.slane %v758, 1
        %v792 = vrot.slane %v772, 1
        %v793 = vrot.slane %v786, 1
        %v794 = vrot.slane %v746, 1
        %v795 = vrot.slane %v760, 1
        %v796 = vrot.slane %v774, 1
        %v797 = vrot.slane %v788, 1
        %vm798 = vcmp.lt.s32.totalorder %v420, 7
        %v799 = vsel %vm798, %v790, %v794
        %v800 = vsel %vm798, %v791, %v795
        %v801 = vsel %vm798, %v792, %v796
        %v802 = vsel %vm798, %v793, %v797
        %v803 = vsel %vm798, %v794, %v790
        %v804 = vsel %vm798, %v795, %v791
        %v805 = vsel %vm798, %v796, %v792
        %v806 = vsel %vm798, %v797, %v793
        %v807 = vadd.f32 %v688, %v799
        %v808 = vadd.f32 %v702, %v800
        %v809 = vadd.f32 %v716, %v801
        %v810 = vadd.f32 %v730, %v802
        %v811 = vadd.f32 %v690, %v803
        %v812 = vadd.f32 %v704, %v804
        %v813 = vadd.f32 %v718, %v805
        %v814 = vadd.f32 %v732, %v806
        %v815 = vsel %vm798, 1, 0
        %vm816 = vcmp.eq.s32.totalorder %v815, 1
        %v817 = vsel %vm816, %v807, -inf
        %v818 = vsel %vm816, %v808, -inf
        %v819 = vsel %vm816, %v809, -inf
        %v820 = vsel %vm816, %v810, -inf
        %v821 = vsel %vm816, %v811, -inf
        %v822 = vsel %vm816, %v812, -inf
        %v823 = vsel %vm816, %v813, -inf
        %v824 = vsel %vm816, %v814, -inf
        %v825 = vrot.slane %v817, 4
        %v826 = vmax.f32 %v817, %v825
        %v827 = vrot.slane %v826, 2
        %v828 = vmax.f32 %v826, %v827
        %v829 = vrot.slane %v828, 1
        %v830 = vmax.f32 %v828, %v829
        %v831 = vrot.slane %v818, 4
        %v832 = vmax.f32 %v818, %v831
        %v833 = vrot.slane %v832, 2
        %v834 = vmax.f32 %v832, %v833
        %v835 = vrot.slane %v834, 1
        %v836 = vmax.f32 %v834, %v835
        %v837 = vrot.slane %v819, 4
        %v838 = vmax.f32 %v819, %v837
        %v839 = vrot.slane %v838, 2
        %v840 = vmax.f32 %v838, %v839
        %v841 = vrot.slane %v840, 1
        %v842 = vmax.f32 %v840, %v841
        %v843 = vrot.slane %v820, 4
        %v844 = vmax.f32 %v820, %v843
        %v845 = vrot.slane %v844, 2
        %v846 = vmax.f32 %v844, %v845
        %v847 = vrot.slane %v846, 1
        %v848 = vmax.f32 %v846, %v847
        %v849 = vrot.slane %v821, 4
        %v850 = vmax.f32 %v821, %v849
        %v851 = vrot.slane %v850, 2
        %v852 = vmax.f32 %v850, %v851
        %v853 = vrot.slane %v852, 1
        %v854 = vmax.f32 %v852, %v853
        %v855 = vrot.slane %v822, 4
        %v856 = vmax.f32 %v822, %v855
        %v857 = vrot.slane %v856, 2
        %v858 = vmax.f32 %v856, %v857
        %v859 = vrot.slane %v858, 1
        %v860 = vmax.f32 %v858, %v859
        %v861 = vrot.slane %v823, 4
        %v862 = vmax.f32 %v823, %v861
        %v863 = vrot.slane %v862, 2
        %v864 = vmax.f32 %v862, %v863
        %v865 = vrot.slane %v864, 1
        %v866 = vmax.f32 %v864, %v865
        %v867 = vrot.slane %v824, 4
        %v868 = vmax.f32 %v824, %v867
        %v869 = vrot.slane %v868, 2
        %v870 = vmax.f32 %v868, %v869
        %v871 = vrot.slane %v870, 1
        %v872 = vmax.f32 %v870, %v871
        %v881 = vrot.slane %v758, 6
        %v882 = vrot.slane %v772, 4
        %v883 = vrot.slane %v786, 2
        %v884 = vrot.slane %v760, 6
        %v885 = vrot.slane %v774, 4
        %v886 = vrot.slane %v788, 2
        %vm887 = vcmask 1041408
        %v888 = vsel %vm887, %v744, %v881
        %vm889 = vcmask 1045508
        %v890 = vsel %vm889, %v882, %v883
        %vm891 = vcmask 1043456
        %v892 = vsel %vm891, %v888, %v890
        %v893 = vsel %vm887, %v746, %v884
        %v894 = vsel %vm889, %v885, %v886
        %v895 = vsel %vm891, %v893, %v894
        %vm896 = vcmask 1042434
        %vm897 = vcmask 1044484
        %v898 = vsel %vm897, %v892, %v892
        %vm899 = vcmask 1046534
        %v900 = vsel %vm899, %v892, %v898
        %v901 = vrot.slane %v895, 7
        %vm902 = vcmask 1041409
        %v903 = vsel %vm902, %v901, %v900
        %vm904 = vcmask 1043459
        %v905 = vsel %vm904, %v901, %v903
        %vm906 = vcmask 1045509
        %v907 = vsel %vm906, %v901, %v905
        %vm908 = vcmask 1047559
        %v909 = vsel %vm908, %v901, %v907
        %v911 = vadd.f32 %v421, %v909
        %s912 = scalar_select %p425, 1, 0
        %v913 = vstv %s912
        %vm914 = vcmp.eq.s32.totalorder %v913, 1
        %v915 = vsel %vm914, %v911, -inf
        %917 = vst [vmem:[#allocation1] ss:$4 sm:$0xff] %v915
        %v918 = vld.sshfl [vmem:[#allocation1] sm:$0xff pattern:$0x73625140]
        %v919 = vld.sshfl [vmem:[#allocation1 + $0x8] sm:$0xff pattern:$0x73625140]
        %v920 = vld.sshfl [vmem:[#allocation1 + $0x10] sm:$0xff pattern:$0x73625140]
        %v921 = vld.sshfl [vmem:[#allocation1 + $0x18] sm:$0xff pattern:$0x73625140]
        %v922 = vrot.slane %v918, 1
        %v923 = vrot.slane %v919, 1
        %v924 = vrot.slane %v920, 1
        %v925 = vrot.slane %v921, 1
        %v934 = vmax.f32 %v830, %v918
        %v935 = vmax.f32 %v836, %v919
        %v936 = vmax.f32 %v842, %v920
        %v937 = vmax.f32 %v848, %v921
        %v938 = vmax.f32 %v854, %v922
        %v939 = vmax.f32 %v860, %v923
        %v940 = vmax.f32 %v866, %v924
        %v941 = vmax.f32 %v872, %v925
        %v942 = vld [vmem:[#allocation10] sm:$0xff]
        %v943 = vld [vmem:[#allocation10 + $0x8] sm:$0xff]
        %v944 = vld [vmem:[#allocation10 + $0x10] sm:$0xff]
        %v945 = vld [vmem:[#allocation10 + $0x18] sm:$0xff]
        %v946 = vld [vmem:[#allocation10 + $0x20] sm:$0xff]
        %v947 = vld [vmem:[#allocation10 + $0x28] sm:$0xff]
        %v948 = vld [vmem:[#allocation10 + $0x30] sm:$0xff]
        %v949 = vld [vmem:[#allocation10 + $0x38] sm:$0xff]
        %v950 = vld [vmem:[#allocation10 + $0x40] sm:$0xff]
        %v951 = vld [vmem:[#allocation10 + $0x48] sm:$0xff]
        %v952 = vld [vmem:[#allocation10 + $0x50] sm:$0xff]
        %v953 = vld [vmem:[#allocation10 + $0x58] sm:$0xff]
        %v954 = vld [vmem:[#allocation10 + $0x60] sm:$0xff]
        %v955 = vld [vmem:[#allocation10 + $0x68] sm:$0xff]
        %v956 = vld [vmem:[#allocation10 + $0x70] sm:$0xff]
        %v957 = vld [vmem:[#allocation10 + $0x78] sm:$0xff]
        %v958 = vld [vmem:[#allocation10 + $0x80] sm:$0xff]
        %v959 = vld [vmem:[#allocation10 + $0x88] sm:$0xff]
        %v960 = vld [vmem:[#allocation10 + $0x90] sm:$0xff]
        %v961 = vld [vmem:[#allocation10 + $0x98] sm:$0xff]
        %v962 = vld [vmem:[#allocation10 + $0xa0] sm:$0xff]
        %v963 = vld [vmem:[#allocation10 + $0xa8] sm:$0xff]
        %v964 = vld [vmem:[#allocation10 + $0xb0] sm:$0xff]
        %v965 = vld [vmem:[#allocation10 + $0xb8] sm:$0xff]
        %v990 = vunpack.c.l.b16 %v942
        %v991 = vunpack.c.h.b16 %v942
        %v992 = vunpack.c.l.b16 %v943
        %v993 = vunpack.c.h.b16 %v943
        %v994 = vunpack.c.l.b16 %v944
        %v995 = vunpack.c.h.b16 %v944
        %v996 = vunpack.c.l.b16 %v945
        %v997 = vunpack.c.h.b16 %v945
        %v998 = vunpack.c.l.b16 %v946
        %v999 = vunpack.c.h.b16 %v946
        %v1000 = vunpack.c.l.b16 %v947
        %v1001 = vunpack.c.h.b16 %v947
        %v1002 = vunpack.c.l.b16 %v948
        %v1003 = vunpack.c.h.b16 %v948
        %v1004 = vunpack.c.l.b16 %v949
        %v1005 = vunpack.c.h.b16 %v949
        %v1006 = vunpack.c.l.b16 %v950
        %v1007 = vunpack.c.h.b16 %v950
        %v1008 = vunpack.c.l.b16 %v951
        %v1009 = vunpack.c.h.b16 %v951
        %v1010 = vunpack.c.l.b16 %v952
        %v1011 = vunpack.c.h.b16 %v952
        %v1012 = vunpack.c.l.b16 %v953
        %v1013 = vunpack.c.h.b16 %v953
        %v1014 = vunpack.c.l.b16 %v954
        %v1015 = vunpack.c.h.b16 %v954
        %v1016 = vunpack.c.l.b16 %v955
        %v1017 = vunpack.c.h.b16 %v955
        %v1018 = vunpack.c.l.b16 %v956
        %v1019 = vunpack.c.h.b16 %v956
        %v1020 = vunpack.c.l.b16 %v957
        %v1021 = vunpack.c.h.b16 %v957
        %v1022 = vunpack.c.l.b16 %v958
        %v1023 = vunpack.c.h.b16 %v958
        %v1024 = vunpack.c.l.b16 %v959
        %v1025 = vunpack.c.h.b16 %v959
        %v1026 = vunpack.c.l.b16 %v960
        %v1027 = vunpack.c.h.b16 %v960
        %v1028 = vunpack.c.l.b16 %v961
        %v1029 = vunpack.c.h.b16 %v961
        %v1030 = vunpack.c.l.b16 %v962
        %v1031 = vunpack.c.h.b16 %v962
        %v1032 = vunpack.c.l.b16 %v963
        %v1033 = vunpack.c.h.b16 %v963
        %v1034 = vunpack.c.l.b16 %v964
        %v1035 = vunpack.c.h.b16 %v964
        %v1036 = vunpack.c.l.b16 %v965
        %v1037 = vunpack.c.h.b16 %v965
        %v1038 = vpack.c.b16 %v1002, %v990
        %v1039 = vpack.c.b16 %v1003, %v991
        %v1040 = vpack.c.b16 %v1004, %v992
        %v1041 = vpack.c.b16 %v1005, %v993
        %v1042 = vpack.c.b16 %v1006, %v994
        %v1043 = vpack.c.b16 %v1007, %v995
        %v1044 = vpack.c.b16 %v1008, %v996
        %v1045 = vpack.c.b16 %v1009, %v997
        %v1046 = vpack.c.b16 %v1010, %v998
        %v1047 = vpack.c.b16 %v1011, %v999
        %v1048 = vpack.c.b16 %v1012, %v1000
        %v1049 = vpack.c.b16 %v1013, %v1001
        %v1050 = vpack.c.b16 %v1026, %v1014
        %v1051 = vpack.c.b16 %v1027, %v1015
        %v1052 = vpack.c.b16 %v1028, %v1016
        %v1053 = vpack.c.b16 %v1029, %v1017
        %v1054 = vpack.c.b16 %v1030, %v1018
        %v1055 = vpack.c.b16 %v1031, %v1019
        %v1056 = vpack.c.b16 %v1032, %v1020
        %v1057 = vpack.c.b16 %v1033, %v1021
        %v1058 = vpack.c.b16 %v1034, %v1022
        %v1059 = vpack.c.b16 %v1035, %v1023
        %v1060 = vpack.c.b16 %v1036, %v1024
        %v1061 = vpack.c.b16 %v1037, %v1025
        %1086 = vmatpush.bf16.msra.mxu0 0
        %1087 = vmatpush.bf16.msra.mxu0 0
        %1088 = vmatpush.bf16.msra.mxu0 0
        %1089 = vmatpush.bf16.msra.mxu0 0
        %1090 = vmatpush.bf16.msra.mxu0 0
        %1091 = vmatpush.bf16.msra.mxu0 0
        %1092 = vmatpush.bf16.msra.mxu0 %v1050
        %1093 = vmatpush.bf16.msra.mxu0 %v1038
        %1094 = vmatmul.bf16.gmra.mxu0 %v476
        %v1095 = vpop.f32.mrf.mxu0
        %v1096 = vadd.f32 0.0, %v1095
        %v1097 = vpop.f32.mrf.mxu0
        %v1098 = vadd.f32 0.0, %v1097
        %1099 = vdwg.mxu0
        %1100 = vmatpush.bf16.msra.mxu0 0
        %1101 = vmatpush.bf16.msra.mxu0 0
        %1102 = vmatpush.bf16.msra.mxu0 0
        %1103 = vmatpush.bf16.msra.mxu0 0
        %1104 = vmatpush.bf16.msra.mxu0 0
        %1105 = vmatpush.bf16.msra.mxu0 0
        %1106 = vmatpush.bf16.msra.mxu0 %v1051
        %1107 = vmatpush.bf16.msra.mxu0 %v1039
        %1108 = vmatmul.bf16.gmra.mxu0 %v476
        %v1109 = vpop.f32.mrf.mxu0
        %v1110 = vadd.f32 0.0, %v1109
        %v1111 = vpop.f32.mrf.mxu0
        %v1112 = vadd.f32 0.0, %v1111
        %1113 = vdwg.mxu0
        %1114 = vmatpush.bf16.msra.mxu0 0
        %1115 = vmatpush.bf16.msra.mxu0 0
        %1116 = vmatpush.bf16.msra.mxu0 0
        %1117 = vmatpush.bf16.msra.mxu0 0
        %1118 = vmatpush.bf16.msra.mxu0 0
        %1119 = vmatpush.bf16.msra.mxu0 0
        %1120 = vmatpush.bf16.msra.mxu0 %v1052
        %1121 = vmatpush.bf16.msra.mxu0 %v1040
        %1122 = vmatmul.bf16.gmra.mxu0 %v476
        %v1123 = vpop.f32.mrf.mxu0
        %v1124 = vadd.f32 0.0, %v1123
        %v1125 = vpop.f32.mrf.mxu0
        %v1126 = vadd.f32 0.0, %v1125
        %1127 = vdwg.mxu0
        %1128 = vmatpush.bf16.msra.mxu0 0
        %1129 = vmatpush.bf16.msra.mxu0 0
        %1130 = vmatpush.bf16.msra.mxu0 0
        %1131 = vmatpush.bf16.msra.mxu0 0
        %1132 = vmatpush.bf16.msra.mxu0 0
        %1133 = vmatpush.bf16.msra.mxu0 0
        %1134 = vmatpush.bf16.msra.mxu0 %v1053
        %1135 = vmatpush.bf16.msra.mxu0 %v1041
        %1136 = vmatmul.bf16.gmra.mxu0 %v476
        %v1137 = vpop.f32.mrf.mxu0
        %v1138 = vadd.f32 0.0, %v1137
        %v1139 = vpop.f32.mrf.mxu0
        %v1140 = vadd.f32 0.0, %v1139
        %1141 = vdwg.mxu0
        %1142 = vmatpush.bf16.msra.mxu0 0
        %1143 = vmatpush.bf16.msra.mxu0 0
        %1144 = vmatpush.bf16.msra.mxu0 0
        %1145 = vmatpush.bf16.msra.mxu0 0
        %1146 = vmatpush.bf16.msra.mxu0 0
        %1147 = vmatpush.bf16.msra.mxu0 0
        %1148 = vmatpush.bf16.msra.mxu0 %v1054
        %1149 = vmatpush.bf16.msra.mxu0 %v1042
        %1150 = vmatmul.bf16.gmra.mxu0 %v476
        %v1151 = vpop.f32.mrf.mxu0
        %v1152 = vadd.f32 0.0, %v1151
        %v1153 = vpop.f32.mrf.mxu0
        %v1154 = vadd.f32 0.0, %v1153
        %1155 = vdwg.mxu0
        %1156 = vmatpush.bf16.msra.mxu0 0
        %1157 = vmatpush.bf16.msra.mxu0 0
        %1158 = vmatpush.bf16.msra.mxu0 0
        %1159 = vmatpush.bf16.msra.mxu0 0
        %1160 = vmatpush.bf16.msra.mxu0 0
        %1161 = vmatpush.bf16.msra.mxu0 0
        %1162 = vmatpush.bf16.msra.mxu0 %v1055
        %1163 = vmatpush.bf16.msra.mxu0 %v1043
        %1164 = vmatmul.bf16.gmra.mxu0 %v476
        %v1165 = vpop.f32.mrf.mxu0
        %v1166 = vadd.f32 0.0, %v1165
        %v1167 = vpop.f32.mrf.mxu0
        %v1168 = vadd.f32 0.0, %v1167
        %1169 = vdwg.mxu0
        %1170 = vmatpush.bf16.msra.mxu0 0
        %1171 = vmatpush.bf16.msra.mxu0 0
        %1172 = vmatpush.bf16.msra.mxu0 0
        %1173 = vmatpush.bf16.msra.mxu0 0
        %1174 = vmatpush.bf16.msra.mxu0 0
        %1175 = vmatpush.bf16.msra.mxu0 0
        %1176 = vmatpush.bf16.msra.mxu0 %v1056
        %1177 = vmatpush.bf16.msra.mxu0 %v1044
        %1178 = vmatmul.bf16.gmra.mxu0 %v476
        %v1179 = vpop.f32.mrf.mxu0
        %v1180 = vadd.f32 0.0, %v1179
        %v1181 = vpop.f32.mrf.mxu0
        %v1182 = vadd.f32 0.0, %v1181
        %1183 = vdwg.mxu0
        %1184 = vmatpush.bf16.msra.mxu0 0
        %1185 = vmatpush.bf16.msra.mxu0 0
        %1186 = vmatpush.bf16.msra.mxu0 0
        %1187 = vmatpush.bf16.msra.mxu0 0
        %1188 = vmatpush.bf16.msra.mxu0 0
        %1189 = vmatpush.bf16.msra.mxu0 0
        %1190 = vmatpush.bf16.msra.mxu0 %v1057
        %1191 = vmatpush.bf16.msra.mxu0 %v1045
        %1192 = vmatmul.bf16.gmra.mxu0 %v476
        %v1193 = vpop.f32.mrf.mxu0
        %v1194 = vadd.f32 0.0, %v1193
        %v1195 = vpop.f32.mrf.mxu0
        %v1196 = vadd.f32 0.0, %v1195
        %1197 = vdwg.mxu0
        %1198 = vmatpush.bf16.msra.mxu0 0
        %1199 = vmatpush.bf16.msra.mxu0 0
        %1200 = vmatpush.bf16.msra.mxu0 0
        %1201 = vmatpush.bf16.msra.mxu0 0
        %1202 = vmatpush.bf16.msra.mxu0 0
        %1203 = vmatpush.bf16.msra.mxu0 0
        %1204 = vmatpush.bf16.msra.mxu0 %v1058
        %1205 = vmatpush.bf16.msra.mxu0 %v1046
        %1206 = vmatmul.bf16.gmra.mxu0 %v476
        %v1207 = vpop.f32.mrf.mxu0
        %v1208 = vadd.f32 0.0, %v1207
        %v1209 = vpop.f32.mrf.mxu0
        %v1210 = vadd.f32 0.0, %v1209
        %1211 = vdwg.mxu0
        %1212 = vmatpush.bf16.msra.mxu0 0
        %1213 = vmatpush.bf16.msra.mxu0 0
        %1214 = vmatpush.bf16.msra.mxu0 0
        %1215 = vmatpush.bf16.msra.mxu0 0
        %1216 = vmatpush.bf16.msra.mxu0 0
        %1217 = vmatpush.bf16.msra.mxu0 0
        %1218 = vmatpush.bf16.msra.mxu0 %v1059
        %1219 = vmatpush.bf16.msra.mxu0 %v1047
        %1220 = vmatmul.bf16.gmra.mxu0 %v476
        %v1221 = vpop.f32.mrf.mxu0
        %v1222 = vadd.f32 0.0, %v1221
        %v1223 = vpop.f32.mrf.mxu0
        %v1224 = vadd.f32 0.0, %v1223
        %1225 = vdwg.mxu0
        %1226 = vmatpush.bf16.msra.mxu0 0
        %1227 = vmatpush.bf16.msra.mxu0 0
        %1228 = vmatpush.bf16.msra.mxu0 0
        %1229 = vmatpush.bf16.msra.mxu0 0
        %1230 = vmatpush.bf16.msra.mxu0 0
        %1231 = vmatpush.bf16.msra.mxu0 0
        %1232 = vmatpush.bf16.msra.mxu0 %v1060
        %1233 = vmatpush.bf16.msra.mxu0 %v1048
        %1234 = vmatmul.bf16.gmra.mxu0 %v476
        %v1235 = vpop.f32.mrf.mxu0
        %v1236 = vadd.f32 0.0, %v1235
        %v1237 = vpop.f32.mrf.mxu0
        %v1238 = vadd.f32 0.0, %v1237
        %1239 = vdwg.mxu0
        %1240 = vmatpush.bf16.msra.mxu0 0
        %1241 = vmatpush.bf16.msra.mxu0 0
        %1242 = vmatpush.bf16.msra.mxu0 0
        %1243 = vmatpush.bf16.msra.mxu0 0
        %1244 = vmatpush.bf16.msra.mxu0 0
        %1245 = vmatpush.bf16.msra.mxu0 0
        %1246 = vmatpush.bf16.msra.mxu0 %v1061
        %1247 = vmatpush.bf16.msra.mxu0 %v1049
        %1248 = vmatmul.bf16.gmra.mxu0 %v476
        %v1249 = vpop.f32.mrf.mxu0
        %v1250 = vadd.f32 0.0, %v1249
        %v1251 = vpop.f32.mrf.mxu0
        %v1252 = vadd.f32 0.0, %v1251
        %1253 = vdwg.mxu0
        %v1254 = vrot.slane %v1152, 1
        %v1255 = vrot.slane %v1166, 1
        %v1256 = vrot.slane %v1180, 1
        %v1257 = vrot.slane %v1194, 1
        %v1258 = vrot.slane %v1154, 1
        %v1259 = vrot.slane %v1168, 1
        %v1260 = vrot.slane %v1182, 1
        %v1261 = vrot.slane %v1196, 1
        %v1262 = vsel %vm798, %v1254, %v1258
        %v1263 = vsel %vm798, %v1255, %v1259
        %v1264 = vsel %vm798, %v1256, %v1260
        %v1265 = vsel %vm798, %v1257, %v1261
        %v1266 = vsel %vm798, %v1258, %v1254
        %v1267 = vsel %vm798, %v1259, %v1255
        %v1268 = vsel %vm798, %v1260, %v1256
        %v1269 = vsel %vm798, %v1261, %v1257
        %v1270 = vrot.slane %v1208, 2
        %v1271 = vrot.slane %v1222, 2
        %v1272 = vrot.slane %v1236, 2
        %v1273 = vrot.slane %v1250, 2
        %v1274 = vrot.slane %v1210, 2
        %v1275 = vrot.slane %v1224, 2
        %v1276 = vrot.slane %v1238, 2
        %v1277 = vrot.slane %v1252, 2
        %vm1278 = vcmp.lt.s32.totalorder %v420, 6
        %v1279 = vsel %vm1278, %v1270, %v1274
        %v1280 = vsel %vm1278, %v1271, %v1275
        %v1281 = vsel %vm1278, %v1272, %v1276
        %v1282 = vsel %vm1278, %v1273, %v1277
        %v1283 = vsel %vm1278, %v1274, %v1270
        %v1284 = vsel %vm1278, %v1275, %v1271
        %v1285 = vsel %vm1278, %v1276, %v1272
        %v1286 = vsel %vm1278, %v1277, %v1273
        %v1287 = vadd.f32 %v1096, %v1262
        %v1288 = vadd.f32 %v1110, %v1263
        %v1289 = vadd.f32 %v1124, %v1264
        %v1290 = vadd.f32 %v1138, %v1265
        %v1291 = vadd.f32 %v1098, %v1266
        %v1292 = vadd.f32 %v1112, %v1267
        %v1293 = vadd.f32 %v1126, %v1268
        %v1294 = vadd.f32 %v1140, %v1269
        %v1295 = vadd.f32 %v1287, %v1279
        %v1296 = vadd.f32 %v1288, %v1280
        %v1297 = vadd.f32 %v1289, %v1281
        %v1298 = vadd.f32 %v1290, %v1282
        %v1299 = vadd.f32 %v1291, %v1283
        %v1300 = vadd.f32 %v1292, %v1284
        %v1301 = vadd.f32 %v1293, %v1285
        %v1302 = vadd.f32 %v1294, %v1286
        %v1303 = vsel %vm1278, 1, 0
        %vm1304 = vcmp.eq.s32.totalorder %v1303, 1
        %v1305 = vsel %vm1304, %v1295, -inf
        %v1306 = vsel %vm1304, %v1296, -inf
        %v1307 = vsel %vm1304, %v1297, -inf
        %v1308 = vsel %vm1304, %v1298, -inf
        %v1309 = vsel %vm1304, %v1299, -inf
        %v1310 = vsel %vm1304, %v1300, -inf
        %v1311 = vsel %vm1304, %v1301, -inf
        %v1312 = vsel %vm1304, %v1302, -inf
        %v1313 = vrot.slane %v1305, 4
        %v1314 = vmax.f32 %v1305, %v1313
        %v1315 = vrot.slane %v1314, 2
        %v1316 = vmax.f32 %v1314, %v1315
        %v1317 = vrot.slane %v1316, 1
        %v1318 = vmax.f32 %v1316, %v1317
        %v1319 = vrot.slane %v1306, 4
        %v1320 = vmax.f32 %v1306, %v1319
        %v1321 = vrot.slane %v1320, 2
        %v1322 = vmax.f32 %v1320, %v1321
        %v1323 = vrot.slane %v1322, 1
        %v1324 = vmax.f32 %v1322, %v1323
        %v1325 = vrot.slane %v1307, 4
        %v1326 = vmax.f32 %v1307, %v1325
        %v1327 = vrot.slane %v1326, 2
        %v1328 = vmax.f32 %v1326, %v1327
        %v1329 = vrot.slane %v1328, 1
        %v1330 = vmax.f32 %v1328, %v1329
        %v1331 = vrot.slane %v1308, 4
        %v1332 = vmax.f32 %v1308, %v1331
        %v1333 = vrot.slane %v1332, 2
        %v1334 = vmax.f32 %v1332, %v1333
        %v1335 = vrot.slane %v1334, 1
        %v1336 = vmax.f32 %v1334, %v1335
        %v1337 = vrot.slane %v1309, 4
        %v1338 = vmax.f32 %v1309, %v1337
        %v1339 = vrot.slane %v1338, 2
        %v1340 = vmax.f32 %v1338, %v1339
        %v1341 = vrot.slane %v1340, 1
        %v1342 = vmax.f32 %v1340, %v1341
        %v1343 = vrot.slane %v1310, 4
        %v1344 = vmax.f32 %v1310, %v1343
        %v1345 = vrot.slane %v1344, 2
        %v1346 = vmax.f32 %v1344, %v1345
        %v1347 = vrot.slane %v1346, 1
        %v1348 = vmax.f32 %v1346, %v1347
        %v1349 = vrot.slane %v1311, 4
        %v1350 = vmax.f32 %v1311, %v1349
        %v1351 = vrot.slane %v1350, 2
        %v1352 = vmax.f32 %v1350, %v1351
        %v1353 = vrot.slane %v1352, 1
        %v1354 = vmax.f32 %v1352, %v1353
        %v1355 = vrot.slane %v1312, 4
        %v1356 = vmax.f32 %v1312, %v1355
        %v1357 = vrot.slane %v1356, 2
        %v1358 = vmax.f32 %v1356, %v1357
        %v1359 = vrot.slane %v1358, 1
        %v1360 = vmax.f32 %v1358, %v1359
        %v1361 = vadd.f32 %v424, %v423
        %v1370 = vrot.slane %v1222, 6
        %v1371 = vrot.slane %v1236, 4
        %v1372 = vrot.slane %v1250, 2
        %v1373 = vrot.slane %v1224, 6
        %v1374 = vrot.slane %v1238, 4
        %v1375 = vrot.slane %v1252, 2
        %v1376 = vsel %vm887, %v1208, %v1370
        %v1377 = vsel %vm889, %v1371, %v1372
        %v1378 = vsel %vm891, %v1376, %v1377
        %v1379 = vsel %vm887, %v1210, %v1373
        %v1380 = vsel %vm889, %v1374, %v1375
        %v1381 = vsel %vm891, %v1379, %v1380
        %v1382 = vsel %vm897, %v1378, %v1378
        %v1383 = vsel %vm899, %v1378, %v1382
        %v1384 = vrot.slane %v1381, 7
        %v1385 = vsel %vm902, %v1384, %v1383
        %v1386 = vsel %vm904, %v1384, %v1385
        %v1387 = vsel %vm906, %v1384, %v1386
        %v1388 = vsel %vm908, %v1384, %v1387
        %v1390 = vadd.f32 %v1361, %v1388
        %v1399 = vrot.slane %v1166, 6
        %v1400 = vrot.slane %v1180, 4
        %v1401 = vrot.slane %v1194, 2
        %v1402 = vrot.slane %v1168, 6
        %v1403 = vrot.slane %v1182, 4
        %v1404 = vrot.slane %v1196, 2
        %v1405 = vsel %vm887, %v1152, %v1399
        %v1406 = vsel %vm889, %v1400, %v1401
        %v1407 = vsel %vm891, %v1405, %v1406
        %v1408 = vsel %vm887, %v1154, %v1402
        %v1409 = vsel %vm889, %v1403, %v1404
        %v1410 = vsel %vm891, %v1408, %v1409
        %v1411 = vsel %vm897, %v1407, %v1407
        %v1412 = vsel %vm899, %v1407, %v1411
        %v1413 = vrot.slane %v1410, 7
        %v1414 = vsel %vm902, %v1413, %v1412
        %v1415 = vsel %vm904, %v1413, %v1414
        %v1416 = vsel %vm906, %v1413, %v1415
        %v1417 = vsel %vm908, %v1413, %v1416
        %v1419 = vadd.f32 %v422, %v1417
        %v1420 = vrot.slane %v1378, 1
        %v1421 = vsel %vm897, %v1420, %v1420
        %v1422 = vsel %vm899, %v1420, %v1421
        %v1423 = vsel %vm902, %v1381, %v1422
        %v1424 = vsel %vm904, %v1381, %v1423
        %v1425 = vsel %vm906, %v1381, %v1424
        %v1426 = vsel %vm908, %v1381, %v1425
        %v1428 = vadd.f32 %v1419, %v1426
        %v1429 = vmax.f32 %v1390, %v1428
        %v1430 = vsel %vm914, %v1429, -inf
        %1432 = vst [vmem:[#allocation1] ss:$4 sm:$0xff] %v1430
        %v1433 = vld.sshfl [vmem:[#allocation1] sm:$0xff pattern:$0x73625140]
        %v1434 = vld.sshfl [vmem:[#allocation1 + $0x8] sm:$0xff pattern:$0x73625140]
        %v1435 = vld.sshfl [vmem:[#allocation1 + $0x10] sm:$0xff pattern:$0x73625140]
        %v1436 = vld.sshfl [vmem:[#allocation1 + $0x18] sm:$0xff pattern:$0x73625140]
        %v1437 = vrot.slane %v1433, 1
        %v1438 = vrot.slane %v1434, 1
        %v1439 = vrot.slane %v1435, 1
        %v1440 = vrot.slane %v1436, 1
        %v1449 = vmax.f32 %v1318, %v1433
        %v1450 = vmax.f32 %v1324, %v1434
        %v1451 = vmax.f32 %v1330, %v1435
        %v1452 = vmax.f32 %v1336, %v1436
        %v1453 = vmax.f32 %v1342, %v1437
        %v1454 = vmax.f32 %v1348, %v1438
        %v1455 = vmax.f32 %v1354, %v1439
        %v1456 = vmax.f32 %v1360, %v1440
        %v1457 = vld [vmem:[#allocation2] sm:$0xff]
        %v1458 = vld [vmem:[#allocation2 + $0x8] sm:$0xff]
        %v1459 = vld [vmem:[#allocation2 + $0x10] sm:$0xff]
        %v1468 = vsel %vm902, %v563, %v539
        %v1469 = vsel %vm902, %v569, %v545
        %v1470 = vsel %vm902, %v575, %v551
        %v1471 = vsel %vm902, %v581, %v557
        %v1480 = vrot.slane %v938, 7
        %v1481 = vsel %vm902, %v1480, %v934
        %v1482 = vrot.slane %v939, 7
        %v1483 = vsel %vm902, %v1482, %v935
        %v1484 = vrot.slane %v940, 7
        %v1485 = vsel %vm902, %v1484, %v936
        %v1486 = vrot.slane %v941, 7
        %v1487 = vsel %vm902, %v1486, %v937
        %v1496 = vrot.slane %v1453, 7
        %v1497 = vsel %vm902, %v1496, %v1449
        %v1498 = vrot.slane %v1454, 7
        %v1499 = vsel %vm902, %v1498, %v1450
        %v1500 = vrot.slane %v1455, 7
        %v1501 = vsel %vm902, %v1500, %v1451
        %v1502 = vrot.slane %v1456, 7
        %v1503 = vsel %vm902, %v1502, %v1452
        %v1504 = vrot.slane %v1469, 6
        %v1505 = vrot.slane %v1470, 4
        %v1506 = vrot.slane %v1471, 2
        %v1507 = vrot.slane %v1483, 6
        %v1508 = vrot.slane %v1485, 4
        %v1509 = vrot.slane %v1487, 2
        %v1510 = vrot.slane %v1499, 6
        %v1511 = vrot.slane %v1501, 4
        %v1512 = vrot.slane %v1503, 2
        %v1513 = vsel %vm887, %v1468, %v1504
        %v1514 = vsel %vm889, %v1505, %v1506
        %v1515 = vsel %vm891, %v1513, %v1514
        %v1516 = vsel %vm887, %v1481, %v1507
        %v1517 = vsel %vm889, %v1508, %v1509
        %v1518 = vsel %vm891, %v1516, %v1517
        %v1519 = vsel %vm887, %v1497, %v1510
        %v1520 = vsel %vm889, %v1511, %v1512
        %v1521 = vsel %vm891, %v1519, %v1520
        %v1525 = vmax.f32 %v1457, %v1515
        %v1526 = vmax.f32 %v1458, %v1518
        %v1527 = vmax.f32 %v1459, %v1521
        %1528 = vst [vmem:[#allocation2] sm:$0xff] %v1525
        %1529 = vst [vmem:[#allocation2 + $0x8] sm:$0xff] %v1526
        %1530 = vst [vmem:[#allocation2 + $0x10] sm:$0xff] %v1527
        %v1539 = vrot.slane %v690, 7
        %v1540 = vrot.slane %v704, 7
        %v1541 = vrot.slane %v718, 7
        %v1542 = vrot.slane %v732, 7
        %v1551 = vrot.slane %v1098, 7
        %v1552 = vrot.slane %v1112, 7
        %v1553 = vrot.slane %v1126, 7
        %v1554 = vrot.slane %v1140, 7
        %v1555 = vrot.slane %v1154, 7
        %v1556 = vrot.slane %v1168, 7
        %v1557 = vrot.slane %v1182, 7
        %v1558 = vrot.slane %v1196, 7
        %v1559 = vrot.slane %v1096, 7
        %v1560 = vrot.slane %v1110, 7
        %v1561 = vrot.slane %v1124, 7
        %v1562 = vrot.slane %v1138, 7
        %v1563 = vrot.slane %v1098, 6
        %v1564 = vrot.slane %v1112, 6
        %v1565 = vrot.slane %v1126, 6
        %v1566 = vrot.slane %v1140, 6
        %1567 = vst.sshfl [vmem:[#allocation1] sm:$0xff pattern:$0x73625140] %v688
        %1568 = vst.sshfl [vmem:[#allocation1 + $0x8] sm:$0xff pattern:$0x73625140] %v702
        %1569 = vst.sshfl [vmem:[#allocation1 + $0x10] sm:$0xff pattern:$0x73625140] %v716
        %1570 = vst.sshfl [vmem:[#allocation1 + $0x18] sm:$0xff pattern:$0x73625140] %v730
        %1571 = vst.sshfl [vmem:[#allocation1 + $0x20] sm:$0xff pattern:$0x73625140] %v1096
        %1572 = vst.sshfl [vmem:[#allocation1 + $0x28] sm:$0xff pattern:$0x73625140] %v1110
        %1573 = vst.sshfl [vmem:[#allocation1 + $0x30] sm:$0xff pattern:$0x73625140] %v1124
        %1574 = vst.sshfl [vmem:[#allocation1 + $0x38] sm:$0xff pattern:$0x73625140] %v1138
        %s1575 = scalar_lea.vmem [#allocation1], 3
        %v1576 = vld [vmem:[%s1575] ss:$4 sm:$0xff]
        %s1577 = scalar_lea.vmem [#allocation1], 35
        %v1578 = vld [vmem:[%s1577] ss:$4 sm:$0xff]
        %1579 = vst.sshfl [vmem:[#allocation1] sm:$0xff pattern:$0x73625140] %v1152
        %1580 = vst.sshfl [vmem:[#allocation1 + $0x8] sm:$0xff pattern:$0x73625140] %v1166
        %1581 = vst.sshfl [vmem:[#allocation1 + $0x10] sm:$0xff pattern:$0x73625140] %v1180
        %1582 = vst.sshfl [vmem:[#allocation1 + $0x18] sm:$0xff pattern:$0x73625140] %v1194
        %1583 = vst.sshfl [vmem:[#allocation1 + $0x20] sm:$0xff pattern:$0x73625140] %v1559
        %1584 = vst.sshfl [vmem:[#allocation1 + $0x28] sm:$0xff pattern:$0x73625140] %v1560
        %1585 = vst.sshfl [vmem:[#allocation1 + $0x30] sm:$0xff pattern:$0x73625140] %v1561
        %1586 = vst.sshfl [vmem:[#allocation1 + $0x38] sm:$0xff pattern:$0x73625140] %v1562
        %v1587 = vld [vmem:[%s1575] ss:$4 sm:$0xff]
        %v1588 = vld [vmem:[%s1577] ss:$4 sm:$0xff]
        %1589 = vst.sshfl [vmem:[#allocation1] sm:$0xff pattern:$0x73625140] %v1539
        %1590 = vst.sshfl [vmem:[#allocation1 + $0x8] sm:$0xff pattern:$0x73625140] %v1540
        %1591 = vst.sshfl [vmem:[#allocation1 + $0x10] sm:$0xff pattern:$0x73625140] %v1541
        %1592 = vst.sshfl [vmem:[#allocation1 + $0x18] sm:$0xff pattern:$0x73625140] %v1542
        %1593 = vst.sshfl [vmem:[#allocation1 + $0x20] sm:$0xff pattern:$0x73625140] %v1551
        %1594 = vst.sshfl [vmem:[#allocation1 + $0x28] sm:$0xff pattern:$0x73625140] %v1552
        %1595 = vst.sshfl [vmem:[#allocation1 + $0x30] sm:$0xff pattern:$0x73625140] %v1553
        %1596 = vst.sshfl [vmem:[#allocation1 + $0x38] sm:$0xff pattern:$0x73625140] %v1554
        %v1597 = vld [vmem:[#allocation1] ss:$4 sm:$0xff]
        %s1598 = scalar_lea.vmem [#allocation1], 32
        %v1599 = vld [vmem:[%s1598] ss:$4 sm:$0xff]
        %1600 = vst.sshfl [vmem:[#allocation1] sm:$0xff pattern:$0x73625140] %v1555
        %1601 = vst.sshfl [vmem:[#allocation1 + $0x8] sm:$0xff pattern:$0x73625140] %v1556
        %1602 = vst.sshfl [vmem:[#allocation1 + $0x10] sm:$0xff pattern:$0x73625140] %v1557
        %1603 = vst.sshfl [vmem:[#allocation1 + $0x18] sm:$0xff pattern:$0x73625140] %v1558
        %1604 = vst.sshfl [vmem:[#allocation1 + $0x20] sm:$0xff pattern:$0x73625140] %v1563
        %1605 = vst.sshfl [vmem:[#allocation1 + $0x28] sm:$0xff pattern:$0x73625140] %v1564
        %1606 = vst.sshfl [vmem:[#allocation1 + $0x30] sm:$0xff pattern:$0x73625140] %v1565
        %1607 = vst.sshfl [vmem:[#allocation1 + $0x38] sm:$0xff pattern:$0x73625140] %v1566
        %v1608 = vld [vmem:[#allocation1] ss:$4 sm:$0xff]
        %v1609 = vld [vmem:[%s1598] ss:$4 sm:$0xff]
        %vm1610 = vcmask 1040384
        %vm1611 = vmor %vm1610, %vm896
        %vm1612 = vmor %vm1611, %vm897
        %vm1613 = vmor %vm1612, %vm899
        %v1614 = vrot.slane %v1576, 7
        %v1615 = vrot.slane %v1614, 2
        %v1616 = vrot.slane %v1597, 7
        %v1617 = vsel %vm1613, %v1615, %v1616
        %v1618 = vrot.slane %v1578, 7
        %v1619 = vrot.slane %v1618, 2
        %v1620 = vrot.slane %v1599, 7
        %v1621 = vsel %vm1613, %v1619, %v1620
        %v1622 = vrot.slane %v1587, 7
        %v1623 = vrot.slane %v1622, 2
        %v1624 = vrot.slane %v1608, 7
        %v1625 = vsel %vm1613, %v1623, %v1624
        %v1626 = vrot.slane %v1588, 7
        %v1627 = vrot.slane %v1626, 2
        %v1628 = vrot.slane %v1609, 7
        %v1629 = vsel %vm1613, %v1627, %v1628
        %1634 = vst [vmem:[#allocation3] sm:$0xff] %v1617
        %1635 = vst [vmem:[#allocation3 + $0x8] sm:$0xff] %v1621
        %1636 = vst [vmem:[#allocation3 + $0x10] sm:$0xff] %v1625
        %1637 = vst [vmem:[#allocation3 + $0x18] sm:$0xff] %v1629
        %p1638 = scmp.eq.s32.totalorder %s30, 1
        // Predicated region
        $region81: #{tpu_custom_call.1} parent=47 // pred_check
          %p1639 = pneg %p1638
        $region82: #{tpu_custom_call.1} parent=47 // pred_check_branch
          %1641 = sbr.rel (%p1639) target = $region84
        $region83: #{tpu_custom_call.1} parent=47 // pred_region
          %v1642 = vld [vmem:[#allocation2] sm:$0xff]
          %v1643 = vld [vmem:[#allocation2 + $0x8] sm:$0xff]
          %v1644 = vld [vmem:[#allocation2 + $0x10] sm:$0xff]
          %v1645 = vld [vmem:[#allocation12] sm:$0xff]
          %v1646 = vld [vmem:[#allocation12 + $0x8] sm:$0xf]
          %v1649 = vperm.slane %v1645, 0
          %v1650 = vperm.slane %v1645, 1
          %v1651 = vperm.slane %v1645, 2
          %v1652 = vperm.slane %v1645, 3
          %v1653 = vperm.slane %v1645, 4
          %v1654 = vperm.slane %v1645, 5
          %v1655 = vperm.slane %v1645, 6
          %v1656 = vperm.slane %v1645, 7
          %v1657 = vperm.slane %v1646, 0
          %v1658 = vperm.slane %v1646, 1
          %v1659 = vperm.slane %v1646, 2
          %v1660 = vperm.slane %v1646, 3
          %v1661 = vrot.slane %v1650, 6
          %v1662 = vrot.slane %v1651, 4
          %v1663 = vrot.slane %v1652, 2
          %v1664 = vrot.slane %v1654, 6
          %v1665 = vrot.slane %v1655, 4
          %v1666 = vrot.slane %v1656, 2
          %v1667 = vrot.slane %v1658, 6
          %v1668 = vrot.slane %v1659, 4
          %v1669 = vrot.slane %v1660, 2
          %v1670 = vsel %vm887, %v1649, %v1661
          %v1671 = vsel %vm889, %v1662, %v1663
          %v1672 = vsel %vm891, %v1670, %v1671
          %v1673 = vsel %vm887, %v1653, %v1664
          %v1674 = vsel %vm889, %v1665, %v1666
          %v1675 = vsel %vm891, %v1673, %v1674
          %v1676 = vsel %vm887, %v1657, %v1667
          %v1677 = vsel %vm889, %v1668, %v1669
          %v1678 = vsel %vm891, %v1676, %v1677
          %v1682 = vadd.f32 %v1642, %v1672
          %v1683 = vadd.f32 %v1643, %v1675
          %v1684 = vadd.f32 %v1644, %v1678
          %v1685 = vmax.f32 %v1682, 0.0
          %v1686 = vmax.f32 %v1683, 0.0
          %v1687 = vmax.f32 %v1684, 0.0
          %v1688 = vld [vmem:[#allocation13] sm:$0xff]
          %v1689 = vld [vmem:[#allocation13 + $0x8] sm:$0xff]
          %v1690 = vld [vmem:[#allocation13 + $0x10] sm:$0xff]
          %v1691 = vld [vmem:[#allocation13 + $0x18] sm:$0xff]
          %v1692 = vld [vmem:[#allocation13 + $0x20] sm:$0xff]
          %v1693 = vld [vmem:[#allocation13 + $0x28] sm:$0xff]
          %v1694 = vld [vmem:[#allocation13 + $0x30] sm:$0xff]
          %v1695 = vld [vmem:[#allocation13 + $0x38] sm:$0xff]
          %v1696 = vld [vmem:[#allocation13 + $0x40] sm:$0xff]
          %v1697 = vld [vmem:[#allocation13 + $0x48] sm:$0xff]
          %v1698 = vld [vmem:[#allocation13 + $0x50] sm:$0xff]
          %v1699 = vld [vmem:[#allocation13 + $0x58] sm:$0xff]
          %v1700 = vld [vmem:[#allocation13 + $0x60] sm:$0xff]
          %v1701 = vld [vmem:[#allocation13 + $0x68] sm:$0xff]
          %v1702 = vld [vmem:[#allocation13 + $0x70] sm:$0xff]
          %v1703 = vld [vmem:[#allocation13 + $0x78] sm:$0xff]
          %v1704 = vld [vmem:[#allocation13 + $0x80] sm:$0xff]
          %v1705 = vld [vmem:[#allocation13 + $0x88] sm:$0xff]
          %v1706 = vld [vmem:[#allocation13 + $0x90] sm:$0xff]
          %v1707 = vld [vmem:[#allocation13 + $0x98] sm:$0xff]
          %v1708 = vld [vmem:[#allocation13 + $0xa0] sm:$0xff]
          %v1709 = vld [vmem:[#allocation13 + $0xa8] sm:$0xff]
          %v1710 = vld [vmem:[#allocation13 + $0xb0] sm:$0xff]
          %v1711 = vld [vmem:[#allocation13 + $0xb8] sm:$0xff]
          %v1712 = vld [vmem:[#allocation13 + $0xc0] sm:$0xff]
          %v1713 = vld [vmem:[#allocation13 + $0xc8] sm:$0xff]
          %v1714 = vld [vmem:[#allocation13 + $0xd0] sm:$0xff]
          %v1715 = vld [vmem:[#allocation13 + $0xd8] sm:$0xff]
          %v1716 = vld [vmem:[#allocation13 + $0xe0] sm:$0xff]
          %v1717 = vld [vmem:[#allocation13 + $0xe8] sm:$0xff]
          %v1718 = vld [vmem:[#allocation13 + $0xf0] sm:$0xff]
          %v1719 = vld [vmem:[#allocation13 + $0xf8] sm:$0xff]
          %v1720 = vld [vmem:[#allocation13 + $0x100] sm:$0xff]
          %v1721 = vld [vmem:[#allocation13 + $0x108] sm:$0xff]
          %v1722 = vld [vmem:[#allocation13 + $0x110] sm:$0xff]
          %v1723 = vld [vmem:[#allocation13 + $0x118] sm:$0xff]
          %v1724 = vld [vmem:[#allocation13 + $0x120] sm:$0xff]
          %v1725 = vld [vmem:[#allocation13 + $0x128] sm:$0xff]
          %v1726 = vld [vmem:[#allocation13 + $0x130] sm:$0xff]
          %v1727 = vld [vmem:[#allocation13 + $0x138] sm:$0xff]
          %v1728 = vld [vmem:[#allocation13 + $0x140] sm:$0xff]
          %v1729 = vld [vmem:[#allocation13 + $0x148] sm:$0xff]
          %v1730 = vld [vmem:[#allocation13 + $0x150] sm:$0xff]
          %v1731 = vld [vmem:[#allocation13 + $0x158] sm:$0xff]
          %v1732 = vld [vmem:[#allocation13 + $0x160] sm:$0xff]
          %v1733 = vld [vmem:[#allocation13 + $0x168] sm:$0xff]
          %v1734 = vld [vmem:[#allocation13 + $0x170] sm:$0xff]
          %v1735 = vld [vmem:[#allocation13 + $0x178] sm:$0xff]
          %v1736 = vld [vmem:[#allocation13 + $0x180] sm:$0xff]
          %v1737 = vld [vmem:[#allocation13 + $0x188] sm:$0xff]
          %v1738 = vld [vmem:[#allocation13 + $0x190] sm:$0xff]
          %v1739 = vld [vmem:[#allocation13 + $0x198] sm:$0xff]
          %v1740 = vld [vmem:[#allocation13 + $0x1a0] sm:$0xff]
          %v1741 = vld [vmem:[#allocation13 + $0x1a8] sm:$0xff]
          %v1742 = vld [vmem:[#allocation13 + $0x1b0] sm:$0xff]
          %v1743 = vld [vmem:[#allocation13 + $0x1b8] sm:$0xff]
          %v1744 = vld [vmem:[#allocation13 + $0x1c0] sm:$0xff]
          %v1745 = vld [vmem:[#allocation13 + $0x1c8] sm:$0xff]
          %v1746 = vld [vmem:[#allocation13 + $0x1d0] sm:$0xff]
          %v1747 = vld [vmem:[#allocation13 + $0x1d8] sm:$0xff]
          %v1748 = vld [vmem:[#allocation13 + $0x1e0] sm:$0xff]
          %v1749 = vld [vmem:[#allocation13 + $0x1e8] sm:$0xff]
          %v1750 = vld [vmem:[#allocation13 + $0x1f0] sm:$0xff]
          %v1751 = vld [vmem:[#allocation13 + $0x1f8] sm:$0xff]
          %v1752 = vld [vmem:[#allocation13 + $0x200] sm:$0xff]
          %v1753 = vld [vmem:[#allocation13 + $0x208] sm:$0xff]
          %v1754 = vld [vmem:[#allocation13 + $0x210] sm:$0xff]
          %v1755 = vld [vmem:[#allocation13 + $0x218] sm:$0xff]
          %v1756 = vld [vmem:[#allocation13 + $0x220] sm:$0xff]
          %v1757 = vld [vmem:[#allocation13 + $0x228] sm:$0xff]
          %v1758 = vld [vmem:[#allocation13 + $0x230] sm:$0xff]
          %v1759 = vld [vmem:[#allocation13 + $0x238] sm:$0xff]
          %v1760 = vld [vmem:[#allocation13 + $0x240] sm:$0xff]
          %v1761 = vld [vmem:[#allocation13 + $0x248] sm:$0xff]
          %v1762 = vld [vmem:[#allocation13 + $0x250] sm:$0xff]
          %v1763 = vld [vmem:[#allocation13 + $0x258] sm:$0xff]
          %v1764 = vld [vmem:[#allocation13 + $0x260] sm:$0xff]
          %v1765 = vld [vmem:[#allocation13 + $0x268] sm:$0xff]
          %v1766 = vld [vmem:[#allocation13 + $0x270] sm:$0xff]
          %v1767 = vld [vmem:[#allocation13 + $0x278] sm:$0xff]
          %v1768 = vld [vmem:[#allocation13 + $0x280] sm:$0xff]
          %v1769 = vld [vmem:[#allocation13 + $0x288] sm:$0xff]
          %v1770 = vld [vmem:[#allocation13 + $0x290] sm:$0xff]
          %v1771 = vld [vmem:[#allocation13 + $0x298] sm:$0xff]
          %v1772 = vld [vmem:[#allocation13 + $0x2a0] sm:$0xff]
          %v1773 = vld [vmem:[#allocation13 + $0x2a8] sm:$0xff]
          %v1774 = vld [vmem:[#allocation13 + $0x2b0] sm:$0xff]
          %v1775 = vld [vmem:[#allocation13 + $0x2b8] sm:$0xff]
          %v1776 = vld [vmem:[#allocation13 + $0x2c0] sm:$0xff]
          %v1777 = vld [vmem:[#allocation13 + $0x2c8] sm:$0xff]
          %v1778 = vld [vmem:[#allocation13 + $0x2d0] sm:$0xff]
          %v1779 = vld [vmem:[#allocation13 + $0x2d8] sm:$0xff]
          %v1780 = vld [vmem:[#allocation13 + $0x2e0] sm:$0xff]
          %v1781 = vld [vmem:[#allocation13 + $0x2e8] sm:$0xff]
          %v1782 = vld [vmem:[#allocation13 + $0x2f0] sm:$0xff]
          %v1783 = vld [vmem:[#allocation13 + $0x2f8] sm:$0xff]
          %v1784 = vld [vmem:[#allocation13 + $0x300] sm:$0xff]
          %v1785 = vld [vmem:[#allocation13 + $0x308] sm:$0xff]
          %v1786 = vld [vmem:[#allocation13 + $0x310] sm:$0xff]
          %v1787 = vld [vmem:[#allocation13 + $0x318] sm:$0xff]
          %v1788 = vld [vmem:[#allocation13 + $0x320] sm:$0xff]
          %v1789 = vld [vmem:[#allocation13 + $0x328] sm:$0xff]
          %v1790 = vld [vmem:[#allocation13 + $0x330] sm:$0xff]
          %v1791 = vld [vmem:[#allocation13 + $0x338] sm:$0xff]
          %v1792 = vld [vmem:[#allocation13 + $0x340] sm:$0xff]
          %v1793 = vld [vmem:[#allocation13 + $0x348] sm:$0xff]
          %v1794 = vld [vmem:[#allocation13 + $0x350] sm:$0xff]
          %v1795 = vld [vmem:[#allocation13 + $0x358] sm:$0xff]
          %v1796 = vld [vmem:[#allocation13 + $0x360] sm:$0xff]
          %v1797 = vld [vmem:[#allocation13 + $0x368] sm:$0xff]
          %v1798 = vld [vmem:[#allocation13 + $0x370] sm:$0xff]
          %v1799 = vld [vmem:[#allocation13 + $0x378] sm:$0xff]
          %v1800 = vld [vmem:[#allocation13 + $0x380] sm:$0xff]
          %v1801 = vld [vmem:[#allocation13 + $0x388] sm:$0xff]
          %v1802 = vld [vmem:[#allocation13 + $0x390] sm:$0xff]
          %v1803 = vld [vmem:[#allocation13 + $0x398] sm:$0xff]
          %v1804 = vld [vmem:[#allocation13 + $0x3a0] sm:$0xff]
          %v1805 = vld [vmem:[#allocation13 + $0x3a8] sm:$0xff]
          %v1806 = vld [vmem:[#allocation13 + $0x3b0] sm:$0xff]
          %v1807 = vld [vmem:[#allocation13 + $0x3b8] sm:$0xff]
          %v1808 = vld [vmem:[#allocation13 + $0x3c0] sm:$0xff]
          %v1809 = vld [vmem:[#allocation13 + $0x3c8] sm:$0xff]
          %v1810 = vld [vmem:[#allocation13 + $0x3d0] sm:$0xff]
          %v1811 = vld [vmem:[#allocation13 + $0x3d8] sm:$0xff]
          %v1812 = vld [vmem:[#allocation13 + $0x3e0] sm:$0xff]
          %v1813 = vld [vmem:[#allocation13 + $0x3e8] sm:$0xff]
          %v1814 = vld [vmem:[#allocation13 + $0x3f0] sm:$0xff]
          %v1815 = vld [vmem:[#allocation13 + $0x3f8] sm:$0xff]
          %v1816 = vld [vmem:[#allocation13 + $0x400] sm:$0xff]
          %v1817 = vld [vmem:[#allocation13 + $0x408] sm:$0xff]
          %v1818 = vld [vmem:[#allocation13 + $0x410] sm:$0xff]
          %v1819 = vld [vmem:[#allocation13 + $0x418] sm:$0xff]
          %v1820 = vld [vmem:[#allocation13 + $0x420] sm:$0xff]
          %v1821 = vld [vmem:[#allocation13 + $0x428] sm:$0xff]
          %v1822 = vld [vmem:[#allocation13 + $0x430] sm:$0xff]
          %v1823 = vld [vmem:[#allocation13 + $0x438] sm:$0xff]
          %v1824 = vld [vmem:[#allocation13 + $0x440] sm:$0xff]
          %v1825 = vld [vmem:[#allocation13 + $0x448] sm:$0xff]
          %v1826 = vld [vmem:[#allocation13 + $0x450] sm:$0xff]
          %v1827 = vld [vmem:[#allocation13 + $0x458] sm:$0xff]
          %v1828 = vld [vmem:[#allocation13 + $0x460] sm:$0xff]
          %v1829 = vld [vmem:[#allocation13 + $0x468] sm:$0xff]
          %v1830 = vld [vmem:[#allocation13 + $0x470] sm:$0xff]
          %v1831 = vld [vmem:[#allocation13 + $0x478] sm:$0xff]
          %v1832 = vld [vmem:[#allocation13 + $0x480] sm:$0xff]
          %v1833 = vld [vmem:[#allocation13 + $0x488] sm:$0xff]
          %v1834 = vld [vmem:[#allocation13 + $0x490] sm:$0xff]
          %v1835 = vld [vmem:[#allocation13 + $0x498] sm:$0xff]
          %v1836 = vld [vmem:[#allocation13 + $0x4a0] sm:$0xff]
          %v1837 = vld [vmem:[#allocation13 + $0x4a8] sm:$0xff]
          %v1838 = vld [vmem:[#allocation13 + $0x4b0] sm:$0xff]
          %v1839 = vld [vmem:[#allocation13 + $0x4b8] sm:$0xff]
          %v1840 = vld [vmem:[#allocation13 + $0x4c0] sm:$0xff]
          %v1841 = vld [vmem:[#allocation13 + $0x4c8] sm:$0xff]
          %v1842 = vld [vmem:[#allocation13 + $0x4d0] sm:$0xff]
          %v1843 = vld [vmem:[#allocation13 + $0x4d8] sm:$0xff]
          %v1844 = vld [vmem:[#allocation13 + $0x4e0] sm:$0xff]
          %v1845 = vld [vmem:[#allocation13 + $0x4e8] sm:$0xff]
          %v1846 = vld [vmem:[#allocation13 + $0x4f0] sm:$0xff]
          %v1847 = vld [vmem:[#allocation13 + $0x4f8] sm:$0xff]
          %v1848 = vld [vmem:[#allocation13 + $0x500] sm:$0xff]
          %v1849 = vld [vmem:[#allocation13 + $0x508] sm:$0xff]
          %v1850 = vld [vmem:[#allocation13 + $0x510] sm:$0xff]
          %v1851 = vld [vmem:[#allocation13 + $0x518] sm:$0xff]
          %v1852 = vld [vmem:[#allocation13 + $0x520] sm:$0xff]
          %v1853 = vld [vmem:[#allocation13 + $0x528] sm:$0xff]
          %v1854 = vld [vmem:[#allocation13 + $0x530] sm:$0xff]
          %v1855 = vld [vmem:[#allocation13 + $0x538] sm:$0xff]
          %v1856 = vld [vmem:[#allocation13 + $0x540] sm:$0xff]
          %v1857 = vld [vmem:[#allocation13 + $0x548] sm:$0xff]
          %v1858 = vld [vmem:[#allocation13 + $0x550] sm:$0xff]
          %v1859 = vld [vmem:[#allocation13 + $0x558] sm:$0xff]
          %v1860 = vld [vmem:[#allocation13 + $0x560] sm:$0xff]
          %v1861 = vld [vmem:[#allocation13 + $0x568] sm:$0xff]
          %v1862 = vld [vmem:[#allocation13 + $0x570] sm:$0xff]
          %v1863 = vld [vmem:[#allocation13 + $0x578] sm:$0xff]
          %v1864 = vld [vmem:[#allocation13 + $0x580] sm:$0xff]
          %v1865 = vld [vmem:[#allocation13 + $0x588] sm:$0xff]
          %v1866 = vld [vmem:[#allocation13 + $0x590] sm:$0xff]
          %v1867 = vld [vmem:[#allocation13 + $0x598] sm:$0xff]
          %v1868 = vld [vmem:[#allocation13 + $0x5a0] sm:$0xff]
          %v1869 = vld [vmem:[#allocation13 + $0x5a8] sm:$0xff]
          %v1870 = vld [vmem:[#allocation13 + $0x5b0] sm:$0xff]
          %v1871 = vld [vmem:[#allocation13 + $0x5b8] sm:$0xff]
          %v1872 = vld [vmem:[#allocation13 + $0x5c0] sm:$0xff]
          %v1873 = vld [vmem:[#allocation13 + $0x5c8] sm:$0xff]
          %v1874 = vld [vmem:[#allocation13 + $0x5d0] sm:$0xff]
          %v1875 = vld [vmem:[#allocation13 + $0x5d8] sm:$0xff]
          %v1876 = vld [vmem:[#allocation13 + $0x5e0] sm:$0xff]
          %v1877 = vld [vmem:[#allocation13 + $0x5e8] sm:$0xff]
          %v1878 = vld [vmem:[#allocation13 + $0x5f0] sm:$0xff]
          %v1879 = vld [vmem:[#allocation13 + $0x5f8] sm:$0xff]
          %v1880 = vld [vmem:[#allocation13 + $0x600] sm:$0xff]
          %v1881 = vld [vmem:[#allocation13 + $0x608] sm:$0xff]
          %v1882 = vld [vmem:[#allocation13 + $0x610] sm:$0xff]
          %v1883 = vld [vmem:[#allocation13 + $0x618] sm:$0xff]
          %v1884 = vld [vmem:[#allocation13 + $0x620] sm:$0xff]
          %v1885 = vld [vmem:[#allocation13 + $0x628] sm:$0xff]
          %v1886 = vld [vmem:[#allocation13 + $0x630] sm:$0xff]
          %v1887 = vld [vmem:[#allocation13 + $0x638] sm:$0xff]
          %v1888 = vld [vmem:[#allocation13 + $0x640] sm:$0xff]
          %v1889 = vld [vmem:[#allocation13 + $0x648] sm:$0xff]
          %v1890 = vld [vmem:[#allocation13 + $0x650] sm:$0xff]
          %v1891 = vld [vmem:[#allocation13 + $0x658] sm:$0xff]
          %v1892 = vld [vmem:[#allocation13 + $0x660] sm:$0xff]
          %v1893 = vld [vmem:[#allocation13 + $0x668] sm:$0xff]
          %v1894 = vld [vmem:[#allocation13 + $0x670] sm:$0xff]
          %v1895 = vld [vmem:[#allocation13 + $0x678] sm:$0xff]
          %v1896 = vld [vmem:[#allocation13 + $0x680] sm:$0xff]
          %v1897 = vld [vmem:[#allocation13 + $0x688] sm:$0xff]
          %v1898 = vld [vmem:[#allocation13 + $0x690] sm:$0xff]
          %v1899 = vld [vmem:[#allocation13 + $0x698] sm:$0xff]
          %v1900 = vld [vmem:[#allocation13 + $0x6a0] sm:$0xff]
          %v1901 = vld [vmem:[#allocation13 + $0x6a8] sm:$0xff]
          %v1902 = vld [vmem:[#allocation13 + $0x6b0] sm:$0xff]
          %v1903 = vld [vmem:[#allocation13 + $0x6b8] sm:$0xff]
          %v1904 = vld [vmem:[#allocation13 + $0x6c0] sm:$0xff]
          %v1905 = vld [vmem:[#allocation13 + $0x6c8] sm:$0xff]
          %v1906 = vld [vmem:[#allocation13 + $0x6d0] sm:$0xff]
          %v1907 = vld [vmem:[#allocation13 + $0x6d8] sm:$0xff]
          %v1908 = vld [vmem:[#allocation13 + $0x6e0] sm:$0xff]
          %v1909 = vld [vmem:[#allocation13 + $0x6e8] sm:$0xff]
          %v1910 = vld [vmem:[#allocation13 + $0x6f0] sm:$0xff]
          %v1911 = vld [vmem:[#allocation13 + $0x6f8] sm:$0xff]
          %v1912 = vld [vmem:[#allocation13 + $0x700] sm:$0xff]
          %v1913 = vld [vmem:[#allocation13 + $0x708] sm:$0xff]
          %v1914 = vld [vmem:[#allocation13 + $0x710] sm:$0xff]
          %v1915 = vld [vmem:[#allocation13 + $0x718] sm:$0xff]
          %v1916 = vld [vmem:[#allocation13 + $0x720] sm:$0xff]
          %v1917 = vld [vmem:[#allocation13 + $0x728] sm:$0xff]
          %v1918 = vld [vmem:[#allocation13 + $0x730] sm:$0xff]
          %v1919 = vld [vmem:[#allocation13 + $0x738] sm:$0xff]
          %v1920 = vld [vmem:[#allocation13 + $0x740] sm:$0xff]
          %v1921 = vld [vmem:[#allocation13 + $0x748] sm:$0xff]
          %v1922 = vld [vmem:[#allocation13 + $0x750] sm:$0xff]
          %v1923 = vld [vmem:[#allocation13 + $0x758] sm:$0xff]
          %v1924 = vld [vmem:[#allocation13 + $0x760] sm:$0xff]
          %v1925 = vld [vmem:[#allocation13 + $0x768] sm:$0xff]
          %v1926 = vld [vmem:[#allocation13 + $0x770] sm:$0xff]
          %v1927 = vld [vmem:[#allocation13 + $0x778] sm:$0xff]
          %v1928 = vld [vmem:[#allocation13 + $0x780] sm:$0xff]
          %v1929 = vld [vmem:[#allocation13 + $0x788] sm:$0xff]
          %v1930 = vld [vmem:[#allocation13 + $0x790] sm:$0xff]
          %v1931 = vld [vmem:[#allocation13 + $0x798] sm:$0xff]
          %v1932 = vld [vmem:[#allocation13 + $0x7a0] sm:$0xff]
          %v1933 = vld [vmem:[#allocation13 + $0x7a8] sm:$0xff]
          %v1934 = vld [vmem:[#allocation13 + $0x7b0] sm:$0xff]
          %v1935 = vld [vmem:[#allocation13 + $0x7b8] sm:$0xff]
          %v1936 = vld [vmem:[#allocation13 + $0x7c0] sm:$0xff]
          %v1937 = vld [vmem:[#allocation13 + $0x7c8] sm:$0xff]
          %v1938 = vld [vmem:[#allocation13 + $0x7d0] sm:$0xff]
          %v1939 = vld [vmem:[#allocation13 + $0x7d8] sm:$0xff]
          %v1940 = vld [vmem:[#allocation13 + $0x7e0] sm:$0xff]
          %v1941 = vld [vmem:[#allocation13 + $0x7e8] sm:$0xff]
          %v1942 = vld [vmem:[#allocation13 + $0x7f0] sm:$0xff]
          %v1943 = vld [vmem:[#allocation13 + $0x7f8] sm:$0xff]
          %v1944 = vld [vmem:[#allocation13 + $0x800] sm:$0xff]
          %v1945 = vld [vmem:[#allocation13 + $0x808] sm:$0xff]
          %v1946 = vld [vmem:[#allocation13 + $0x810] sm:$0xff]
          %v1947 = vld [vmem:[#allocation13 + $0x818] sm:$0xff]
          %v1948 = vld [vmem:[#allocation13 + $0x820] sm:$0xff]
          %v1949 = vld [vmem:[#allocation13 + $0x828] sm:$0xff]
          %v1950 = vld [vmem:[#allocation13 + $0x830] sm:$0xff]
          %v1951 = vld [vmem:[#allocation13 + $0x838] sm:$0xff]
          %v1952 = vld [vmem:[#allocation13 + $0x840] sm:$0xff]
          %v1953 = vld [vmem:[#allocation13 + $0x848] sm:$0xff]
          %v1954 = vld [vmem:[#allocation13 + $0x850] sm:$0xff]
          %v1955 = vld [vmem:[#allocation13 + $0x858] sm:$0xff]
          %v1956 = vld [vmem:[#allocation13 + $0x860] sm:$0xff]
          %v1957 = vld [vmem:[#allocation13 + $0x868] sm:$0xff]
          %v1958 = vld [vmem:[#allocation13 + $0x870] sm:$0xff]
          %v1959 = vld [vmem:[#allocation13 + $0x878] sm:$0xff]
          %v1960 = vld [vmem:[#allocation13 + $0x880] sm:$0xff]
          %v1961 = vld [vmem:[#allocation13 + $0x888] sm:$0xff]
          %v1962 = vld [vmem:[#allocation13 + $0x890] sm:$0xff]
          %v1963 = vld [vmem:[#allocation13 + $0x898] sm:$0xff]
          %v1964 = vld [vmem:[#allocation13 + $0x8a0] sm:$0xff]
          %v1965 = vld [vmem:[#allocation13 + $0x8a8] sm:$0xff]
          %v1966 = vld [vmem:[#allocation13 + $0x8b0] sm:$0xff]
          %v1967 = vld [vmem:[#allocation13 + $0x8b8] sm:$0xff]
          %v1968 = vld [vmem:[#allocation13 + $0x8c0] sm:$0xff]
          %v1969 = vld [vmem:[#allocation13 + $0x8c8] sm:$0xff]
          %v1970 = vld [vmem:[#allocation13 + $0x8d0] sm:$0xff]
          %v1971 = vld [vmem:[#allocation13 + $0x8d8] sm:$0xff]
          %v1972 = vld [vmem:[#allocation13 + $0x8e0] sm:$0xff]
          %v1973 = vld [vmem:[#allocation13 + $0x8e8] sm:$0xff]
          %v1974 = vld [vmem:[#allocation13 + $0x8f0] sm:$0xff]
          %v1975 = vld [vmem:[#allocation13 + $0x8f8] sm:$0xff]
          %v1976 = vld [vmem:[#allocation13 + $0x900] sm:$0xff]
          %v1977 = vld [vmem:[#allocation13 + $0x908] sm:$0xff]
          %v1978 = vld [vmem:[#allocation13 + $0x910] sm:$0xff]
          %v1979 = vld [vmem:[#allocation13 + $0x918] sm:$0xff]
          %v1980 = vld [vmem:[#allocation13 + $0x920] sm:$0xff]
          %v1981 = vld [vmem:[#allocation13 + $0x928] sm:$0xff]
          %v1982 = vld [vmem:[#allocation13 + $0x930] sm:$0xff]
          %v1983 = vld [vmem:[#allocation13 + $0x938] sm:$0xff]
          %v1984 = vld [vmem:[#allocation13 + $0x940] sm:$0xff]
          %v1985 = vld [vmem:[#allocation13 + $0x948] sm:$0xff]
          %v1986 = vld [vmem:[#allocation13 + $0x950] sm:$0xff]
          %v1987 = vld [vmem:[#allocation13 + $0x958] sm:$0xff]
          %v1988 = vld [vmem:[#allocation13 + $0x960] sm:$0xff]
          %v1989 = vld [vmem:[#allocation13 + $0x968] sm:$0xff]
          %v1990 = vld [vmem:[#allocation13 + $0x970] sm:$0xff]
          %v1991 = vld [vmem:[#allocation13 + $0x978] sm:$0xff]
          %v1992 = vld [vmem:[#allocation13 + $0x980] sm:$0xff]
          %v1993 = vld [vmem:[#allocation13 + $0x988] sm:$0xff]
          %v1994 = vld [vmem:[#allocation13 + $0x990] sm:$0xff]
          %v1995 = vld [vmem:[#allocation13 + $0x998] sm:$0xff]
          %v1996 = vld [vmem:[#allocation13 + $0x9a0] sm:$0xff]
          %v1997 = vld [vmem:[#allocation13 + $0x9a8] sm:$0xff]
          %v1998 = vld [vmem:[#allocation13 + $0x9b0] sm:$0xff]
          %v1999 = vld [vmem:[#allocation13 + $0x9b8] sm:$0xff]
          %v2000 = vld [vmem:[#allocation13 + $0x9c0] sm:$0xff]
          %v2001 = vld [vmem:[#allocation13 + $0x9c8] sm:$0xff]
          %v2002 = vld [vmem:[#allocation13 + $0x9d0] sm:$0xff]
          %v2003 = vld [vmem:[#allocation13 + $0x9d8] sm:$0xff]
          %v2004 = vld [vmem:[#allocation13 + $0x9e0] sm:$0xff]
          %v2005 = vld [vmem:[#allocation13 + $0x9e8] sm:$0xff]
          %v2006 = vld [vmem:[#allocation13 + $0x9f0] sm:$0xff]
          %v2007 = vld [vmem:[#allocation13 + $0x9f8] sm:$0xff]
          %v2008 = vld [vmem:[#allocation13 + $0xa00] sm:$0xff]
          %v2009 = vld [vmem:[#allocation13 + $0xa08] sm:$0xff]
          %v2010 = vld [vmem:[#allocation13 + $0xa10] sm:$0xff]
          %v2011 = vld [vmem:[#allocation13 + $0xa18] sm:$0xff]
          %v2012 = vld [vmem:[#allocation13 + $0xa20] sm:$0xff]
          %v2013 = vld [vmem:[#allocation13 + $0xa28] sm:$0xff]
          %v2014 = vld [vmem:[#allocation13 + $0xa30] sm:$0xff]
          %v2015 = vld [vmem:[#allocation13 + $0xa38] sm:$0xff]
          %v2016 = vld [vmem:[#allocation13 + $0xa40] sm:$0xff]
          %v2017 = vld [vmem:[#allocation13 + $0xa48] sm:$0xff]
          %v2018 = vld [vmem:[#allocation13 + $0xa50] sm:$0xff]
          %v2019 = vld [vmem:[#allocation13 + $0xa58] sm:$0xff]
          %v2020 = vld [vmem:[#allocation13 + $0xa60] sm:$0xff]
          %v2021 = vld [vmem:[#allocation13 + $0xa68] sm:$0xff]
          %v2022 = vld [vmem:[#allocation13 + $0xa70] sm:$0xff]
          %v2023 = vld [vmem:[#allocation13 + $0xa78] sm:$0xff]
          %v2024 = vld [vmem:[#allocation13 + $0xa80] sm:$0xff]
          %v2025 = vld [vmem:[#allocation13 + $0xa88] sm:$0xff]
          %v2026 = vld [vmem:[#allocation13 + $0xa90] sm:$0xff]
          %v2027 = vld [vmem:[#allocation13 + $0xa98] sm:$0xff]
          %v2028 = vld [vmem:[#allocation13 + $0xaa0] sm:$0xff]
          %v2029 = vld [vmem:[#allocation13 + $0xaa8] sm:$0xff]
          %v2030 = vld [vmem:[#allocation13 + $0xab0] sm:$0xff]
          %v2031 = vld [vmem:[#allocation13 + $0xab8] sm:$0xff]
          %v2032 = vld [vmem:[#allocation13 + $0xac0] sm:$0xff]
          %v2033 = vld [vmem:[#allocation13 + $0xac8] sm:$0xff]
          %v2034 = vld [vmem:[#allocation13 + $0xad0] sm:$0xff]
          %v2035 = vld [vmem:[#allocation13 + $0xad8] sm:$0xff]
          %v2036 = vld [vmem:[#allocation13 + $0xae0] sm:$0xff]
          %v2037 = vld [vmem:[#allocation13 + $0xae8] sm:$0xff]
          %v2038 = vld [vmem:[#allocation13 + $0xaf0] sm:$0xff]
          %v2039 = vld [vmem:[#allocation13 + $0xaf8] sm:$0xff]
          %v2040 = vld [vmem:[#allocation13 + $0xb00] sm:$0xff]
          %v2041 = vld [vmem:[#allocation13 + $0xb08] sm:$0xff]
          %v2042 = vld [vmem:[#allocation13 + $0xb10] sm:$0xff]
          %v2043 = vld [vmem:[#allocation13 + $0xb18] sm:$0xff]
          %v2044 = vld [vmem:[#allocation13 + $0xb20] sm:$0xff]
          %v2045 = vld [vmem:[#allocation13 + $0xb28] sm:$0xff]
          %v2046 = vld [vmem:[#allocation13 + $0xb30] sm:$0xff]
          %v2047 = vld [vmem:[#allocation13 + $0xb38] sm:$0xff]
          %v2048 = vld [vmem:[#allocation13 + $0xb40] sm:$0xff]
          %v2049 = vld [vmem:[#allocation13 + $0xb48] sm:$0xff]
          %v2050 = vld [vmem:[#allocation13 + $0xb50] sm:$0xff]
          %v2051 = vld [vmem:[#allocation13 + $0xb58] sm:$0xff]
          %v2052 = vld [vmem:[#allocation13 + $0xb60] sm:$0xff]
          %v2053 = vld [vmem:[#allocation13 + $0xb68] sm:$0xff]
          %v2054 = vld [vmem:[#allocation13 + $0xb70] sm:$0xff]
          %v2055 = vld [vmem:[#allocation13 + $0xb78] sm:$0xff]
          %v2056 = vld [vmem:[#allocation13 + $0xb80] sm:$0xff]
          %v2057 = vld [vmem:[#allocation13 + $0xb88] sm:$0xff]
          %v2058 = vld [vmem:[#allocation13 + $0xb90] sm:$0xff]
          %v2059 = vld [vmem:[#allocation13 + $0xb98] sm:$0xff]
          %v2060 = vld [vmem:[#allocation13 + $0xba0] sm:$0xff]
          %v2061 = vld [vmem:[#allocation13 + $0xba8] sm:$0xff]
          %v2062 = vld [vmem:[#allocation13 + $0xbb0] sm:$0xff]
          %v2063 = vld [vmem:[#allocation13 + $0xbb8] sm:$0xff]
          %v2064 = vld [vmem:[#allocation13 + $0xbc0] sm:$0xff]
          %v2065 = vld [vmem:[#allocation13 + $0xbc8] sm:$0xff]
          %v2066 = vld [vmem:[#allocation13 + $0xbd0] sm:$0xff]
          %v2067 = vld [vmem:[#allocation13 + $0xbd8] sm:$0xff]
          %v2068 = vld [vmem:[#allocation13 + $0xbe0] sm:$0xff]
          %v2069 = vld [vmem:[#allocation13 + $0xbe8] sm:$0xff]
          %v2070 = vld [vmem:[#allocation13 + $0xbf0] sm:$0xff]
          %v2071 = vld [vmem:[#allocation13 + $0xbf8] sm:$0xff]
          %v2072 = vld [vmem:[#allocation15] sm:$0x3]
          %v2074 = vperm.slane %v2072, 0
          %v2075 = vperm.slane %v2072, 1
          %2081 = vst [vmem:[#allocation1] ss:$4 sm:$0xff] %v1685
          %s2082 = scalar_lea.vmem [#allocation1], 32
          %2083 = vst [vmem:[%s2082] ss:$4 sm:$0xff] %v1686
          %v2084 = vld.sshfl [vmem:[#allocation1] sm:$0xff pattern:$0x73625140]
          %v2085 = vld.sshfl [vmem:[#allocation1 + $0x8] sm:$0xff pattern:$0x73625140]
          %v2086 = vld.sshfl [vmem:[#allocation1 + $0x10] sm:$0xff pattern:$0x73625140]
          %v2087 = vld.sshfl [vmem:[#allocation1 + $0x18] sm:$0xff pattern:$0x73625140]
          %v2088 = vld.sshfl [vmem:[#allocation1 + $0x20] sm:$0xff pattern:$0x73625140]
          %v2089 = vld.sshfl [vmem:[#allocation1 + $0x28] sm:$0xff pattern:$0x73625140]
          %v2090 = vld.sshfl [vmem:[#allocation1 + $0x30] sm:$0xff pattern:$0x73625140]
          %v2091 = vld.sshfl [vmem:[#allocation1 + $0x38] sm:$0xff pattern:$0x73625140]
          %2092 = vst [vmem:[#allocation1] ss:$4 sm:$0xff] %v1687
          %v2093 = vld.sshfl [vmem:[#allocation1] sm:$0xff pattern:$0x73625140]
          %v2094 = vld.sshfl [vmem:[#allocation1 + $0x8] sm:$0xff pattern:$0x73625140]
          %v2095 = vld.sshfl [vmem:[#allocation1 + $0x10] sm:$0xff pattern:$0x73625140]
          %v2096 = vld.sshfl [vmem:[#allocation1 + $0x18] sm:$0xff pattern:$0x73625140]
          %2109 = vmatpush.msra.mxu0 %v1718
          %2110 = vmatpush.msra.mxu0 %v1716
          %2111 = vmatpush.msra.mxu0 %v1714
          %2112 = vmatpush.msra.mxu0 %v1712
          %2113 = vmatpush.msra.mxu0 %v1710
          %2114 = vmatpush.msra.mxu0 %v1708
          %2115 = vmatpush.msra.mxu0 %v1706
          %2116 = vmatpush.msra.mxu0 %v1704
          %2117 = vmatpush.msra.mxu0 %v1702
          %2118 = vmatpush.msra.mxu0 %v1700
          %2119 = vmatpush.msra.mxu0 %v1698
          %2120 = vmatpush.msra.mxu0 %v1696
          %2121 = vmatpush.msra.mxu0 %v1694
          %2122 = vmatpush.msra.mxu0 %v1692
          %2123 = vmatpush.msra.mxu0 %v1690
          %2124 = vmatpush.msra.mxu0 %v1688
          %2125 = vmatmul.f32.gmra.mxu0 %v2084
          %v2126 = vpop.f32.mrf.mxu0
          %v2127 = vadd.f32 %v2074, %v2126
          %2128 = vdwg.mxu0
          %2129 = vmatpush.msra.mxu0 %v1750
          %2130 = vmatpush.msra.mxu0 %v1748
          %2131 = vmatpush.msra.mxu0 %v1746
          %2132 = vmatpush.msra.mxu0 %v1744
          %2133 = vmatpush.msra.mxu0 %v1742
          %2134 = vmatpush.msra.mxu0 %v1740
          %2135 = vmatpush.msra.mxu0 %v1738
          %2136 = vmatpush.msra.mxu0 %v1736
          %2137 = vmatpush.msra.mxu0 %v1734
          %2138 = vmatpush.msra.mxu0 %v1732
          %2139 = vmatpush.msra.mxu0 %v1730
          %2140 = vmatpush.msra.mxu0 %v1728
          %2141 = vmatpush.msra.mxu0 %v1726
          %2142 = vmatpush.msra.mxu0 %v1724
          %2143 = vmatpush.msra.mxu0 %v1722
          %2144 = vmatpush.msra.mxu0 %v1720
          %2145 = vmatmul.f32.gmra.mxu0 %v2085
          %v2146 = vpop.f32.mrf.mxu0
          %v2147 = vadd.f32 %v2127, %v2146
          %2148 = vdwg.mxu0
          %2149 = vmatpush.msra.mxu0 %v1782
          %2150 = vmatpush.msra.mxu0 %v1780
          %2151 = vmatpush.msra.mxu0 %v1778
          %2152 = vmatpush.msra.mxu0 %v1776
          %2153 = vmatpush.msra.mxu0 %v1774
          %2154 = vmatpush.msra.mxu0 %v1772
          %2155 = vmatpush.msra.mxu0 %v1770
          %2156 = vmatpush.msra.mxu0 %v1768
          %2157 = vmatpush.msra.mxu0 %v1766
          %2158 = vmatpush.msra.mxu0 %v1764
          %2159 = vmatpush.msra.mxu0 %v1762
          %2160 = vmatpush.msra.mxu0 %v1760
          %2161 = vmatpush.msra.mxu0 %v1758
          %2162 = vmatpush.msra.mxu0 %v1756
          %2163 = vmatpush.msra.mxu0 %v1754
          %2164 = vmatpush.msra.mxu0 %v1752
          %2165 = vmatmul.f32.gmra.mxu0 %v2086
          %v2166 = vpop.f32.mrf.mxu0
          %v2167 = vadd.f32 %v2147, %v2166
          %2168 = vdwg.mxu0
          %2169 = vmatpush.msra.mxu0 %v1814
          %2170 = vmatpush.msra.mxu0 %v1812
          %2171 = vmatpush.msra.mxu0 %v1810
          %2172 = vmatpush.msra.mxu0 %v1808
          %2173 = vmatpush.msra.mxu0 %v1806
          %2174 = vmatpush.msra.mxu0 %v1804
          %2175 = vmatpush.msra.mxu0 %v1802
          %2176 = vmatpush.msra.mxu0 %v1800
          %2177 = vmatpush.msra.mxu0 %v1798
          %2178 = vmatpush.msra.mxu0 %v1796
          %2179 = vmatpush.msra.mxu0 %v1794
          %2180 = vmatpush.msra.mxu0 %v1792
          %2181 = vmatpush.msra.mxu0 %v1790
          %2182 = vmatpush.msra.mxu0 %v1788
          %2183 = vmatpush.msra.mxu0 %v1786
          %2184 = vmatpush.msra.mxu0 %v1784
          %2185 = vmatmul.f32.gmra.mxu0 %v2087
          %v2186 = vpop.f32.mrf.mxu0
          %v2187 = vadd.f32 %v2167, %v2186
          %2188 = vdwg.mxu0
          %2189 = vmatpush.msra.mxu0 %v1846
          %2190 = vmatpush.msra.mxu0 %v1844
          %2191 = vmatpush.msra.mxu0 %v1842
          %2192 = vmatpush.msra.mxu0 %v1840
          %2193 = vmatpush.msra.mxu0 %v1838
          %2194 = vmatpush.msra.mxu0 %v1836
          %2195 = vmatpush.msra.mxu0 %v1834
          %2196 = vmatpush.msra.mxu0 %v1832
          %2197 = vmatpush.msra.mxu0 %v1830
          %2198 = vmatpush.msra.mxu0 %v1828
          %2199 = vmatpush.msra.mxu0 %v1826
          %2200 = vmatpush.msra.mxu0 %v1824
          %2201 = vmatpush.msra.mxu0 %v1822
          %2202 = vmatpush.msra.mxu0 %v1820
          %2203 = vmatpush.msra.mxu0 %v1818
          %2204 = vmatpush.msra.mxu0 %v1816
          %2205 = vmatmul.f32.gmra.mxu0 %v2088
          %v2206 = vpop.f32.mrf.mxu0
          %v2207 = vadd.f32 %v2187, %v2206
          %2208 = vdwg.mxu0
          %2209 = vmatpush.msra.mxu0 %v1878
          %2210 = vmatpush.msra.mxu0 %v1876
          %2211 = vmatpush.msra.mxu0 %v1874
          %2212 = vmatpush.msra.mxu0 %v1872
          %2213 = vmatpush.msra.mxu0 %v1870
          %2214 = vmatpush.msra.mxu0 %v1868
          %2215 = vmatpush.msra.mxu0 %v1866
          %2216 = vmatpush.msra.mxu0 %v1864
          %2217 = vmatpush.msra.mxu0 %v1862
          %2218 = vmatpush.msra.mxu0 %v1860
          %2219 = vmatpush.msra.mxu0 %v1858
          %2220 = vmatpush.msra.mxu0 %v1856
          %2221 = vmatpush.msra.mxu0 %v1854
          %2222 = vmatpush.msra.mxu0 %v1852
          %2223 = vmatpush.msra.mxu0 %v1850
          %2224 = vmatpush.msra.mxu0 %v1848
          %2225 = vmatmul.f32.gmra.mxu0 %v2089
          %v2226 = vpop.f32.mrf.mxu0
          %v2227 = vadd.f32 %v2207, %v2226
          %2228 = vdwg.mxu0
          %2229 = vmatpush.msra.mxu0 %v1910
          %2230 = vmatpush.msra.mxu0 %v1908
          %2231 = vmatpush.msra.mxu0 %v1906
          %2232 = vmatpush.msra.mxu0 %v1904
          %2233 = vmatpush.msra.mxu0 %v1902
          %2234 = vmatpush.msra.mxu0 %v1900
          %2235 = vmatpush.msra.mxu0 %v1898
          %2236 = vmatpush.msra.mxu0 %v1896
          %2237 = vmatpush.msra.mxu0 %v1894
          %2238 = vmatpush.msra.mxu0 %v1892
          %2239 = vmatpush.msra.mxu0 %v1890
          %2240 = vmatpush.msra.mxu0 %v1888
          %2241 = vmatpush.msra.mxu0 %v1886
          %2242 = vmatpush.msra.mxu0 %v1884
          %2243 = vmatpush.msra.mxu0 %v1882
          %2244 = vmatpush.msra.mxu0 %v1880
          %2245 = vmatmul.f32.gmra.mxu0 %v2090
          %v2246 = vpop.f32.mrf.mxu0
          %v2247 = vadd.f32 %v2227, %v2246
          %2248 = vdwg.mxu0
          %2249 = vmatpush.msra.mxu0 %v1942
          %2250 = vmatpush.msra.mxu0 %v1940
          %2251 = vmatpush.msra.mxu0 %v1938
          %2252 = vmatpush.msra.mxu0 %v1936
          %2253 = vmatpush.msra.mxu0 %v1934
          %2254 = vmatpush.msra.mxu0 %v1932
          %2255 = vmatpush.msra.mxu0 %v1930
          %2256 = vmatpush.msra.mxu0 %v1928
          %2257 = vmatpush.msra.mxu0 %v1926
          %2258 = vmatpush.msra.mxu0 %v1924
          %2259 = vmatpush.msra.mxu0 %v1922
          %2260 = vmatpush.msra.mxu0 %v1920
          %2261 = vmatpush.msra.mxu0 %v1918
          %2262 = vmatpush.msra.mxu0 %v1916
          %2263 = vmatpush.msra.mxu0 %v1914
          %2264 = vmatpush.msra.mxu0 %v1912
          %2265 = vmatmul.f32.gmra.mxu0 %v2091
          %v2266 = vpop.f32.mrf.mxu0
          %v2267 = vadd.f32 %v2247, %v2266
          %2268 = vdwg.mxu0
          %2269 = vmatpush.msra.mxu0 %v1974
          %2270 = vmatpush.msra.mxu0 %v1972
          %2271 = vmatpush.msra.mxu0 %v1970
          %2272 = vmatpush.msra.mxu0 %v1968
          %2273 = vmatpush.msra.mxu0 %v1966
          %2274 = vmatpush.msra.mxu0 %v1964
          %2275 = vmatpush.msra.mxu0 %v1962
          %2276 = vmatpush.msra.mxu0 %v1960
          %2277 = vmatpush.msra.mxu0 %v1958
          %2278 = vmatpush.msra.mxu0 %v1956
          %2279 = vmatpush.msra.mxu0 %v1954
          %2280 = vmatpush.msra.mxu0 %v1952
          %2281 = vmatpush.msra.mxu0 %v1950
          %2282 = vmatpush.msra.mxu0 %v1948
          %2283 = vmatpush.msra.mxu0 %v1946
          %2284 = vmatpush.msra.mxu0 %v1944
          %2285 = vmatmul.f32.gmra.mxu0 %v2093
          %v2286 = vpop.f32.mrf.mxu0
          %v2287 = vadd.f32 %v2267, %v2286
          %2288 = vdwg.mxu0
          %2289 = vmatpush.msra.mxu0 %v2006
          %2290 = vmatpush.msra.mxu0 %v2004
          %2291 = vmatpush.msra.mxu0 %v2002
          %2292 = vmatpush.msra.mxu0 %v2000
          %2293 = vmatpush.msra.mxu0 %v1998
          %2294 = vmatpush.msra.mxu0 %v1996
          %2295 = vmatpush.msra.mxu0 %v1994
          %2296 = vmatpush.msra.mxu0 %v1992
          %2297 = vmatpush.msra.mxu0 %v1990
          %2298 = vmatpush.msra.mxu0 %v1988
          %2299 = vmatpush.msra.mxu0 %v1986
          %2300 = vmatpush.msra.mxu0 %v1984
          %2301 = vmatpush.msra.mxu0 %v1982
          %2302 = vmatpush.msra.mxu0 %v1980
          %2303 = vmatpush.msra.mxu0 %v1978
          %2304 = vmatpush.msra.mxu0 %v1976
          %2305 = vmatmul.f32.gmra.mxu0 %v2094
          %v2306 = vpop.f32.mrf.mxu0
          %v2307 = vadd.f32 %v2287, %v2306
          %2308 = vdwg.mxu0
          %2309 = vmatpush.msra.mxu0 %v2038
          %2310 = vmatpush.msra.mxu0 %v2036
          %2311 = vmatpush.msra.mxu0 %v2034
          %2312 = vmatpush.msra.mxu0 %v2032
          %2313 = vmatpush.msra.mxu0 %v2030
          %2314 = vmatpush.msra.mxu0 %v2028
          %2315 = vmatpush.msra.mxu0 %v2026
          %2316 = vmatpush.msra.mxu0 %v2024
          %2317 = vmatpush.msra.mxu0 %v2022
          %2318 = vmatpush.msra.mxu0 %v2020
          %2319 = vmatpush.msra.mxu0 %v2018
          %2320 = vmatpush.msra.mxu0 %v2016
          %2321 = vmatpush.msra.mxu0 %v2014
          %2322 = vmatpush.msra.mxu0 %v2012
          %2323 = vmatpush.msra.mxu0 %v2010
          %2324 = vmatpush.msra.mxu0 %v2008
          %2325 = vmatmul.f32.gmra.mxu0 %v2095
          %v2326 = vpop.f32.mrf.mxu0
          %v2327 = vadd.f32 %v2307, %v2326
          %2328 = vdwg.mxu0
          %2329 = vmatpush.msra.mxu0 %v2070
          %2330 = vmatpush.msra.mxu0 %v2068
          %2331 = vmatpush.msra.mxu0 %v2066
          %2332 = vmatpush.msra.mxu0 %v2064
          %2333 = vmatpush.msra.mxu0 %v2062
          %2334 = vmatpush.msra.mxu0 %v2060
          %2335 = vmatpush.msra.mxu0 %v2058
          %2336 = vmatpush.msra.mxu0 %v2056
          %2337 = vmatpush.msra.mxu0 %v2054
          %2338 = vmatpush.msra.mxu0 %v2052
          %2339 = vmatpush.msra.mxu0 %v2050
          %2340 = vmatpush.msra.mxu0 %v2048
          %2341 = vmatpush.msra.mxu0 %v2046
          %2342 = vmatpush.msra.mxu0 %v2044
          %2343 = vmatpush.msra.mxu0 %v2042
          %2344 = vmatpush.msra.mxu0 %v2040
          %2345 = vmatmul.f32.gmra.mxu0 %v2096
          %v2346 = vpop.f32.mrf.mxu0
          %v2347 = vadd.f32 %v2327, %v2346
          %2348 = vdwg.mxu0
          %2349 = vmatpush.msra.mxu0 %v1719
          %2350 = vmatpush.msra.mxu0 %v1717
          %2351 = vmatpush.msra.mxu0 %v1715
          %2352 = vmatpush.msra.mxu0 %v1713
          %2353 = vmatpush.msra.mxu0 %v1711
          %2354 = vmatpush.msra.mxu0 %v1709
          %2355 = vmatpush.msra.mxu0 %v1707
          %2356 = vmatpush.msra.mxu0 %v1705
          %2357 = vmatpush.msra.mxu0 %v1703
          %2358 = vmatpush.msra.mxu0 %v1701
          %2359 = vmatpush.msra.mxu0 %v1699
          %2360 = vmatpush.msra.mxu0 %v1697
          %2361 = vmatpush.msra.mxu0 %v1695
          %2362 = vmatpush.msra.mxu0 %v1693
          %2363 = vmatpush.msra.mxu0 %v1691
          %2364 = vmatpush.msra.mxu0 %v1689
          %2365 = vmatmul.f32.gmra.mxu0 %v2084
          %v2366 = vpop.f32.mrf.mxu0
          %v2367 = vadd.f32 %v2075, %v2366
          %2368 = vdwg.mxu0
          %2369 = vmatpush.msra.mxu0 %v1751
          %2370 = vmatpush.msra.mxu0 %v1749
          %2371 = vmatpush.msra.mxu0 %v1747
          %2372 = vmatpush.msra.mxu0 %v1745
          %2373 = vmatpush.msra.mxu0 %v1743
          %2374 = vmatpush.msra.mxu0 %v1741
          %2375 = vmatpush.msra.mxu0 %v1739
          %2376 = vmatpush.msra.mxu0 %v1737
          %2377 = vmatpush.msra.mxu0 %v1735
          %2378 = vmatpush.msra.mxu0 %v1733
          %2379 = vmatpush.msra.mxu0 %v1731
          %2380 = vmatpush.msra.mxu0 %v1729
          %2381 = vmatpush.msra.mxu0 %v1727
          %2382 = vmatpush.msra.mxu0 %v1725
          %2383 = vmatpush.msra.mxu0 %v1723
          %2384 = vmatpush.msra.mxu0 %v1721
          %2385 = vmatmul.f32.gmra.mxu0 %v2085
          %v2386 = vpop.f32.mrf.mxu0
          %v2387 = vadd.f32 %v2367, %v2386
          %2388 = vdwg.mxu0
          %2389 = vmatpush.msra.mxu0 %v1783
          %2390 = vmatpush.msra.mxu0 %v1781
          %2391 = vmatpush.msra.mxu0 %v1779
          %2392 = vmatpush.msra.mxu0 %v1777
          %2393 = vmatpush.msra.mxu0 %v1775
          %2394 = vmatpush.msra.mxu0 %v1773
          %2395 = vmatpush.msra.mxu0 %v1771
          %2396 = vmatpush.msra.mxu0 %v1769
          %2397 = vmatpush.msra.mxu0 %v1767
          %2398 = vmatpush.msra.mxu0 %v1765
          %2399 = vmatpush.msra.mxu0 %v1763
          %2400 = vmatpush.msra.mxu0 %v1761
          %2401 = vmatpush.msra.mxu0 %v1759
          %2402 = vmatpush.msra.mxu0 %v1757
          %2403 = vmatpush.msra.mxu0 %v1755
          %2404 = vmatpush.msra.mxu0 %v1753
          %2405 = vmatmul.f32.gmra.mxu0 %v2086
          %v2406 = vpop.f32.mrf.mxu0
          %v2407 = vadd.f32 %v2387, %v2406
          %2408 = vdwg.mxu0
          %2409 = vmatpush.msra.mxu0 %v1815
          %2410 = vmatpush.msra.mxu0 %v1813
          %2411 = vmatpush.msra.mxu0 %v1811
          %2412 = vmatpush.msra.mxu0 %v1809
          %2413 = vmatpush.msra.mxu0 %v1807
          %2414 = vmatpush.msra.mxu0 %v1805
          %2415 = vmatpush.msra.mxu0 %v1803
          %2416 = vmatpush.msra.mxu0 %v1801
          %2417 = vmatpush.msra.mxu0 %v1799
          %2418 = vmatpush.msra.mxu0 %v1797
          %2419 = vmatpush.msra.mxu0 %v1795
          %2420 = vmatpush.msra.mxu0 %v1793
          %2421 = vmatpush.msra.mxu0 %v1791
          %2422 = vmatpush.msra.mxu0 %v1789
          %2423 = vmatpush.msra.mxu0 %v1787
          %2424 = vmatpush.msra.mxu0 %v1785
          %2425 = vmatmul.f32.gmra.mxu0 %v2087
          %v2426 = vpop.f32.mrf.mxu0
          %v2427 = vadd.f32 %v2407, %v2426
          %2428 = vdwg.mxu0
          %2429 = vmatpush.msra.mxu0 %v1847
          %2430 = vmatpush.msra.mxu0 %v1845
          %2431 = vmatpush.msra.mxu0 %v1843
          %2432 = vmatpush.msra.mxu0 %v1841
          %2433 = vmatpush.msra.mxu0 %v1839
          %2434 = vmatpush.msra.mxu0 %v1837
          %2435 = vmatpush.msra.mxu0 %v1835
          %2436 = vmatpush.msra.mxu0 %v1833
          %2437 = vmatpush.msra.mxu0 %v1831
          %2438 = vmatpush.msra.mxu0 %v1829
          %2439 = vmatpush.msra.mxu0 %v1827
          %2440 = vmatpush.msra.mxu0 %v1825
          %2441 = vmatpush.msra.mxu0 %v1823
          %2442 = vmatpush.msra.mxu0 %v1821
          %2443 = vmatpush.msra.mxu0 %v1819
          %2444 = vmatpush.msra.mxu0 %v1817
          %2445 = vmatmul.f32.gmra.mxu0 %v2088
          %v2446 = vpop.f32.mrf.mxu0
          %v2447 = vadd.f32 %v2427, %v2446
          %2448 = vdwg.mxu0
          %2449 = vmatpush.msra.mxu0 %v1879
          %2450 = vmatpush.msra.mxu0 %v1877
          %2451 = vmatpush.msra.mxu0 %v1875
          %2452 = vmatpush.msra.mxu0 %v1873
          %2453 = vmatpush.msra.mxu0 %v1871
          %2454 = vmatpush.msra.mxu0 %v1869
          %2455 = vmatpush.msra.mxu0 %v1867
          %2456 = vmatpush.msra.mxu0 %v1865
          %2457 = vmatpush.msra.mxu0 %v1863
          %2458 = vmatpush.msra.mxu0 %v1861
          %2459 = vmatpush.msra.mxu0 %v1859
          %2460 = vmatpush.msra.mxu0 %v1857
          %2461 = vmatpush.msra.mxu0 %v1855
          %2462 = vmatpush.msra.mxu0 %v1853
          %2463 = vmatpush.msra.mxu0 %v1851
          %2464 = vmatpush.msra.mxu0 %v1849
          %2465 = vmatmul.f32.gmra.mxu0 %v2089
          %v2466 = vpop.f32.mrf.mxu0
          %v2467 = vadd.f32 %v2447, %v2466
          %2468 = vdwg.mxu0
          %2469 = vmatpush.msra.mxu0 %v1911
          %2470 = vmatpush.msra.mxu0 %v1909
          %2471 = vmatpush.msra.mxu0 %v1907
          %2472 = vmatpush.msra.mxu0 %v1905
          %2473 = vmatpush.msra.mxu0 %v1903
          %2474 = vmatpush.msra.mxu0 %v1901
          %2475 = vmatpush.msra.mxu0 %v1899
          %2476 = vmatpush.msra.mxu0 %v1897
          %2477 = vmatpush.msra.mxu0 %v1895
          %2478 = vmatpush.msra.mxu0 %v1893
          %2479 = vmatpush.msra.mxu0 %v1891
          %2480 = vmatpush.msra.mxu0 %v1889
          %2481 = vmatpush.msra.mxu0 %v1887
          %2482 = vmatpush.msra.mxu0 %v1885
          %2483 = vmatpush.msra.mxu0 %v1883
          %2484 = vmatpush.msra.mxu0 %v1881
          %2485 = vmatmul.f32.gmra.mxu0 %v2090
          %v2486 = vpop.f32.mrf.mxu0
          %v2487 = vadd.f32 %v2467, %v2486
          %2488 = vdwg.mxu0
          %2489 = vmatpush.msra.mxu0 %v1943
          %2490 = vmatpush.msra.mxu0 %v1941
          %2491 = vmatpush.msra.mxu0 %v1939
          %2492 = vmatpush.msra.mxu0 %v1937
          %2493 = vmatpush.msra.mxu0 %v1935
          %2494 = vmatpush.msra.mxu0 %v1933
          %2495 = vmatpush.msra.mxu0 %v1931
          %2496 = vmatpush.msra.mxu0 %v1929
          %2497 = vmatpush.msra.mxu0 %v1927
          %2498 = vmatpush.msra.mxu0 %v1925
          %2499 = vmatpush.msra.mxu0 %v1923
          %2500 = vmatpush.msra.mxu0 %v1921
          %2501 = vmatpush.msra.mxu0 %v1919
          %2502 = vmatpush.msra.mxu0 %v1917
          %2503 = vmatpush.msra.mxu0 %v1915
          %2504 = vmatpush.msra.mxu0 %v1913
          %2505 = vmatmul.f32.gmra.mxu0 %v2091
          %v2506 = vpop.f32.mrf.mxu0
          %v2507 = vadd.f32 %v2487, %v2506
          %2508 = vdwg.mxu0
          %2509 = vmatpush.msra.mxu0 %v1975
          %2510 = vmatpush.msra.mxu0 %v1973
          %2511 = vmatpush.msra.mxu0 %v1971
          %2512 = vmatpush.msra.mxu0 %v1969
          %2513 = vmatpush.msra.mxu0 %v1967
          %2514 = vmatpush.msra.mxu0 %v1965
          %2515 = vmatpush.msra.mxu0 %v1963
          %2516 = vmatpush.msra.mxu0 %v1961
          %2517 = vmatpush.msra.mxu0 %v1959
          %2518 = vmatpush.msra.mxu0 %v1957
          %2519 = vmatpush.msra.mxu0 %v1955
          %2520 = vmatpush.msra.mxu0 %v1953
          %2521 = vmatpush.msra.mxu0 %v1951
          %2522 = vmatpush.msra.mxu0 %v1949
          %2523 = vmatpush.msra.mxu0 %v1947
          %2524 = vmatpush.msra.mxu0 %v1945
          %2525 = vmatmul.f32.gmra.mxu0 %v2093
          %v2526 = vpop.f32.mrf.mxu0
          %v2527 = vadd.f32 %v2507, %v2526
          %2528 = vdwg.mxu0
          %2529 = vmatpush.msra.mxu0 %v2007
          %2530 = vmatpush.msra.mxu0 %v2005
          %2531 = vmatpush.msra.mxu0 %v2003
          %2532 = vmatpush.msra.mxu0 %v2001
          %2533 = vmatpush.msra.mxu0 %v1999
          %2534 = vmatpush.msra.mxu0 %v1997
          %2535 = vmatpush.msra.mxu0 %v1995
          %2536 = vmatpush.msra.mxu0 %v1993
          %2537 = vmatpush.msra.mxu0 %v1991
          %2538 = vmatpush.msra.mxu0 %v1989
          %2539 = vmatpush.msra.mxu0 %v1987
          %2540 = vmatpush.msra.mxu0 %v1985
          %2541 = vmatpush.msra.mxu0 %v1983
          %2542 = vmatpush.msra.mxu0 %v1981
          %2543 = vmatpush.msra.mxu0 %v1979
          %2544 = vmatpush.msra.mxu0 %v1977
          %2545 = vmatmul.f32.gmra.mxu0 %v2094
          %v2546 = vpop.f32.mrf.mxu0
          %v2547 = vadd.f32 %v2527, %v2546
          %2548 = vdwg.mxu0
          %2549 = vmatpush.msra.mxu0 %v2039
          %2550 = vmatpush.msra.mxu0 %v2037
          %2551 = vmatpush.msra.mxu0 %v2035
          %2552 = vmatpush.msra.mxu0 %v2033
          %2553 = vmatpush.msra.mxu0 %v2031
          %2554 = vmatpush.msra.mxu0 %v2029
          %2555 = vmatpush.msra.mxu0 %v2027
          %2556 = vmatpush.msra.mxu0 %v2025
          %2557 = vmatpush.msra.mxu0 %v2023
          %2558 = vmatpush.msra.mxu0 %v2021
          %2559 = vmatpush.msra.mxu0 %v2019
          %2560 = vmatpush.msra.mxu0 %v2017
          %2561 = vmatpush.msra.mxu0 %v2015
          %2562 = vmatpush.msra.mxu0 %v2013
          %2563 = vmatpush.msra.mxu0 %v2011
          %2564 = vmatpush.msra.mxu0 %v2009
          %2565 = vmatmul.f32.gmra.mxu0 %v2095
          %v2566 = vpop.f32.mrf.mxu0
          %v2567 = vadd.f32 %v2547, %v2566
          %2568 = vdwg.mxu0
          %2569 = vmatpush.msra.mxu0 %v2071
          %2570 = vmatpush.msra.mxu0 %v2069
          %2571 = vmatpush.msra.mxu0 %v2067
          %2572 = vmatpush.msra.mxu0 %v2065
          %2573 = vmatpush.msra.mxu0 %v2063
          %2574 = vmatpush.msra.mxu0 %v2061
          %2575 = vmatpush.msra.mxu0 %v2059
          %2576 = vmatpush.msra.mxu0 %v2057
          %2577 = vmatpush.msra.mxu0 %v2055
          %2578 = vmatpush.msra.mxu0 %v2053
          %2579 = vmatpush.msra.mxu0 %v2051
          %2580 = vmatpush.msra.mxu0 %v2049
          %2581 = vmatpush.msra.mxu0 %v2047
          %2582 = vmatpush.msra.mxu0 %v2045
          %2583 = vmatpush.msra.mxu0 %v2043
          %2584 = vmatpush.msra.mxu0 %v2041
          %2585 = vmatmul.f32.gmra.mxu0 %v2096
          %v2586 = vpop.f32.mrf.mxu0
          %v2587 = vadd.f32 %v2567, %v2586
          %2588 = vdwg.mxu0
          %v2589 = vmul.f32 %v2347, %v2347
          %v2590 = vmul.f32 %v2587, %v2587
          %v2591 = vsel %vm887, %v2589, 0.0
          %v2592 = vsel %vm887, %v2590, 0.0
          %v2593 = vadd.f32 %v2591, %v2592
          %2594 = vadd.xlane.f32.xlu0 %v2593
          %v2595 = vpop.xlane.xlu0 %2594
          %v2596 = vmax.f32 %v2595, 1e-24
          %v2597 = vrsqrt.pop %v2596
          %v2598 = vmul.f32 %v2597, %v2596
          %v2599 = vmul.f32 %v2598, %v2597
          %v2600 = vmul.f32 0.5, %v2599
          %v2601 = vsub.f32 1.5, %v2600
          %v2602 = vmul.f32 %v2597, %v2601
          %vm2603 = vweird.f32 %v2596
          %vm2604 = vweird.f32 %v2597
          %vm2605 = vmor %vm2603, %vm2604
          %v2606 = vsel %vm2605, %v2597, %v2602
          %v2607 = vmul.f32 %v2347, %v2606
          %v2608 = vmul.f32 %v2587, %v2606
          %v2611 = vrot.slane %v2608, 6
          %v2612 = vsel %vm887, %v2607, %v2611
          %2614 = vst [vmem:[#allocation16] sm:$0xf] %v2612
        $region84: #{tpu_custom_call.1} parent=47 // pred_fallthru
          _
        // Predicated region
        $region85: #{tpu_custom_call.1} parent=47 // pred_check
          %p2615 = pneg %p209
        $region86: #{tpu_custom_call.1} parent=47 // pred_check_branch
          %2617 = sbr.rel (%p2615) target = $region88
        $region87: #{tpu_custom_call.1} parent=47 // pred_region
          %2619 = vsyncadd [#allocation6], 0
          %s2620 = smul.addr %s29, 2
          %s2621 = smul.addr %s2620, 2
          %s2622 = scalar_lea.hbm %s7, %s2621
          %s2624 = sshll.u32 [#allocation16], 4
          %s2625 = int_to_ptr.vmem [resolvable:$true] %s2624
          %s2626 = sshll.u32 %s2622, 4
          %s2627 = int_to_ptr.hbm [resolvable:$true] %s2626
          %2629 = dma.vmem_to_hbm [thread:$0]  %s2625, 64, %s2627, [#allocation6]
        $region88: #{tpu_custom_call.1} parent=47 // pred_fallthru
          _
        // Predicated region
        $region89: #{tpu_custom_call.1} parent=47 // pred_check
          %p2630 = pneg %p209
        $region90: #{tpu_custom_call.1} parent=47 // pred_check_branch
          %2632 = sbr.rel (%p2630) target = $region92
        $region91: #{tpu_custom_call.1} parent=47 // pred_region
          %2634 = dma.done [#allocation6], 64
        $region92: #{tpu_custom_call.1} parent=47 // pred_fallthru
          _
      $region48: #{tpu_custom_call.1} parent=5 // pred_fallthru
        _
      %p2635 = scmp.le.s32.totalorder 2, %s20
      // Predicated region
      $region93: #{tpu_custom_call.1} parent=5 // pred_check
        %p2636 = pneg %p2635
      $region94: #{tpu_custom_call.1} parent=5 // pred_check_branch
        %2638 = sbr.rel (%p2636) target = $region96
      $region95: #{tpu_custom_call.1} parent=5 // pred_region
        %s2639 = ssub.s32 %s20, 2
      $region96: #{tpu_custom_call.1} parent=5 // pred_fallthru
        _
    $region6: #{tpu_custom_call.1} parent=1 // loop_footer
      %s24 = sadd.s32 1, %s20
    $region7: #{tpu_custom_call.1} parent=1 // loop_footer_branch
      %19 = sbr.rel target = $region3
    $region8: #{tpu_custom_call.1} parent=1 // loop_exit
      _
    %2640 = vsyncpa [#allocation5], 1
    %s2641 = scalar_lea.sflag [#allocation5], 1
    %2642 = vsyncpa %s2641, 1
    %2643 = vsyncpa [#allocation8], 1
    %2644 = vsyncpa [#allocation11], 1
    %2645 = vsyncpa [#allocation14], 1
    %2646 = vsyncpa [#allocation6], 1
    %s2647 = scalar_lea.sflag [#allocation6], 1
    %2648 = vsyncpa %s2647, 1

</llo_original>
